<compile_context>
chip_gen: v6e
topology: v6e:2x2x1
jax: 0.10.0
libtpu: 0.0.40
codegen_flags: <defaults>
</compile_context>

<pallas_src>
import math
import functools

import jax
import jax.numpy as jnp
from jax.experimental import pallas as pl
from jax.experimental.pallas import tpu as pltpu


# ----------------------------- VMEM / tiling setup ----------------------------- #

def _default_vmem_limit():
    # v5e/v6e: 128 MiB physical VMEM -> raise the scoped limit to 64 MiB so the
    # matmuls can use bigger row tiles (fewer weight re-streams from HBM).
    # v7x: 64 MiB physical per TensorCore -> keep the scoped limit at 32 MiB.
    try:
        cap = int(pltpu.get_tpu_info().vmem_capacity_bytes)
        return int(min(64 * 1024 * 1024, max(cap // 2, 16 * 1024 * 1024)))
    except Exception:
        return 32 * 1024 * 1024


_VMEM_LIMIT = _default_vmem_limit()
_VMEM_BUDGET = int(_VMEM_LIMIT * 0.7)        # per-step footprint target (pipeline headroom)

# bf16 packs 16 rows per vreg sublane group: 16-row floor, prefer >= 32.
if _VMEM_LIMIT >= 48 * 1024 * 1024:          # v5e / v6e (128 MiB physical)
    _M_TILES = (1024, 512, 256, 128, 64, 32, 16)
else:                                        # v7x (64 MiB physical): cap tm at 512
    _M_TILES = (512, 256, 128, 64, 32, 16)
_N_TILES = (512, 256, 128)
_K_TILES = (512, 256, 128)
_LN_ROW_TILES = (512, 256, 128, 64, 32, 16)
_KV_TILES = (512, 256, 128)


def _pick_tile(dim, prefs):
    """Largest preferred tile that evenly divides `dim`, else the full dim."""
    for p in prefs:
        if dim % p == 0:
            return p
    return dim


def _pick_tile_budget(dim, prefs, fits):
    """Largest preferred tile dividing `dim` whose per-step footprint fits VMEM."""
    cands = [t for t in prefs if dim % t == 0] or [dim]
    for t in cands:                          # prefs are descending
        if fits(t):
            return t
    return cands[-1]


def _gelu_tanh(y):
    """OpenAI gelu_impl (tanh approximation), computed in f32."""
    # TODO(synk): erf-based gelu if bit-accuracy vs nn.functional.gelu is required.
    return 0.5 * y * (1.0 + jnp.tanh(0.7978845608028654 * y * (1.0 + 0.044715 * y * y)))


# -------------------------------- linear kernels -------------------------------- #

def _linear_kernel(x_ref, w_ref, b_ref, o_ref, acc_ref, *, act):
    k = pl.program_id(2)

    @pl.when(k == 0)
    def _():
        acc_ref[...] = jnp.zeros_like(acc_ref)

    acc_ref[...] += jnp.dot(x_ref[...], w_ref[...],
                            preferred_element_type=jnp.float32)

    @pl.when(k == pl.num_programs(2) - 1)
    def _():
        y = acc_ref[...] + b_ref[...].astype(jnp.float32)
        if act == "gelu":
            y = _gelu_tanh(y)
        o_ref[...] = y.astype(o_ref.dtype)


def linear_pallas(x, w, b, act=None):
    """y = act(x @ w + b).  x: (M, K), w: (K, N), b: (N,).  Tiled (M, N, K)."""
    M, K = x.shape
    N = w.shape[1]
    item = x.dtype.itemsize
    tn = _pick_tile(N, _N_TILES)
    tk = _pick_tile(K, _K_TILES)

    def fits(tm):
        foot = (2 * tm * tk + 2 * tk * tn + 2 * tm * tn + 2 * tn) * item + tm * tn * 4
        return foot <= _VMEM_BUDGET

    tm = _pick_tile_budget(M, _M_TILES, fits)
    gm, gn, gk = M // tm, N // tn, K // tk
    cost = pl.CostEstimate(
        flops=2 * M * N * K,
        transcendentals=M * N if act == "gelu" else 0,
        bytes_accessed=item * (M * K * gn + K * N * gm + M * N + N))
    kernel = functools.partial(_linear_kernel, act=act)
    return pl.pallas_call(
        kernel,
        out_shape=jax.ShapeDtypeStruct((M, N), x.dtype),
        grid=(gm, gn, gk),
        in_specs=[
            pl.BlockSpec((tm, tk), lambda i, j, k: (i, k)),
            pl.BlockSpec((tk, tn), lambda i, j, k: (k, j)),
            pl.BlockSpec((1, tn), lambda i, j, k: (0, j)),
        ],
        out_specs=pl.BlockSpec((tm, tn), lambda i, j, k: (i, j)),
        scratch_shapes=[pltpu.VMEM((tm, tn), jnp.float32)],
        compiler_params=pltpu.CompilerParams(
            dimension_semantics=("parallel", "parallel", "arbitrary"),
            vmem_limit_bytes=_VMEM_LIMIT),
        cost_estimate=cost,
    )(x, w, b.reshape(1, N))


def _linear_res_ln_kernel(x_ref, w_ref, b_ref, r_ref, g_ref, bt_ref, o_ref,
                          acc_ref, *, eps):
    k = pl.program_id(1)

    @pl.when(k == 0)
    def _():
        acc_ref[...] = jnp.zeros_like(acc_ref)

    acc_ref[...] += jnp.dot(x_ref[...], w_ref[...],
                            preferred_element_type=jnp.float32)

    @pl.when(k == pl.num_programs(1) - 1)
    def _():
        s = (acc_ref[...] + b_ref[...].astype(jnp.float32)
             + r_ref[...].astype(jnp.float32))
        mu = jnp.mean(s, axis=-1, keepdims=True)
        d = s - mu
        var = jnp.mean(d * d, axis=-1, keepdims=True)
        inv = jax.lax.rsqrt(var + eps)
        o_ref[...] = (d * inv * g_ref[...].astype(jnp.float32)
                      + bt_ref[...].astype(jnp.float32)).astype(o_ref.dtype)


def linear_add_layernorm_pallas(x, w, b, residual, gamma, beta, eps=1e-5):
    """LayerNorm((x @ w + b) + residual).  Output (N) dim kept whole so the
    row-wise LayerNorm runs in the matmul epilogue (k == last)."""
    M, K = x.shape
    N = w.shape[1]
    item = x.dtype.itemsize
    tk = _pick_tile(K, _K_TILES)

    def fits(tm):
        foot = (2 * tm * tk + 2 * tk * N + 4 * tm * N + 6 * N) * item + tm * N * 4
        return foot <= _VMEM_BUDGET

    tm = _pick_tile_budget(M, _M_TILES, fits)
    gm, gk = M // tm, K // tk
    cost = pl.CostEstimate(
        flops=2 * M * N * K + 10 * M * N,
        transcendentals=M,
        bytes_accessed=item * (M * K + K * N * gm + 3 * M * N + 3 * N))
    kernel = functools.partial(_linear_res_ln_kernel, eps=eps)
    return pl.pallas_call(
        kernel,
        out_shape=jax.ShapeDtypeStruct((M, N), x.dtype),
        grid=(gm, gk),
        in_specs=[
            pl.BlockSpec((tm, tk), lambda i, k: (i, k)),
            pl.BlockSpec((tk, N), lambda i, k: (k, 0)),
            pl.BlockSpec((1, N), lambda i, k: (0, 0)),
            pl.BlockSpec((tm, N), lambda i, k: (i, 0)),
            pl.BlockSpec((1, N), lambda i, k: (0, 0)),
            pl.BlockSpec((1, N), lambda i, k: (0, 0)),
        ],
        out_specs=pl.BlockSpec((tm, N), lambda i, k: (i, 0)),
        scratch_shapes=[pltpu.VMEM((tm, N), jnp.float32)],
        compiler_params=pltpu.CompilerParams(
            dimension_semantics=("parallel", "arbitrary"),
            vmem_limit_bytes=_VMEM_LIMIT),
        cost_estimate=cost,
    )(x, w, b.reshape(1, N), residual, gamma.reshape(1, N), beta.reshape(1, N))


# ------------------------ embedding add + LayerNorm kernel ----------------------- #

def _embed_ln_kernel(w_ref, p_ref, g_ref, b_ref, o_ref, *, eps):
    # w_ref: (1, tS, D) word-embedding rows; p_ref: (tS, D) position rows
    # (broadcast over batch in-kernel — never materialised as (B, S, D) in HBM).
    s = w_ref[...].astype(jnp.float32) + p_ref[...].astype(jnp.float32)
    mu = jnp.mean(s, axis=-1, keepdims=True)
    d = s - mu
    var = jnp.mean(d * d, axis=-1, keepdims=True)
    inv = jax.lax.rsqrt(var + eps)
    o_ref[...] = (d * inv * g_ref[...].astype(jnp.float32)
                  + b_ref[...].astype(jnp.float32)).astype(o_ref.dtype)


def embed_add_layernorm_pallas(word, pos, gamma, beta, eps=1e-5):
    """LayerNorm(word + pos).  word: (B, S, D), pos: (S, D)."""
    B, S, D = word.shape
    ts = _pick_tile(S, _LN_ROW_TILES)
    kernel = functools.partial(_embed_ln_kernel, eps=eps)
    return pl.pallas_call(
        kernel,
        out_shape=jax.ShapeDtypeStruct((B, S, D), word.dtype),
        grid=(B, S // ts),
        in_specs=[
            pl.BlockSpec((1, ts, D), lambda b, s: (b, s, 0)),
            pl.BlockSpec((ts, D), lambda b, s: (s, 0)),
            pl.BlockSpec((1, D), lambda b, s: (0, 0)),
            pl.BlockSpec((1, D), lambda b, s: (0, 0)),
        ],
        out_specs=pl.BlockSpec((1, ts, D), lambda b, s: (b, s, 0)),
        compiler_params=pltpu.CompilerParams(
            dimension_semantics=("parallel", "parallel"),
            vmem_limit_bytes=_VMEM_LIMIT),
    )(word, pos, gamma.reshape(1, D), beta.reshape(1, D))


# -------------------------------- attention kernel ------------------------------- #

def _attention_kernel(q_ref, kv_ref, o_ref, m_sc, l_sc, acc_sc,
                      *, num_heads, head_dim, scale):
    """Flash-style multi-head attention over one KV block.

    q_ref : (gb, S,  3D) packed Q|K|V-major projection output; its block index is
            constant along the kv grid axis, so it stays VMEM-resident per batch group.
    kv_ref: (gb, tkv, 3D) current KV block.
    Scratch (f32, persists across the kv axis):
        m_sc  (gb, S, H)  running row max per head
        l_sc  (gb, S, H)  running softmax denominator per head
        acc_sc(gb, S, D)  running un-normalised context (per-head dh slices)
    """
    kv = pl.program_id(1)
    H, dh = num_heads, head_dim
    D = H * dh

    @pl.when(kv == 0)
    def _():
        m_sc[...] = jnp.full_like(m_sc, -jnp.inf)
        l_sc[...] = jnp.zeros_like(l_sc)
        acc_sc[...] = jnp.zeros_like(acc_sc)

    qkv_q = q_ref[...]
    qkv_kv = kv_ref[...]

    # Static unroll over heads: Mosaic's in-kernel dot_general supports a single
    # leading batch dim, so each head runs one gb-batched matmul pair on
    # contiguous Q|K|V-major slices; per-head partials go straight into VMEM
    # scratch slices (no H live context copies / final concatenate).
    for h in range(H):
        hs = h * dh
        q = qkv_q[:, :, hs:hs + dh] * scale                  # fold 1/sqrt(dh) into q
        k = qkv_kv[:, :, D + hs:D + hs + dh]
        v = qkv_kv[:, :, 2 * D + hs:2 * D + hs + dh]

        s = jnp.einsum("bqd,bkd->bqk", q, k,
                       preferred_element_type=jnp.float32)   # (gb, S, tkv)
        m_prev = m_sc[:, :, h:h + 1]
        m_new = jnp.maximum(m_prev, jnp.max(s, axis=-1, keepdims=True))
        alpha = jnp.exp(m_prev - m_new)
        p = jnp.exp(s - m_new)
        l_sc[:, :, h:h + 1] = (alpha * l_sc[:, :, h:h + 1]
                               + jnp.sum(p, axis=-1, keepdims=True))
        ctx = jnp.einsum("bqk,bkd->bqd", p.astype(v.dtype), v,
                         preferred_element_type=jnp.float32)  # (gb, S, dh)
        acc_sc[:, :, hs:hs + dh] = alpha * acc_sc[:, :, hs:hs + dh] + ctx
        m_sc[:, :, h:h + 1] = m_new

    @pl.when(kv == pl.num_programs(1) - 1)
    def _():
        # Normalise the (S, dh) context per head — not the (S, S) probabilities;
        # the approximate reciprocal runs on the (otherwise idle) EUP slot.
        for h in range(H):
            hs = h * dh
            inv = pl.reciprocal(l_sc[:, :, h:h + 1], approx=True)
            o_ref[:, :, hs:hs + dh] = (acc_sc[:, :, hs:hs + dh] * inv).astype(o_ref.dtype)


def attention_pallas(qkv, num_heads):
    """Multi-head softmax(Q K^T / sqrt(dh)) V consumed directly from the packed
    QKV projection output.  qkv: (B, S, 3D) with Q|K|V-major columns (heads
    contiguous within each projection).  Returns the context in (B, S, D).

    NOTE: checkpoints exported from the PyTorch reference keep the fused QKV
    columns per-head interleaved ([q_h|k_h|v_h] blocks); loading such weights
    requires permuting qkv_w / qkv_b columns into this Q|K|V-major order.
    """
    B, S, threeD = qkv.shape
    D = threeD // 3
    H = num_heads
    dh = D // H
    scale = 1.0 / math.sqrt(dh)
    item = qkv.dtype.itemsize

    tkv = S if S <= 512 else _pick_tile(S, _KV_TILES)
    nkv = S // tkv

    # Real per-step VMEM footprint: double-buffered resident packed-QKV view,
    # streamed KV block, output block, f32 accumulators and transient scores.
    def attn_bytes(gb):
        inp = 2 * gb * S * threeD * item + 2 * gb * tkv * threeD * item
        out = 2 * gb * S * D * item
        scr = gb * S * (D + 2 * H) * 4
        trans = 2 * gb * S * tkv * 4 + gb * S * dh * 4
        return inp + out + scr + trans

    gb = 1
    for cand in range(1, B + 1):
        if B % cand == 0 and attn_bytes(cand) <= _VMEM_BUDGET:
            gb = cand
    # Keep >= 2 parallel batch programs so both v7x TensorCores stay busy
    # (also gives the DMA pipeline >= 2 steps on single-core chips).
    if B >= 2:
        gb = min(gb, max(1, B // 2))
        while B % gb:
            gb -= 1
    # TODO(synk): also tile the query axis (and the resident packed-QKV view)
    # for very long sequences where even gb=1 exceeds the VMEM budget.

    kernel = functools.partial(_attention_kernel, num_heads=H, head_dim=dh,
                               scale=scale)
    cost = pl.CostEstimate(
        flops=4 * B * H * S * S * dh,
        transcendentals=B * H * S * S,
        bytes_accessed=item * (2 * B * S * threeD + B * S * D))
    return pl.pallas_call(
        kernel,
        out_shape=jax.ShapeDtypeStruct((B, S, D), qkv.dtype),
        grid=(B // gb, nkv),
        in_specs=[
            pl.BlockSpec((gb, S, threeD), lambda b, kv: (b, 0, 0)),     # resident Q view
            pl.BlockSpec((gb, tkv, threeD), lambda b, kv: (b, kv, 0)),  # streamed KV block
        ],
        out_specs=pl.BlockSpec((gb, S, D), lambda b, kv: (b, 0, 0)),
        scratch_shapes=[
            pltpu.VMEM((gb, S, H), jnp.float32),
            pltpu.VMEM((gb, S, H), jnp.float32),
            pltpu.VMEM((gb, S, D), jnp.float32),
        ],
        compiler_params=pltpu.CompilerParams(
            dimension_semantics=("parallel", "arbitrary"),
            vmem_limit_bytes=_VMEM_LIMIT),
        cost_estimate=cost,
    )(qkv, qkv)


# ------------------------------ Model (glue in JAX) ------------------------------ #

def init_params(key, *, vocab_size, max_pos, hidden, heads, depth, mlp_ratio,
                padding_idx=0, dtype=jnp.bfloat16):
    inter = int(hidden * mlp_ratio)
    keys = jax.random.split(key, 2 + depth)
    std = 0.02

    def rand(k, shape):
        return (std * jax.random.normal(k, shape, jnp.float32)).astype(dtype)

    word_emb = rand(keys[0], (vocab_size, hidden))
    word_emb = word_emb.at[padding_idx].set(0.0)           # padding_idx row is zero
    pos_emb = rand(keys[1], (max_pos, hidden))

    blocks = []
    for d in range(depth):
        bk = jax.random.split(keys[2 + d], 4)
        blocks.append(dict(
            # qkv_w columns are Q|K|V-major (heads contiguous within each
            # projection) — see attention_pallas docstring for the layout contract.
            qkv_w=rand(bk[0], (hidden, 3 * hidden)),
            qkv_b=jnp.zeros((3 * hidden,), dtype),
            dense_w=rand(bk[1], (hidden, hidden)),
            dense_b=jnp.zeros((hidden,), dtype),
            attn_ln_g=jnp.ones((hidden,), dtype),
            attn_ln_b=jnp.zeros((hidden,), dtype),
            fc1_w=rand(bk[2], (hidden, inter)),
            fc1_b=jnp.zeros((inter,), dtype),
            fc2_w=rand(bk[3], (inter, hidden)),
            fc2_b=jnp.zeros((hidden,), dtype),
            mlp_ln_g=jnp.ones((hidden,), dtype),
            mlp_ln_b=jnp.zeros((hidden,), dtype),
        ))

    return dict(
        word_emb=word_emb,
        pos_emb=pos_emb,
        emb_ln_g=jnp.ones((hidden,), dtype),
        emb_ln_b=jnp.zeros((hidden,), dtype),
        blocks=blocks,
    )


def transformer_layer(p, x, *, num_heads, eps=1e-5):
    B, S, D = x.shape
    x2 = x.reshape(B * S, D)

    # --- self attention:  LN(dense(attn(qkv(x))) + x) ---
    qkv = linear_pallas(x2, p["qkv_w"], p["qkv_b"])               # (B*S, 3D)
    ctx = attention_pallas(qkv.reshape(B, S, 3 * D), num_heads)   # (B, S, D)
    h = linear_add_layernorm_pallas(ctx.reshape(B * S, D), p["dense_w"],
                                    p["dense_b"], x2,
                                    p["attn_ln_g"], p["attn_ln_b"], eps)

    # --- MLP:  LN(fc2(gelu(fc1(h))) + h) ---
    inter = linear_pallas(h, p["fc1_w"], p["fc1_b"], act="gelu")
    h2 = linear_add_layernorm_pallas(inter, p["fc2_w"], p["fc2_b"],
                                     h, p["mlp_ln_g"], p["mlp_ln_b"], eps)

    return h2.reshape(B, S, D)


def pipeline_bert_forward(params, input_ids, attention_mask=None, *,
                          num_heads, eps=1e-5, first=True, last=True):
    B, S = input_ids.shape

    # Embedding (first stage): word + position embeddings, then LayerNorm.
    assert first
    word = jnp.take(params["word_emb"], input_ids, axis=0)         # (B, S, D) via XLA gather
    pos = params["pos_emb"][:S]                                     # (S, D) — broadcast in-kernel
    x = embed_add_layernorm_pallas(word, pos,
                                   params["emb_ln_g"], params["emb_ln_b"], eps)

    # attention_mask is transformed in the reference forward but never consumed
    # by BertSelfAttention1D — intentionally unused here as well.
    del attention_mask

    for blk in params["blocks"]:
        x = transformer_layer(blk, x, num_heads=num_heads, eps=eps)

    if last:
        x = x[:, 1, :]                                              # (B, D)
    return x


# ------------------------------------ main ----------------------------------- #

if __name__ == "__main__":
    VOCAB = 128
    MAX_POS = 64
    HIDDEN = 32
    HEADS = 4
    DEPTH = 2
    MLP_RATIO = 4.0
    B, S = 2, 8

    key = jax.random.PRNGKey(0)
    kp, ki = jax.random.split(key)

    params = init_params(kp, vocab_size=VOCAB, max_pos=MAX_POS, hidden=HIDDEN,
                         heads=HEADS, depth=DEPTH, mlp_ratio=MLP_RATIO,
                         dtype=jnp.bfloat16)

    input_ids = jax.random.randint(ki, (B, S), 1, VOCAB, dtype=jnp.int32)
    attention_mask = jnp.ones((B, S), dtype=jnp.float32)

    fwd = jax.jit(functools.partial(pipeline_bert_forward,
                                    num_heads=HEADS, first=True, last=True))
    out = jax.block_until_ready(fwd(params, input_ids, attention_mask))

    assert out.shape == (B, HIDDEN), out.shape
    assert bool(jnp.all(jnp.isfinite(out.astype(jnp.float32))))
    print("KERNEL_OK")
</pallas_src>

<mosaic_0001>
module attributes {stable_mosaic.version = 11 : i64} {
  func.func @_linear_res_ln_kernel(%arg0: i32, %arg1: i32, %arg2: memref<16x32xbf16, #tpu.memory_space<vmem>>, %arg3: memref<32x32xbf16, #tpu.memory_space<vmem>>, %arg4: memref<1x32xbf16, #tpu.memory_space<vmem>>, %arg5: memref<16x32xbf16, #tpu.memory_space<vmem>>, %arg6: memref<1x32xbf16, #tpu.memory_space<vmem>>, %arg7: memref<1x32xbf16, #tpu.memory_space<vmem>>, %arg8: memref<16x32xbf16, #tpu.memory_space<vmem>>, %arg9: memref<16x32xf32, #tpu.memory_space<vmem>>) attributes {dimension_semantics = [#tpu.dimension_semantics<parallel>, #tpu.dimension_semantics<arbitrary>], iteration_bounds = array<i64: 1, 1>, scalar_prefetch = 0 : i64, scratch_operands = 1 : i64, tpu.core_type = #tpu.core_type<tc>, window_params = [{transform_indices = @transform_0, window_bounds = array<i64: 16, 32>}, {transform_indices = @transform_1, window_bounds = array<i64: 32, 32>}, {pipeline_mode = #tpu.pipeline_mode<synchronous>, transform_indices = @transform_2, window_bounds = array<i64: 1, 32>}, {transform_indices = @transform_3, window_bounds = array<i64: 16, 32>}, {pipeline_mode = #tpu.pipeline_mode<synchronous>, transform_indices = @transform_4, window_bounds = array<i64: 1, 32>}, {pipeline_mode = #tpu.pipeline_mode<synchronous>, transform_indices = @transform_5, window_bounds = array<i64: 1, 32>}, {transform_indices = @transform_6, window_bounds = array<i64: 16, 32>}]} {
    %c0_i32 = arith.constant 0 : i32
    %0 = arith.cmpi eq, %arg1, %c0_i32 : i32
    %1 = arith.extui %0 : i1 to i32
    %c0_i32_0 = arith.constant 0 : i32
    %2 = arith.cmpi ne, %1, %c0_i32_0 : i32
    scf.if %2 {
      %cst_10 = arith.constant 0.000000e+00 : f32
      %12 = vector.broadcast %cst_10 : f32 to vector<16x32xf32>
      %c0_11 = arith.constant 0 : index
      %c0_12 = arith.constant 0 : index
      %13 = vector.load %arg9[%c0_11, %c0_12] : memref<16x32xf32, #tpu.memory_space<vmem>>, vector<16x32xf32>
      tpu.vector_store %arg9[%c0_11, %c0_12], %12 {strides = array<i32>} : memref<16x32xf32, #tpu.memory_space<vmem>>, vector<16x32xf32>,
    } else {
    }
    %c0 = arith.constant 0 : index
    %c0_1 = arith.constant 0 : index
    %3 = vector.load %arg9[%c0, %c0_1] : memref<16x32xf32, #tpu.memory_space<vmem>>, vector<16x32xf32>
    %c0_2 = arith.constant 0 : index
    %c0_3 = arith.constant 0 : index
    %4 = vector.load %arg2[%c0_2, %c0_3] : memref<16x32xbf16, #tpu.memory_space<vmem>>, vector<16x32xbf16>
    %c0_4 = arith.constant 0 : index
    %c0_5 = arith.constant 0 : index
    %5 = vector.load %arg3[%c0_4, %c0_5] : memref<32x32xbf16, #tpu.memory_space<vmem>>, vector<32x32xbf16>
    %cst = arith.constant dense<0.000000e+00> : vector<16x32xf32>
    %6 = tpu.matmul %4, %5, %cst {dimension_numbers = #tpu.dot_dimension_numbers<[1], [0], [0], [1], [0, 0, 1, 1], [], []>} : vector<16x32xbf16>, vector<32x32xbf16>, vector<16x32xf32> -> vector<16x32xf32>
    %7 = arith.addf %3, %6 : vector<16x32xf32>
    %c0_6 = arith.constant 0 : index
    %c0_7 = arith.constant 0 : index
    %8 = vector.load %arg9[%c0_6, %c0_7] : memref<16x32xf32, #tpu.memory_space<vmem>>, vector<16x32xf32>
    tpu.vector_store %arg9[%c0_6, %c0_7], %7 {strides = array<i32>} : memref<16x32xf32, #tpu.memory_space<vmem>>, vector<16x32xf32>,
    %c0_i32_8 = arith.constant 0 : i32
    %9 = arith.cmpi eq, %arg1, %c0_i32_8 : i32
    %10 = arith.extui %9 : i1 to i32
    %c0_i32_9 = arith.constant 0 : i32
    %11 = arith.cmpi ne, %10, %c0_i32_9 : i32
    scf.if %11 {
      %c0_10 = arith.constant 0 : index
      %c0_11 = arith.constant 0 : index
      %12 = vector.load %arg9[%c0_10, %c0_11] : memref<16x32xf32, #tpu.memory_space<vmem>>, vector<16x32xf32>
      %c0_12 = arith.constant 0 : index
      %c0_13 = arith.constant 0 : index
      %13 = vector.load %arg4[%c0_12, %c0_13] : memref<1x32xbf16, #tpu.memory_space<vmem>>, vector<1x32xbf16>
      %14 = arith.extf %13 : vector<1x32xbf16> to vector<1x32xf32>
      %15 = vector.broadcast %14 : vector<1x32xf32> to vector<16x32xf32>
      %16 = arith.addf %12, %15 : vector<16x32xf32>
      %c0_14 = arith.constant 0 : index
      %c0_15 = arith.constant 0 : index
      %17 = vector.load %arg5[%c0_14, %c0_15] : memref<16x32xbf16, #tpu.memory_space<vmem>>, vector<16x32xbf16>
      %18 = arith.extf %17 : vector<16x32xbf16> to vector<16x32xf32>
      %19 = arith.addf %16, %18 : vector<16x32xf32>
      %cst_16 = arith.constant dense<0.000000e+00> : vector<16xf32>
      %20 = vector.multi_reduction <add>, %19, %cst_16 [1] : vector<16x32xf32> to vector<16xf32>
      %21 = vector.shape_cast %20 : vector<16xf32> to vector<16x1xf32>
      %cst_17 = arith.constant 3.200000e+01 : f32
      %22 = vector.broadcast %cst_17 : f32 to vector<16x1xf32>
      %23 = arith.divf %21, %22 : vector<16x1xf32>
      %24 = vector.broadcast %23 : vector<16x1xf32> to vector<16x32xf32>
      %25 = arith.subf %19, %24 : vector<16x32xf32>
      %26 = arith.mulf %25, %25 : vector<16x32xf32>
      %cst_18 = arith.constant dense<0.000000e+00> : vector<16xf32>
      %27 = vector.multi_reduction <add>, %26, %cst_18 [1] : vector<16x32xf32> to vector<16xf32>
      %28 = vector.shape_cast %27 : vector<16xf32> to vector<16x1xf32>
      %cst_19 = arith.constant 3.200000e+01 : f32
      %29 = vector.broadcast %cst_19 : f32 to vector<16x1xf32>
      %30 = arith.divf %28, %29 : vector<16x1xf32>
      %cst_20 = arith.constant 9.99999974E-6 : f32
      %31 = vector.broadcast %cst_20 : f32 to vector<16x1xf32>
      %32 = arith.addf %30, %31 : vector<16x1xf32>
      %33 = math.rsqrt %32 : vector<16x1xf32>
      %34 = vector.broadcast %33 : vector<16x1xf32> to vector<16x32xf32>
      %35 = arith.mulf %25, %34 : vector<16x32xf32>
      %c0_21 = arith.constant 0 : index
      %c0_22 = arith.constant 0 : index
      %36 = vector.load %arg6[%c0_21, %c0_22] : memref<1x32xbf16, #tpu.memory_space<vmem>>, vector<1x32xbf16>
      %37 = arith.extf %36 : vector<1x32xbf16> to vector<1x32xf32>
      %38 = vector.broadcast %37 : vector<1x32xf32> to vector<16x32xf32>
      %39 = arith.mulf %35, %38 : vector<16x32xf32>
      %c0_23 = arith.constant 0 : index
      %c0_24 = arith.constant 0 : index
      %40 = vector.load %arg7[%c0_23, %c0_24] : memref<1x32xbf16, #tpu.memory_space<vmem>>, vector<1x32xbf16>
      %41 = arith.extf %40 : vector<1x32xbf16> to vector<1x32xf32>
      %42 = vector.broadcast %41 : vector<1x32xf32> to vector<16x32xf32>
      %43 = arith.addf %39, %42 : vector<16x32xf32>
      %44 = arith.truncf %43 : vector<16x32xf32> to vector<16x32xbf16>
      %c0_25 = arith.constant 0 : index
      %c0_26 = arith.constant 0 : index
      %45 = vector.load %arg8[%c0_25, %c0_26] : memref<16x32xbf16, #tpu.memory_space<vmem>>, vector<16x32xbf16>
      tpu.vector_store %arg8[%c0_25, %c0_26], %44 {strides = array<i32>} : memref<16x32xbf16, #tpu.memory_space<vmem>>, vector<16x32xbf16>,
    } else {
    }
    return
  }
  func.func @transform_0(%arg0: i32, %arg1: i32) -> (i32, i32) {
    %c0_i32 = arith.constant 0 : i32
    return %arg0, %arg1 : i32, i32
  }
  func.func @transform_1(%arg0: i32, %arg1: i32) -> (i32, i32) {
    %c0_i32 = arith.constant 0 : i32
    %c0_i32_0 = arith.constant 0 : i32
    return %arg1, %c0_i32 : i32, i32
  }
  func.func @transform_2(%arg0: i32, %arg1: i32) -> (i32, i32) {
    %c0_i32 = arith.constant 0 : i32
    %c0_i32_0 = arith.constant 0 : i32
    %c0_i32_1 = arith.constant 0 : i32
    return %c0_i32, %c0_i32_0 : i32, i32
  }
  func.func @transform_3(%arg0: i32, %arg1: i32) -> (i32, i32) {
    %c0_i32 = arith.constant 0 : i32
    %c0_i32_0 = arith.constant 0 : i32
    return %arg0, %c0_i32 : i32, i32
  }
  func.func @transform_4(%arg0: i32, %arg1: i32) -> (i32, i32) {
    %c0_i32 = arith.constant 0 : i32
    %c0_i32_0 = arith.constant 0 : i32
    %c0_i32_1 = arith.constant 0 : i32
    return %c0_i32, %c0_i32_0 : i32, i32
  }
  func.func @transform_5(%arg0: i32, %arg1: i32) -> (i32, i32) {
    %c0_i32 = arith.constant 0 : i32
    %c0_i32_0 = arith.constant 0 : i32
    %c0_i32_1 = arith.constant 0 : i32
    return %c0_i32, %c0_i32_0 : i32, i32
  }
  func.func @transform_6(%arg0: i32, %arg1: i32) -> (i32, i32) {
    %c0_i32 = arith.constant 0 : i32
    %c0_i32_0 = arith.constant 0 : i32
    return %arg0, %c0_i32 : i32, i32
  }
}

module attributes {stable_mosaic.version = 11 : i64} {
  func.func @_embed_ln_kernel(%arg0: i32, %arg1: i32, %arg2: memref<1x8x32xbf16, #tpu.memory_space<vmem>>, %arg3: memref<8x32xbf16, #tpu.memory_space<vmem>>, %arg4: memref<1x32xbf16, #tpu.memory_space<vmem>>, %arg5: memref<1x32xbf16, #tpu.memory_space<vmem>>, %arg6: memref<1x8x32xbf16, #tpu.memory_space<vmem>>) attributes {dimension_semantics = [#tpu.dimension_semantics<parallel>, #tpu.dimension_semantics<parallel>], iteration_bounds = array<i64: 2, 1>, scalar_prefetch = 0 : i64, scratch_operands = 0 : i64, tpu.core_type = #tpu.core_type<tc>, window_params = [{transform_indices = @transform_0, window_bounds = array<i64: 1, 8, 32>}, {transform_indices = @transform_1, window_bounds = array<i64: 8, 32>}, {pipeline_mode = #tpu.pipeline_mode<synchronous>, transform_indices = @transform_2, window_bounds = array<i64: 1, 32>}, {pipeline_mode = #tpu.pipeline_mode<synchronous>, transform_indices = @transform_3, window_bounds = array<i64: 1, 32>}, {transform_indices = @transform_4, window_bounds = array<i64: 1, 8, 32>}]} {
    %c0 = arith.constant 0 : index
    %c0_0 = arith.constant 0 : index
    %c0_1 = arith.constant 0 : index
    %0 = vector.load %arg2[%c0, %c0_0, %c0_1] : memref<1x8x32xbf16, #tpu.memory_space<vmem>>, vector<1x8x32xbf16>
    %1 = arith.extf %0 : vector<1x8x32xbf16> to vector<1x8x32xf32>
    %c0_2 = arith.constant 0 : index
    %c0_3 = arith.constant 0 : index
    %2 = vector.load %arg3[%c0_2, %c0_3] : memref<8x32xbf16, #tpu.memory_space<vmem>>, vector<8x32xbf16>
    %3 = arith.extf %2 : vector<8x32xbf16> to vector<8x32xf32>
    %4 = vector.shape_cast %3 : vector<8x32xf32> to vector<1x8x32xf32>
    %5 = arith.addf %1, %4 : vector<1x8x32xf32>
    %cst = arith.constant dense<0.000000e+00> : vector<1x8xf32>
    %6 = vector.multi_reduction <add>, %5, %cst [2] : vector<1x8x32xf32> to vector<1x8xf32>
    %7 = vector.shape_cast %6 : vector<1x8xf32> to vector<1x8x1xf32>
    %cst_4 = arith.constant 3.200000e+01 : f32
    %8 = vector.broadcast %cst_4 : f32 to vector<1x8x1xf32>
    %9 = arith.divf %7, %8 : vector<1x8x1xf32>
    %10 = vector.broadcast %9 : vector<1x8x1xf32> to vector<1x8x32xf32>
    %11 = arith.subf %5, %10 : vector<1x8x32xf32>
    %12 = arith.mulf %11, %11 : vector<1x8x32xf32>
    %cst_5 = arith.constant dense<0.000000e+00> : vector<1x8xf32>
    %13 = vector.multi_reduction <add>, %12, %cst_5 [2] : vector<1x8x32xf32> to vector<1x8xf32>
    %14 = vector.shape_cast %13 : vector<1x8xf32> to vector<1x8x1xf32>
    %cst_6 = arith.constant 3.200000e+01 : f32
    %15 = vector.broadcast %cst_6 : f32 to vector<1x8x1xf32>
    %16 = arith.divf %14, %15 : vector<1x8x1xf32>
    %cst_7 = arith.constant 9.99999974E-6 : f32
    %17 = vector.broadcast %cst_7 : f32 to vector<1x8x1xf32>
    %18 = arith.addf %16, %17 : vector<1x8x1xf32>
    %19 = math.rsqrt %18 : vector<1x8x1xf32>
    %20 = vector.broadcast %19 : vector<1x8x1xf32> to vector<1x8x32xf32>
    %21 = arith.mulf %11, %20 : vector<1x8x32xf32>
    %c0_8 = arith.constant 0 : index
    %c0_9 = arith.constant 0 : index
    %22 = vector.load %arg4[%c0_8, %c0_9] : memref<1x32xbf16, #tpu.memory_space<vmem>>, vector<1x32xbf16>
    %23 = arith.extf %22 : vector<1x32xbf16> to vector<1x32xf32>
    %24 = vector.shape_cast %23 : vector<1x32xf32> to vector<1x1x32xf32>
    %25 = vector.broadcast %24 : vector<1x1x32xf32> to vector<1x8x32xf32>
    %26 = arith.mulf %21, %25 : vector<1x8x32xf32>
    %c0_10 = arith.constant 0 : index
    %c0_11 = arith.constant 0 : index
    %27 = vector.load %arg5[%c0_10, %c0_11] : memref<1x32xbf16, #tpu.memory_space<vmem>>, vector<1x32xbf16>
    %28 = arith.extf %27 : vector<1x32xbf16> to vector<1x32xf32>
    %29 = vector.shape_cast %28 : vector<1x32xf32> to vector<1x1x32xf32>
    %30 = vector.broadcast %29 : vector<1x1x32xf32> to vector<1x8x32xf32>
    %31 = arith.addf %26, %30 : vector<1x8x32xf32>
    %32 = arith.truncf %31 : vector<1x8x32xf32> to vector<1x8x32xbf16>
    %c0_12 = arith.constant 0 : index
    %c0_13 = arith.constant 0 : index
    %c0_14 = arith.constant 0 : index
    %33 = vector.load %arg6[%c0_12, %c0_13, %c0_14] : memref<1x8x32xbf16, #tpu.memory_space<vmem>>, vector<1x8x32xbf16>
    tpu.vector_store %arg6[%c0_12, %c0_13, %c0_14], %32 {strides = array<i32>} : memref<1x8x32xbf16, #tpu.memory_space<vmem>>, vector<1x8x32xbf16>,
    return
  }
  func.func @transform_0(%arg0: i32, %arg1: i32) -> (i32, i32, i32) {
    %c0_i32 = arith.constant 0 : i32
    %c0_i32_0 = arith.constant 0 : i32
    return %arg0, %arg1, %c0_i32 : i32, i32, i32
  }
  func.func @transform_1(%arg0: i32, %arg1: i32) -> (i32, i32) {
    %c0_i32 = arith.constant 0 : i32
    %c0_i32_0 = arith.constant 0 : i32
    return %arg1, %c0_i32 : i32, i32
  }
  func.func @transform_2(%arg0: i32, %arg1: i32) -> (i32, i32) {
    %c0_i32 = arith.constant 0 : i32
    %c0_i32_0 = arith.constant 0 : i32
    %c0_i32_1 = arith.constant 0 : i32
    return %c0_i32, %c0_i32_0 : i32, i32
  }
  func.func @transform_3(%arg0: i32, %arg1: i32) -> (i32, i32) {
    %c0_i32 = arith.constant 0 : i32
    %c0_i32_0 = arith.constant 0 : i32
    %c0_i32_1 = arith.constant 0 : i32
    return %c0_i32, %c0_i32_0 : i32, i32
  }
  func.func @transform_4(%arg0: i32, %arg1: i32) -> (i32, i32, i32) {
    %c0_i32 = arith.constant 0 : i32
    %c0_i32_0 = arith.constant 0 : i32
    return %arg0, %arg1, %c0_i32 : i32, i32, i32
  }
}

module attributes {stable_mosaic.version = 11 : i64} {
  func.func @_linear_kernel(%arg0: i32, %arg1: i32, %arg2: i32, %arg3: memref<16x32xbf16, #tpu.memory_space<vmem>>, %arg4: memref<32x96xbf16, #tpu.memory_space<vmem>>, %arg5: memref<1x96xbf16, #tpu.memory_space<vmem>>, %arg6: memref<16x96xbf16, #tpu.memory_space<vmem>>, %arg7: memref<16x96xf32, #tpu.memory_space<vmem>>) attributes {dimension_semantics = [#tpu.dimension_semantics<parallel>, #tpu.dimension_semantics<parallel>, #tpu.dimension_semantics<arbitrary>], iteration_bounds = array<i64: 1, 1, 1>, scalar_prefetch = 0 : i64, scratch_operands = 1 : i64, tpu.core_type = #tpu.core_type<tc>, window_params = [{transform_indices = @transform_0, window_bounds = array<i64: 16, 32>}, {transform_indices = @transform_1, window_bounds = array<i64: 32, 96>}, {transform_indices = @transform_2, window_bounds = array<i64: 1, 96>}, {transform_indices = @transform_3, window_bounds = array<i64: 16, 96>}]} {
    %c0_i32 = arith.constant 0 : i32
    %0 = arith.cmpi eq, %arg2, %c0_i32 : i32
    %1 = arith.extui %0 : i1 to i32
    %c0_i32_0 = arith.constant 0 : i32
    %2 = arith.cmpi ne, %1, %c0_i32_0 : i32
    scf.if %2 {
      %cst_10 = arith.constant 0.000000e+00 : f32
      %12 = vector.broadcast %cst_10 : f32 to vector<16x96xf32>
      %c0_11 = arith.constant 0 : index
      %c0_12 = arith.constant 0 : index
      %13 = vector.load %arg7[%c0_11, %c0_12] : memref<16x96xf32, #tpu.memory_space<vmem>>, vector<16x96xf32>
      tpu.vector_store %arg7[%c0_11, %c0_12], %12 {strides = array<i32>} : memref<16x96xf32, #tpu.memory_space<vmem>>, vector<16x96xf32>,
    } else {
    }
    %c0 = arith.constant 0 : index
    %c0_1 = arith.constant 0 : index
    %3 = vector.load %arg7[%c0, %c0_1] : memref<16x96xf32, #tpu.memory_space<vmem>>, vector<16x96xf32>
    %c0_2 = arith.constant 0 : index
    %c0_3 = arith.constant 0 : index
    %4 = vector.load %arg3[%c0_2, %c0_3] : memref<16x32xbf16, #tpu.memory_space<vmem>>, vector<16x32xbf16>
    %c0_4 = arith.constant 0 : index
    %c0_5 = arith.constant 0 : index
    %5 = vector.load %arg4[%c0_4, %c0_5] : memref<32x96xbf16, #tpu.memory_space<vmem>>, vector<32x96xbf16>
    %cst = arith.constant dense<0.000000e+00> : vector<16x96xf32>
    %6 = tpu.matmul %4, %5, %cst {dimension_numbers = #tpu.dot_dimension_numbers<[1], [0], [0], [1], [0, 0, 1, 1], [], []>} : vector<16x32xbf16>, vector<32x96xbf16>, vector<16x96xf32> -> vector<16x96xf32>
    %7 = arith.addf %3, %6 : vector<16x96xf32>
    %c0_6 = arith.constant 0 : index
    %c0_7 = arith.constant 0 : index
    %8 = vector.load %arg7[%c0_6, %c0_7] : memref<16x96xf32, #tpu.memory_space<vmem>>, vector<16x96xf32>
    tpu.vector_store %arg7[%c0_6, %c0_7], %7 {strides = array<i32>} : memref<16x96xf32, #tpu.memory_space<vmem>>, vector<16x96xf32>,
    %c0_i32_8 = arith.constant 0 : i32
    %9 = arith.cmpi eq, %arg2, %c0_i32_8 : i32
    %10 = arith.extui %9 : i1 to i32
    %c0_i32_9 = arith.constant 0 : i32
    %11 = arith.cmpi ne, %10, %c0_i32_9 : i32
    scf.if %11 {
      %c0_10 = arith.constant 0 : index
      %c0_11 = arith.constant 0 : index
      %12 = vector.load %arg7[%c0_10, %c0_11] : memref<16x96xf32, #tpu.memory_space<vmem>>, vector<16x96xf32>
      %c0_12 = arith.constant 0 : index
      %c0_13 = arith.constant 0 : index
      %13 = vector.load %arg5[%c0_12, %c0_13] : memref<1x96xbf16, #tpu.memory_space<vmem>>, vector<1x96xbf16>
      %14 = arith.extf %13 : vector<1x96xbf16> to vector<1x96xf32>
      %15 = vector.broadcast %14 : vector<1x96xf32> to vector<16x96xf32>
      %16 = arith.addf %12, %15 : vector<16x96xf32>
      %17 = arith.truncf %16 : vector<16x96xf32> to vector<16x96xbf16>
      %c0_14 = arith.constant 0 : index
      %c0_15 = arith.constant 0 : index
      %18 = vector.load %arg6[%c0_14, %c0_15] : memref<16x96xbf16, #tpu.memory_space<vmem>>, vector<16x96xbf16>
      tpu.vector_store %arg6[%c0_14, %c0_15], %17 {strides = array<i32>} : memref<16x96xbf16, #tpu.memory_space<vmem>>, vector<16x96xbf16>,
    } else {
    }
    return
  }
  func.func @transform_0(%arg0: i32, %arg1: i32, %arg2: i32) -> (i32, i32) {
    %c0_i32 = arith.constant 0 : i32
    return %arg0, %arg2 : i32, i32
  }
  func.func @transform_1(%arg0: i32, %arg1: i32, %arg2: i32) -> (i32, i32) {
    %c0_i32 = arith.constant 0 : i32
    return %arg2, %arg1 : i32, i32
  }
  func.func @transform_2(%arg0: i32, %arg1: i32, %arg2: i32) -> (i32, i32) {
    %c0_i32 = arith.constant 0 : i32
    %c0_i32_0 = arith.constant 0 : i32
    return %c0_i32, %arg1 : i32, i32
  }
  func.func @transform_3(%arg0: i32, %arg1: i32, %arg2: i32) -> (i32, i32) {
    %c0_i32 = arith.constant 0 : i32
    return %arg0, %arg1 : i32, i32
  }
}

module attributes {stable_mosaic.version = 11 : i64} {
  func.func @_attention_kernel(%arg0: i32, %arg1: i32, %arg2: memref<1x8x96xbf16, #tpu.memory_space<vmem>>, %arg3: memref<1x8x96xbf16, #tpu.memory_space<vmem>>, %arg4: memref<1x8x32xbf16, #tpu.memory_space<vmem>>, %arg5: memref<1x8x4xf32, #tpu.memory_space<vmem>>, %arg6: memref<1x8x4xf32, #tpu.memory_space<vmem>>, %arg7: memref<1x8x32xf32, #tpu.memory_space<vmem>>) attributes {dimension_semantics = [#tpu.dimension_semantics<parallel>, #tpu.dimension_semantics<arbitrary>], iteration_bounds = array<i64: 2, 1>, scalar_prefetch = 0 : i64, scratch_operands = 3 : i64, tpu.core_type = #tpu.core_type<tc>, window_params = [{transform_indices = @transform_0, window_bounds = array<i64: 1, 8, 96>}, {transform_indices = @transform_1, window_bounds = array<i64: 1, 8, 96>}, {transform_indices = @transform_2, window_bounds = array<i64: 1, 8, 32>}]} {
    %c0_i32 = arith.constant 0 : i32
    %0 = arith.cmpi eq, %arg1, %c0_i32 : i32
    %1 = arith.extui %0 : i1 to i32
    %c0_i32_0 = arith.constant 0 : i32
    %2 = arith.cmpi ne, %1, %c0_i32_0 : i32
    scf.if %2 {
      %cst_93 = arith.constant 0xFF800000 : f32
      %124 = vector.broadcast %cst_93 : f32 to vector<1x8x4xf32>
      %c0_94 = arith.constant 0 : index
      %c0_95 = arith.constant 0 : index
      %c0_96 = arith.constant 0 : index
      %125 = vector.load %arg5[%c0_94, %c0_95, %c0_96] : memref<1x8x4xf32, #tpu.memory_space<vmem>>, vector<1x8x4xf32>
      tpu.vector_store %arg5[%c0_94, %c0_95, %c0_96], %124 {strides = array<i32>} : memref<1x8x4xf32, #tpu.memory_space<vmem>>, vector<1x8x4xf32>,
      %cst_97 = arith.constant 0.000000e+00 : f32
      %126 = vector.broadcast %cst_97 : f32 to vector<1x8x4xf32>
      %c0_98 = arith.constant 0 : index
      %c0_99 = arith.constant 0 : index
      %c0_100 = arith.constant 0 : index
      %127 = vector.load %arg6[%c0_98, %c0_99, %c0_100] : memref<1x8x4xf32, #tpu.memory_space<vmem>>, vector<1x8x4xf32>
      tpu.vector_store %arg6[%c0_98, %c0_99, %c0_100], %126 {strides = array<i32>} : memref<1x8x4xf32, #tpu.memory_space<vmem>>, vector<1x8x4xf32>,
      %cst_101 = arith.constant 0.000000e+00 : f32
      %128 = vector.broadcast %cst_101 : f32 to vector<1x8x32xf32>
      %c0_102 = arith.constant 0 : index
      %c0_103 = arith.constant 0 : index
      %c0_104 = arith.constant 0 : index
      %129 = vector.load %arg7[%c0_102, %c0_103, %c0_104] : memref<1x8x32xf32, #tpu.memory_space<vmem>>, vector<1x8x32xf32>
      tpu.vector_store %arg7[%c0_102, %c0_103, %c0_104], %128 {strides = array<i32>} : memref<1x8x32xf32, #tpu.memory_space<vmem>>, vector<1x8x32xf32>,
    } else {
    }
    %c0 = arith.constant 0 : index
    %c0_1 = arith.constant 0 : index
    %c0_2 = arith.constant 0 : index
    %3 = vector.load %arg2[%c0, %c0_1, %c0_2] : memref<1x8x96xbf16, #tpu.memory_space<vmem>>, vector<1x8x96xbf16>
    %c0_3 = arith.constant 0 : index
    %c0_4 = arith.constant 0 : index
    %c0_5 = arith.constant 0 : index
    %4 = vector.load %arg3[%c0_3, %c0_4, %c0_5] : memref<1x8x96xbf16, #tpu.memory_space<vmem>>, vector<1x8x96xbf16>
    %5 = vector.extract_strided_slice %3 {offsets = [0, 0, 0], sizes = [1, 8, 8], strides = [1, 1, 1]} : vector<1x8x96xbf16> to vector<1x8x8xbf16>
    %cst = arith.constant 3.535160e-01 : bf16
    %6 = vector.broadcast %cst : bf16 to vector<1x8x8xbf16>
    %7 = arith.mulf %5, %6 : vector<1x8x8xbf16>
    %8 = vector.extract_strided_slice %4 {offsets = [0, 0, 32], sizes = [1, 8, 8], strides = [1, 1, 1]} : vector<1x8x96xbf16> to vector<1x8x8xbf16>
    %9 = vector.extract_strided_slice %4 {offsets = [0, 0, 64], sizes = [1, 8, 8], strides = [1, 1, 1]} : vector<1x8x96xbf16> to vector<1x8x8xbf16>
    "tpu.trace_start"() <{level = 10 : i32, message = "bqd,bkd->bqk"}> : () -> ()
    %cst_6 = arith.constant dense<0.000000e+00> : vector<1x8x8xf32>
    %10 = tpu.matmul %7, %8, %cst_6 {dimension_numbers = #tpu.dot_dimension_numbers<[2], [2], [1], [1], [0, 0, 0, 1, 1, 1], [0], [0]>} : vector<1x8x8xbf16>, vector<1x8x8xbf16>, vector<1x8x8xf32> -> vector<1x8x8xf32>
    "tpu.trace_stop"() : () -> ()
    %c0_7 = arith.constant 0 : index
    %c0_8 = arith.constant 0 : index
    %c0_9 = arith.constant 0 : index
    %11 = vector.load %arg5[%c0_7, %c0_8, %c0_9] : memref<1x8x4xf32, #tpu.memory_space<vmem>>, vector<1x8x1xf32>
    %cst_10 = arith.constant dense<0xFF800000> : vector<1x8xf32>
    %12 = vector.multi_reduction <maximumf>, %10, %cst_10 [2] : vector<1x8x8xf32> to vector<1x8xf32>
    %13 = vector.shape_cast %12 : vector<1x8xf32> to vector<1x8x1xf32>
    %14 = arith.maximumf %11, %13 : vector<1x8x1xf32>
    %15 = arith.subf %11, %14 : vector<1x8x1xf32>
    %16 = math.exp %15 : vector<1x8x1xf32>
    %17 = vector.broadcast %14 : vector<1x8x1xf32> to vector<1x8x8xf32>
    %18 = arith.subf %10, %17 : vector<1x8x8xf32>
    %19 = math.exp %18 : vector<1x8x8xf32>
    %c0_11 = arith.constant 0 : index
    %c0_12 = arith.constant 0 : index
    %c0_13 = arith.constant 0 : index
    %20 = vector.load %arg6[%c0_11, %c0_12, %c0_13] : memref<1x8x4xf32, #tpu.memory_space<vmem>>, vector<1x8x1xf32>
    %21 = arith.mulf %16, %20 : vector<1x8x1xf32>
    %cst_14 = arith.constant dense<0.000000e+00> : vector<1x8xf32>
    %22 = vector.multi_reduction <add>, %19, %cst_14 [2] : vector<1x8x8xf32> to vector<1x8xf32>
    %23 = vector.shape_cast %22 : vector<1x8xf32> to vector<1x8x1xf32>
    %24 = arith.addf %21, %23 : vector<1x8x1xf32>
    %c0_15 = arith.constant 0 : index
    %c0_16 = arith.constant 0 : index
    %c0_17 = arith.constant 0 : index
    %25 = vector.load %arg6[%c0_15, %c0_16, %c0_17] : memref<1x8x4xf32, #tpu.memory_space<vmem>>, vector<1x8x1xf32>
    tpu.vector_store %arg6[%c0_15, %c0_16, %c0_17], %24 {strides = array<i32>} : memref<1x8x4xf32, #tpu.memory_space<vmem>>, vector<1x8x1xf32>,
    %26 = arith.truncf %19 : vector<1x8x8xf32> to vector<1x8x8xbf16>
    "tpu.trace_start"() <{level = 10 : i32, message = "bqk,bkd->bqd"}> : () -> ()
    %cst_18 = arith.constant dense<0.000000e+00> : vector<1x8x8xf32>
    %27 = tpu.matmul %26, %9, %cst_18 {dimension_numbers = #tpu.dot_dimension_numbers<[2], [1], [1], [2], [0, 0, 0, 1, 1, 2], [0], [0]>} : vector<1x8x8xbf16>, vector<1x8x8xbf16>, vector<1x8x8xf32> -> vector<1x8x8xf32>
    "tpu.trace_stop"() : () -> ()
    %c0_19 = arith.constant 0 : index
    %c0_20 = arith.constant 0 : index
    %c0_21 = arith.constant 0 : index
    %28 = vector.load %arg7[%c0_19, %c0_20, %c0_21] : memref<1x8x32xf32, #tpu.memory_space<vmem>>, vector<1x8x8xf32>
    %29 = vector.broadcast %16 : vector<1x8x1xf32> to vector<1x8x8xf32>
    %30 = arith.mulf %29, %28 : vector<1x8x8xf32>
    %31 = arith.addf %30, %27 : vector<1x8x8xf32>
    %c0_22 = arith.constant 0 : index
    %c0_23 = arith.constant 0 : index
    %c0_24 = arith.constant 0 : index
    %32 = vector.load %arg7[%c0_22, %c0_23, %c0_24] : memref<1x8x32xf32, #tpu.memory_space<vmem>>, vector<1x8x8xf32>
    tpu.vector_store %arg7[%c0_22, %c0_23, %c0_24], %31 {strides = array<i32>} : memref<1x8x32xf32, #tpu.memory_space<vmem>>, vector<1x8x8xf32>,
    %c0_25 = arith.constant 0 : index
    %c0_26 = arith.constant 0 : index
    %c0_27 = arith.constant 0 : index
    %33 = vector.load %arg5[%c0_25, %c0_26, %c0_27] : memref<1x8x4xf32, #tpu.memory_space<vmem>>, vector<1x8x1xf32>
    tpu.vector_store %arg5[%c0_25, %c0_26, %c0_27], %14 {strides = array<i32>} : memref<1x8x4xf32, #tpu.memory_space<vmem>>, vector<1x8x1xf32>,
    %34 = vector.extract_strided_slice %3 {offsets = [0, 0, 8], sizes = [1, 8, 8], strides = [1, 1, 1]} : vector<1x8x96xbf16> to vector<1x8x8xbf16>
    %cst_28 = arith.constant 3.535160e-01 : bf16
    %35 = vector.broadcast %cst_28 : bf16 to vector<1x8x8xbf16>
    %36 = arith.mulf %34, %35 : vector<1x8x8xbf16>
    %37 = vector.extract_strided_slice %4 {offsets = [0, 0, 40], sizes = [1, 8, 8], strides = [1, 1, 1]} : vector<1x8x96xbf16> to vector<1x8x8xbf16>
    %38 = vector.extract_strided_slice %4 {offsets = [0, 0, 72], sizes = [1, 8, 8], strides = [1, 1, 1]} : vector<1x8x96xbf16> to vector<1x8x8xbf16>
    "tpu.trace_start"() <{level = 10 : i32, message = "bqd,bkd->bqk"}> : () -> ()
    %cst_29 = arith.constant dense<0.000000e+00> : vector<1x8x8xf32>
    %39 = tpu.matmul %36, %37, %cst_29 {dimension_numbers = #tpu.dot_dimension_numbers<[2], [2], [1], [1], [0, 0, 0, 1, 1, 1], [0], [0]>} : vector<1x8x8xbf16>, vector<1x8x8xbf16>, vector<1x8x8xf32> -> vector<1x8x8xf32>
    "tpu.trace_stop"() : () -> ()
    %c0_30 = arith.constant 0 : index
    %c0_31 = arith.constant 0 : index
    %c1 = arith.constant 1 : index
    %40 = vector.load %arg5[%c0_30, %c0_31, %c1] : memref<1x8x4xf32, #tpu.memory_space<vmem>>, vector<1x8x1xf32>
    %cst_32 = arith.constant dense<0xFF800000> : vector<1x8xf32>
    %41 = vector.multi_reduction <maximumf>, %39, %cst_32 [2] : vector<1x8x8xf32> to vector<1x8xf32>
    %42 = vector.shape_cast %41 : vector<1x8xf32> to vector<1x8x1xf32>
    %43 = arith.maximumf %40, %42 : vector<1x8x1xf32>
    %44 = arith.subf %40, %43 : vector<1x8x1xf32>
    %45 = math.exp %44 : vector<1x8x1xf32>
    %46 = vector.broadcast %43 : vector<1x8x1xf32> to vector<1x8x8xf32>
    %47 = arith.subf %39, %46 : vector<1x8x8xf32>
    %48 = math.exp %47 : vector<1x8x8xf32>
    %c0_33 = arith.constant 0 : index
    %c0_34 = arith.constant 0 : index
    %c1_35 = arith.constant 1 : index
    %49 = vector.load %arg6[%c0_33, %c0_34, %c1_35] : memref<1x8x4xf32, #tpu.memory_space<vmem>>, vector<1x8x1xf32>
    %50 = arith.mulf %45, %49 : vector<1x8x1xf32>
    %cst_36 = arith.constant dense<0.000000e+00> : vector<1x8xf32>
    %51 = vector.multi_reduction <add>, %48, %cst_36 [2] : vector<1x8x8xf32> to vector<1x8xf32>
    %52 = vector.shape_cast %51 : vector<1x8xf32> to vector<1x8x1xf32>
    %53 = arith.addf %50, %52 : vector<1x8x1xf32>
    %c0_37 = arith.constant 0 : index
    %c0_38 = arith.constant 0 : index
    %c1_39 = arith.constant 1 : index
    %54 = vector.load %arg6[%c0_37, %c0_38, %c1_39] : memref<1x8x4xf32, #tpu.memory_space<vmem>>, vector<1x8x1xf32>
    tpu.vector_store %arg6[%c0_37, %c0_38, %c1_39], %53 {strides = array<i32>} : memref<1x8x4xf32, #tpu.memory_space<vmem>>, vector<1x8x1xf32>,
    %55 = arith.truncf %48 : vector<1x8x8xf32> to vector<1x8x8xbf16>
    "tpu.trace_start"() <{level = 10 : i32, message = "bqk,bkd->bqd"}> : () -> ()
    %cst_40 = arith.constant dense<0.000000e+00> : vector<1x8x8xf32>
    %56 = tpu.matmul %55, %38, %cst_40 {dimension_numbers = #tpu.dot_dimension_numbers<[2], [1], [1], [2], [0, 0, 0, 1, 1, 2], [0], [0]>} : vector<1x8x8xbf16>, vector<1x8x8xbf16>, vector<1x8x8xf32> -> vector<1x8x8xf32>
    "tpu.trace_stop"() : () -> ()
    %c0_41 = arith.constant 0 : index
    %c0_42 = arith.constant 0 : index
    %c8 = arith.constant 8 : index
    %57 = vector.load %arg7[%c0_41, %c0_42, %c8] : memref<1x8x32xf32, #tpu.memory_space<vmem>>, vector<1x8x8xf32>
    %58 = vector.broadcast %45 : vector<1x8x1xf32> to vector<1x8x8xf32>
    %59 = arith.mulf %58, %57 : vector<1x8x8xf32>
    %60 = arith.addf %59, %56 : vector<1x8x8xf32>
    %c0_43 = arith.constant 0 : index
    %c0_44 = arith.constant 0 : index
    %c8_45 = arith.constant 8 : index
    %61 = vector.load %arg7[%c0_43, %c0_44, %c8_45] : memref<1x8x32xf32, #tpu.memory_space<vmem>>, vector<1x8x8xf32>
    tpu.vector_store %arg7[%c0_43, %c0_44, %c8_45], %60 {strides = array<i32>} : memref<1x8x32xf32, #tpu.memory_space<vmem>>, vector<1x8x8xf32>,
    %c0_46 = arith.constant 0 : index
    %c0_47 = arith.constant 0 : index
    %c1_48 = arith.constant 1 : index
    %62 = vector.load %arg5[%c0_46, %c0_47, %c1_48] : memref<1x8x4xf32, #tpu.memory_space<vmem>>, vector<1x8x1xf32>
    tpu.vector_store %arg5[%c0_46, %c0_47, %c1_48], %43 {strides = array<i32>} : memref<1x8x4xf32, #tpu.memory_space<vmem>>, vector<1x8x1xf32>,
    %63 = vector.extract_strided_slice %3 {offsets = [0, 0, 16], sizes = [1, 8, 8], strides = [1, 1, 1]} : vector<1x8x96xbf16> to vector<1x8x8xbf16>
    %cst_49 = arith.constant 3.535160e-01 : bf16
    %64 = vector.broadcast %cst_49 : bf16 to vector<1x8x8xbf16>
    %65 = arith.mulf %63, %64 : vector<1x8x8xbf16>
    %66 = vector.extract_strided_slice %4 {offsets = [0, 0, 48], sizes = [1, 8, 8], strides = [1, 1, 1]} : vector<1x8x96xbf16> to vector<1x8x8xbf16>
    %67 = vector.extract_strided_slice %4 {offsets = [0, 0, 80], sizes = [1, 8, 8], strides = [1, 1, 1]} : vector<1x8x96xbf16> to vector<1x8x8xbf16>
    "tpu.trace_start"() <{level = 10 : i32, message = "bqd,bkd->bqk"}> : () -> ()
    %cst_50 = arith.constant dense<0.000000e+00> : vector<1x8x8xf32>
    %68 = tpu.matmul %65, %66, %cst_50 {dimension_numbers = #tpu.dot_dimension_numbers<[2], [2], [1], [1], [0, 0, 0, 1, 1, 1], [0], [0]>} : vector<1x8x8xbf16>, vector<1x8x8xbf16>, vector<1x8x8xf32> -> vector<1x8x8xf32>
    "tpu.trace_stop"() : () -> ()
    %c0_51 = arith.constant 0 : index
    %c0_52 = arith.constant 0 : index
    %c2 = arith.constant 2 : index
    %69 = vector.load %arg5[%c0_51, %c0_52, %c2] : memref<1x8x4xf32, #tpu.memory_space<vmem>>, vector<1x8x1xf32>
    %cst_53 = arith.constant dense<0xFF800000> : vector<1x8xf32>
    %70 = vector.multi_reduction <maximumf>, %68, %cst_53 [2] : vector<1x8x8xf32> to vector<1x8xf32>
    %71 = vector.shape_cast %70 : vector<1x8xf32> to vector<1x8x1xf32>
    %72 = arith.maximumf %69, %71 : vector<1x8x1xf32>
    %73 = arith.subf %69, %72 : vector<1x8x1xf32>
    %74 = math.exp %73 : vector<1x8x1xf32>
    %75 = vector.broadcast %72 : vector<1x8x1xf32> to vector<1x8x8xf32>
    %76 = arith.subf %68, %75 : vector<1x8x8xf32>
    %77 = math.exp %76 : vector<1x8x8xf32>
    %c0_54 = arith.constant 0 : index
    %c0_55 = arith.constant 0 : index
    %c2_56 = arith.constant 2 : index
    %78 = vector.load %arg6[%c0_54, %c0_55, %c2_56] : memref<1x8x4xf32, #tpu.memory_space<vmem>>, vector<1x8x1xf32>
    %79 = arith.mulf %74, %78 : vector<1x8x1xf32>
    %cst_57 = arith.constant dense<0.000000e+00> : vector<1x8xf32>
    %80 = vector.multi_reduction <add>, %77, %cst_57 [2] : vector<1x8x8xf32> to vector<1x8xf32>
    %81 = vector.shape_cast %80 : vector<1x8xf32> to vector<1x8x1xf32>
    %82 = arith.addf %79, %81 : vector<1x8x1xf32>
    %c0_58 = arith.constant 0 : index
    %c0_59 = arith.constant 0 : index
    %c2_60 = arith.constant 2 : index
    %83 = vector.load %arg6[%c0_58, %c0_59, %c2_60] : memref<1x8x4xf32, #tpu.memory_space<vmem>>, vector<1x8x1xf32>
    tpu.vector_store %arg6[%c0_58, %c0_59, %c2_60], %82 {strides = array<i32>} : memref<1x8x4xf32, #tpu.memory_space<vmem>>, vector<1x8x1xf32>,
    %84 = arith.truncf %77 : vector<1x8x8xf32> to vector<1x8x8xbf16>
    "tpu.trace_start"() <{level = 10 : i32, message = "bqk,bkd->bqd"}> : () -> ()
    %cst_61 = arith.constant dense<0.000000e+00> : vector<1x8x8xf32>
    %85 = tpu.matmul %84, %67, %cst_61 {dimension_numbers = #tpu.dot_dimension_numbers<[2], [1], [1], [2], [0, 0, 0, 1, 1, 2], [0], [0]>} : vector<1x8x8xbf16>, vector<1x8x8xbf16>, vector<1x8x8xf32> -> vector<1x8x8xf32>
    "tpu.trace_stop"() : () -> ()
    %c0_62 = arith.constant 0 : index
    %c0_63 = arith.constant 0 : index
    %c16 = arith.constant 16 : index
    %86 = vector.load %arg7[%c0_62, %c0_63, %c16] : memref<1x8x32xf32, #tpu.memory_space<vmem>>, vector<1x8x8xf32>
    %87 = vector.broadcast %74 : vector<1x8x1xf32> to vector<1x8x8xf32>
    %88 = arith.mulf %87, %86 : vector<1x8x8xf32>
    %89 = arith.addf %88, %85 : vector<1x8x8xf32>
    %c0_64 = arith.constant 0 : index
    %c0_65 = arith.constant 0 : index
    %c16_66 = arith.constant 16 : index
    %90 = vector.load %arg7[%c0_64, %c0_65, %c16_66] : memref<1x8x32xf32, #tpu.memory_space<vmem>>, vector<1x8x8xf32>
    tpu.vector_store %arg7[%c0_64, %c0_65, %c16_66], %89 {strides = array<i32>} : memref<1x8x32xf32, #tpu.memory_space<vmem>>, vector<1x8x8xf32>,
    %c0_67 = arith.constant 0 : index
    %c0_68 = arith.constant 0 : index
    %c2_69 = arith.constant 2 : index
    %91 = vector.load %arg5[%c0_67, %c0_68, %c2_69] : memref<1x8x4xf32, #tpu.memory_space<vmem>>, vector<1x8x1xf32>
    tpu.vector_store %arg5[%c0_67, %c0_68, %c2_69], %72 {strides = array<i32>} : memref<1x8x4xf32, #tpu.memory_space<vmem>>, vector<1x8x1xf32>,
    %92 = vector.extract_strided_slice %3 {offsets = [0, 0, 24], sizes = [1, 8, 8], strides = [1, 1, 1]} : vector<1x8x96xbf16> to vector<1x8x8xbf16>
    %cst_70 = arith.constant 3.535160e-01 : bf16
    %93 = vector.broadcast %cst_70 : bf16 to vector<1x8x8xbf16>
    %94 = arith.mulf %92, %93 : vector<1x8x8xbf16>
    %95 = vector.extract_strided_slice %4 {offsets = [0, 0, 56], sizes = [1, 8, 8], strides = [1, 1, 1]} : vector<1x8x96xbf16> to vector<1x8x8xbf16>
    %96 = vector.extract_strided_slice %4 {offsets = [0, 0, 88], sizes = [1, 8, 8], strides = [1, 1, 1]} : vector<1x8x96xbf16> to vector<1x8x8xbf16>
    "tpu.trace_start"() <{level = 10 : i32, message = "bqd,bkd->bqk"}> : () -> ()
    %cst_71 = arith.constant dense<0.000000e+00> : vector<1x8x8xf32>
    %97 = tpu.matmul %94, %95, %cst_71 {dimension_numbers = #tpu.dot_dimension_numbers<[2], [2], [1], [1], [0, 0, 0, 1, 1, 1], [0], [0]>} : vector<1x8x8xbf16>, vector<1x8x8xbf16>, vector<1x8x8xf32> -> vector<1x8x8xf32>
    "tpu.trace_stop"() : () -> ()
    %c0_72 = arith.constant 0 : index
    %c0_73 = arith.constant 0 : index
    %c3 = arith.constant 3 : index
    %98 = vector.load %arg5[%c0_72, %c0_73, %c3] : memref<1x8x4xf32, #tpu.memory_space<vmem>>, vector<1x8x1xf32>
    %cst_74 = arith.constant dense<0xFF800000> : vector<1x8xf32>
    %99 = vector.multi_reduction <maximumf>, %97, %cst_74 [2] : vector<1x8x8xf32> to vector<1x8xf32>
    %100 = vector.shape_cast %99 : vector<1x8xf32> to vector<1x8x1xf32>
    %101 = arith.maximumf %98, %100 : vector<1x8x1xf32>
    %102 = arith.subf %98, %101 : vector<1x8x1xf32>
    %103 = math.exp %102 : vector<1x8x1xf32>
    %104 = vector.broadcast %101 : vector<1x8x1xf32> to vector<1x8x8xf32>
    %105 = arith.subf %97, %104 : vector<1x8x8xf32>
    %106 = math.exp %105 : vector<1x8x8xf32>
    %c0_75 = arith.constant 0 : index
    %c0_76 = arith.constant 0 : index
    %c3_77 = arith.constant 3 : index
    %107 = vector.load %arg6[%c0_75, %c0_76, %c3_77] : memref<1x8x4xf32, #tpu.memory_space<vmem>>, vector<1x8x1xf32>
    %108 = arith.mulf %103, %107 : vector<1x8x1xf32>
    %cst_78 = arith.constant dense<0.000000e+00> : vector<1x8xf32>
    %109 = vector.multi_reduction <add>, %106, %cst_78 [2] : vector<1x8x8xf32> to vector<1x8xf32>
    %110 = vector.shape_cast %109 : vector<1x8xf32> to vector<1x8x1xf32>
    %111 = arith.addf %108, %110 : vector<1x8x1xf32>
    %c0_79 = arith.constant 0 : index
    %c0_80 = arith.constant 0 : index
    %c3_81 = arith.constant 3 : index
    %112 = vector.load %arg6[%c0_79, %c0_80, %c3_81] : memref<1x8x4xf32, #tpu.memory_space<vmem>>, vector<1x8x1xf32>
    tpu.vector_store %arg6[%c0_79, %c0_80, %c3_81], %111 {strides = array<i32>} : memref<1x8x4xf32, #tpu.memory_space<vmem>>, vector<1x8x1xf32>,
    %113 = arith.truncf %106 : vector<1x8x8xf32> to vector<1x8x8xbf16>
    "tpu.trace_start"() <{level = 10 : i32, message = "bqk,bkd->bqd"}> : () -> ()
    %cst_82 = arith.constant dense<0.000000e+00> : vector<1x8x8xf32>
    %114 = tpu.matmul %113, %96, %cst_82 {dimension_numbers = #tpu.dot_dimension_numbers<[2], [1], [1], [2], [0, 0, 0, 1, 1, 2], [0], [0]>} : vector<1x8x8xbf16>, vector<1x8x8xbf16>, vector<1x8x8xf32> -> vector<1x8x8xf32>
    "tpu.trace_stop"() : () -> ()
    %c0_83 = arith.constant 0 : index
    %c0_84 = arith.constant 0 : index
    %c24 = arith.constant 24 : index
    %115 = vector.load %arg7[%c0_83, %c0_84, %c24] : memref<1x8x32xf32, #tpu.memory_space<vmem>>, vector<1x8x8xf32>
    %116 = vector.broadcast %103 : vector<1x8x1xf32> to vector<1x8x8xf32>
    %117 = arith.mulf %116, %115 : vector<1x8x8xf32>
    %118 = arith.addf %117, %114 : vector<1x8x8xf32>
    %c0_85 = arith.constant 0 : index
    %c0_86 = arith.constant 0 : index
    %c24_87 = arith.constant 24 : index
    %119 = vector.load %arg7[%c0_85, %c0_86, %c24_87] : memref<1x8x32xf32, #tpu.memory_space<vmem>>, vector<1x8x8xf32>
    tpu.vector_store %arg7[%c0_85, %c0_86, %c24_87], %118 {strides = array<i32>} : memref<1x8x32xf32, #tpu.memory_space<vmem>>, vector<1x8x8xf32>,
    %c0_88 = arith.constant 0 : index
    %c0_89 = arith.constant 0 : index
    %c3_90 = arith.constant 3 : index
    %120 = vector.load %arg5[%c0_88, %c0_89, %c3_90] : memref<1x8x4xf32, #tpu.memory_space<vmem>>, vector<1x8x1xf32>
    tpu.vector_store %arg5[%c0_88, %c0_89, %c3_90], %101 {strides = array<i32>} : memref<1x8x4xf32, #tpu.memory_space<vmem>>, vector<1x8x1xf32>,
    %c0_i32_91 = arith.constant 0 : i32
    %121 = arith.cmpi eq, %arg1, %c0_i32_91 : i32
    %122 = arith.extui %121 : i1 to i32
    %c0_i32_92 = arith.constant 0 : i32
    %123 = arith.cmpi ne, %122, %c0_i32_92 : i32
    scf.if %123 {
      %c0_93 = arith.constant 0 : index
      %c0_94 = arith.constant 0 : index
      %c0_95 = arith.constant 0 : index
      %124 = vector.load %arg6[%c0_93, %c0_94, %c0_95] : memref<1x8x4xf32, #tpu.memory_space<vmem>>, vector<1x8x1xf32>
      %125 = tpu.reciprocal %124 {approx = true} : vector<1x8x1xf32> -> vector<1x8x1xf32>
      %c0_96 = arith.constant 0 : index
      %c0_97 = arith.constant 0 : index
      %c0_98 = arith.constant 0 : index
      %126 = vector.load %arg7[%c0_96, %c0_97, %c0_98] : memref<1x8x32xf32, #tpu.memory_space<vmem>>, vector<1x8x8xf32>
      %127 = vector.broadcast %125 : vector<1x8x1xf32> to vector<1x8x8xf32>
      %128 = arith.mulf %126, %127 : vector<1x8x8xf32>
      %129 = arith.truncf %128 : vector<1x8x8xf32> to vector<1x8x8xbf16>
      %c0_99 = arith.constant 0 : index
      %c0_100 = arith.constant 0 : index
      %c0_101 = arith.constant 0 : index
      %130 = vector.load %arg4[%c0_99, %c0_100, %c0_101] : memref<1x8x32xbf16, #tpu.memory_space<vmem>>, vector<1x8x8xbf16>
      tpu.vector_store %arg4[%c0_99, %c0_100, %c0_101], %129 {strides = array<i32>} : memref<1x8x32xbf16, #tpu.memory_space<vmem>>, vector<1x8x8xbf16>,
      %c0_102 = arith.constant 0 : index
      %c0_103 = arith.constant 0 : index
      %c1_104 = arith.constant 1 : index
      %131 = vector.load %arg6[%c0_102, %c0_103, %c1_104] : memref<1x8x4xf32, #tpu.memory_space<vmem>>, vector<1x8x1xf32>
      %132 = tpu.reciprocal %131 {approx = true} : vector<1x8x1xf32> -> vector<1x8x1xf32>
      %c0_105 = arith.constant 0 : index
      %c0_106 = arith.constant 0 : index
      %c8_107 = arith.constant 8 : index
      %133 = vector.load %arg7[%c0_105, %c0_106, %c8_107] : memref<1x8x32xf32, #tpu.memory_space<vmem>>, vector<1x8x8xf32>
      %134 = vector.broadcast %132 : vector<1x8x1xf32> to vector<1x8x8xf32>
      %135 = arith.mulf %133, %134 : vector<1x8x8xf32>
      %136 = arith.truncf %135 : vector<1x8x8xf32> to vector<1x8x8xbf16>
      %c0_108 = arith.constant 0 : index
      %c0_109 = arith.constant 0 : index
      %c8_110 = arith.constant 8 : index
      %137 = vector.load %arg4[%c0_108, %c0_109, %c8_110] : memref<1x8x32xbf16, #tpu.memory_space<vmem>>, vector<1x8x8xbf16>
      tpu.vector_store %arg4[%c0_108, %c0_109, %c8_110], %136 {strides = array<i32>} : memref<1x8x32xbf16, #tpu.memory_space<vmem>>, vector<1x8x8xbf16>,
      %c0_111 = arith.constant 0 : index
      %c0_112 = arith.constant 0 : index
      %c2_113 = arith.constant 2 : index
      %138 = vector.load %arg6[%c0_111, %c0_112, %c2_113] : memref<1x8x4xf32, #tpu.memory_space<vmem>>, vector<1x8x1xf32>
      %139 = tpu.reciprocal %138 {approx = true} : vector<1x8x1xf32> -> vector<1x8x1xf32>
      %c0_114 = arith.constant 0 : index
      %c0_115 = arith.constant 0 : index
      %c16_116 = arith.constant 16 : index
      %140 = vector.load %arg7[%c0_114, %c0_115, %c16_116] : memref<1x8x32xf32, #tpu.memory_space<vmem>>, vector<1x8x8xf32>
      %141 = vector.broadcast %139 : vector<1x8x1xf32> to vector<1x8x8xf32>
      %142 = arith.mulf %140, %141 : vector<1x8x8xf32>
      %143 = arith.truncf %142 : vector<1x8x8xf32> to vector<1x8x8xbf16>
      %c0_117 = arith.constant 0 : index
      %c0_118 = arith.constant 0 : index
      %c16_119 = arith.constant 16 : index
      %144 = vector.load %arg4[%c0_117, %c0_118, %c16_119] : memref<1x8x32xbf16, #tpu.memory_space<vmem>>, vector<1x8x8xbf16>
      tpu.vector_store %arg4[%c0_117, %c0_118, %c16_119], %143 {strides = array<i32>} : memref<1x8x32xbf16, #tpu.memory_space<vmem>>, vector<1x8x8xbf16>,
      %c0_120 = arith.constant 0 : index
      %c0_121 = arith.constant 0 : index
      %c3_122 = arith.constant 3 : index
      %145 = vector.load %arg6[%c0_120, %c0_121, %c3_122] : memref<1x8x4xf32, #tpu.memory_space<vmem>>, vector<1x8x1xf32>
      %146 = tpu.reciprocal %145 {approx = true} : vector<1x8x1xf32> -> vector<1x8x1xf32>
      %c0_123 = arith.constant 0 : index
      %c0_124 = arith.constant 0 : index
      %c24_125 = arith.constant 24 : index
      %147 = vector.load %arg7[%c0_123, %c0_124, %c24_125] : memref<1x8x32xf32, #tpu.memory_space<vmem>>, vector<1x8x8xf32>
      %148 = vector.broadcast %146 : vector<1x8x1xf32> to vector<1x8x8xf32>
      %149 = arith.mulf %147, %148 : vector<1x8x8xf32>
      %150 = arith.truncf %149 : vector<1x8x8xf32> to vector<1x8x8xbf16>
      %c0_126 = arith.constant 0 : index
      %c0_127 = arith.constant 0 : index
      %c24_128 = arith.constant 24 : index
      %151 = vector.load %arg4[%c0_126, %c0_127, %c24_128] : memref<1x8x32xbf16, #tpu.memory_space<vmem>>, vector<1x8x8xbf16>
      tpu.vector_store %arg4[%c0_126, %c0_127, %c24_128], %150 {strides = array<i32>} : memref<1x8x32xbf16, #tpu.memory_space<vmem>>, vector<1x8x8xbf16>,
    } else {
    }
    return
  }
  func.func @transform_0(%arg0: i32, %arg1: i32) -> (i32, i32, i32) {
    %c0_i32 = arith.constant 0 : i32
    %c0_i32_0 = arith.constant 0 : i32
    %c0_i32_1 = arith.constant 0 : i32
    return %arg0, %c0_i32, %c0_i32_0 : i32, i32, i32
  }
  func.func @transform_1(%arg0: i32, %arg1: i32) -> (i32, i32, i32) {
    %c0_i32 = arith.constant 0 : i32
    %c0_i32_0 = arith.constant 0 : i32
    return %arg0, %arg1, %c0_i32 : i32, i32, i32
  }
  func.func @transform_2(%arg0: i32, %arg1: i32) -> (i32, i32, i32) {
    %c0_i32 = arith.constant 0 : i32
    %c0_i32_0 = arith.constant 0 : i32
    %c0_i32_1 = arith.constant 0 : i32
    return %arg0, %c0_i32, %c0_i32_0 : i32, i32, i32
  }
}

module attributes {stable_mosaic.version = 11 : i64} {
  func.func @_linear_kernel(%arg0: i32, %arg1: i32, %arg2: i32, %arg3: memref<16x32xbf16, #tpu.memory_space<vmem>>, %arg4: memref<32x128xbf16, #tpu.memory_space<vmem>>, %arg5: memref<1x128xbf16, #tpu.memory_space<vmem>>, %arg6: memref<16x128xbf16, #tpu.memory_space<vmem>>, %arg7: memref<16x128xf32, #tpu.memory_space<vmem>>) attributes {dimension_semantics = [#tpu.dimension_semantics<parallel>, #tpu.dimension_semantics<parallel>, #tpu.dimension_semantics<arbitrary>], iteration_bounds = array<i64: 1, 1, 1>, scalar_prefetch = 0 : i64, scratch_operands = 1 : i64, tpu.core_type = #tpu.core_type<tc>, window_params = [{transform_indices = @transform_0, window_bounds = array<i64: 16, 32>}, {transform_indices = @transform_1, window_bounds = array<i64: 32, 128>}, {transform_indices = @transform_2, window_bounds = array<i64: 1, 128>}, {transform_indices = @transform_3, window_bounds = array<i64: 16, 128>}]} {
    %c0_i32 = arith.constant 0 : i32
    %0 = arith.cmpi eq, %arg2, %c0_i32 : i32
    %1 = arith.extui %0 : i1 to i32
    %c0_i32_0 = arith.constant 0 : i32
    %2 = arith.cmpi ne, %1, %c0_i32_0 : i32
    scf.if %2 {
      %cst_10 = arith.constant 0.000000e+00 : f32
      %12 = vector.broadcast %cst_10 : f32 to vector<16x128xf32>
      %c0_11 = arith.constant 0 : index
      %c0_12 = arith.constant 0 : index
      %13 = vector.load %arg7[%c0_11, %c0_12] : memref<16x128xf32, #tpu.memory_space<vmem>>, vector<16x128xf32>
      tpu.vector_store %arg7[%c0_11, %c0_12], %12 {strides = array<i32>} : memref<16x128xf32, #tpu.memory_space<vmem>>, vector<16x128xf32>,
    } else {
    }
    %c0 = arith.constant 0 : index
    %c0_1 = arith.constant 0 : index
    %3 = vector.load %arg7[%c0, %c0_1] : memref<16x128xf32, #tpu.memory_space<vmem>>, vector<16x128xf32>
    %c0_2 = arith.constant 0 : index
    %c0_3 = arith.constant 0 : index
    %4 = vector.load %arg3[%c0_2, %c0_3] : memref<16x32xbf16, #tpu.memory_space<vmem>>, vector<16x32xbf16>
    %c0_4 = arith.constant 0 : index
    %c0_5 = arith.constant 0 : index
    %5 = vector.load %arg4[%c0_4, %c0_5] : memref<32x128xbf16, #tpu.memory_space<vmem>>, vector<32x128xbf16>
    %cst = arith.constant dense<0.000000e+00> : vector<16x128xf32>
    %6 = tpu.matmul %4, %5, %cst {dimension_numbers = #tpu.dot_dimension_numbers<[1], [0], [0], [1], [0, 0, 1, 1], [], []>} : vector<16x32xbf16>, vector<32x128xbf16>, vector<16x128xf32> -> vector<16x128xf32>
    %7 = arith.addf %3, %6 : vector<16x128xf32>
    %c0_6 = arith.constant 0 : index
    %c0_7 = arith.constant 0 : index
    %8 = vector.load %arg7[%c0_6, %c0_7] : memref<16x128xf32, #tpu.memory_space<vmem>>, vector<16x128xf32>
    tpu.vector_store %arg7[%c0_6, %c0_7], %7 {strides = array<i32>} : memref<16x128xf32, #tpu.memory_space<vmem>>, vector<16x128xf32>,
    %c0_i32_8 = arith.constant 0 : i32
    %9 = arith.cmpi eq, %arg2, %c0_i32_8 : i32
    %10 = arith.extui %9 : i1 to i32
    %c0_i32_9 = arith.constant 0 : i32
    %11 = arith.cmpi ne, %10, %c0_i32_9 : i32
    scf.if %11 {
      %c0_10 = arith.constant 0 : index
      %c0_11 = arith.constant 0 : index
      %12 = vector.load %arg7[%c0_10, %c0_11] : memref<16x128xf32, #tpu.memory_space<vmem>>, vector<16x128xf32>
      %c0_12 = arith.constant 0 : index
      %c0_13 = arith.constant 0 : index
      %13 = vector.load %arg5[%c0_12, %c0_13] : memref<1x128xbf16, #tpu.memory_space<vmem>>, vector<1x128xbf16>
      %14 = arith.extf %13 : vector<1x128xbf16> to vector<1x128xf32>
      %15 = vector.broadcast %14 : vector<1x128xf32> to vector<16x128xf32>
      %16 = arith.addf %12, %15 : vector<16x128xf32>
      %cst_14 = arith.constant 5.000000e-01 : f32
      %17 = vector.broadcast %cst_14 : f32 to vector<16x128xf32>
      %18 = arith.mulf %17, %16 : vector<16x128xf32>
      %cst_15 = arith.constant 0.797884583 : f32
      %19 = vector.broadcast %cst_15 : f32 to vector<16x128xf32>
      %20 = arith.mulf %19, %16 : vector<16x128xf32>
      %cst_16 = arith.constant 4.471500e-02 : f32
      %21 = vector.broadcast %cst_16 : f32 to vector<16x128xf32>
      %22 = arith.mulf %21, %16 : vector<16x128xf32>
      %23 = arith.mulf %22, %16 : vector<16x128xf32>
      %cst_17 = arith.constant 1.000000e+00 : f32
      %24 = vector.broadcast %cst_17 : f32 to vector<16x128xf32>
      %25 = arith.addf %24, %23 : vector<16x128xf32>
      %26 = arith.mulf %20, %25 : vector<16x128xf32>
      %27 = math.tanh %26 : vector<16x128xf32>
      %cst_18 = arith.constant 1.000000e+00 : f32
      %28 = vector.broadcast %cst_18 : f32 to vector<16x128xf32>
      %29 = arith.addf %28, %27 : vector<16x128xf32>
      %30 = arith.mulf %18, %29 : vector<16x128xf32>
      %31 = arith.truncf %30 : vector<16x128xf32> to vector<16x128xbf16>
      %c0_19 = arith.constant 0 : index
      %c0_20 = arith.constant 0 : index
      %32 = vector.load %arg6[%c0_19, %c0_20] : memref<16x128xbf16, #tpu.memory_space<vmem>>, vector<16x128xbf16>
      tpu.vector_store %arg6[%c0_19, %c0_20], %31 {strides = array<i32>} : memref<16x128xbf16, #tpu.memory_space<vmem>>, vector<16x128xbf16>,
    } else {
    }
    return
  }
  func.func @transform_0(%arg0: i32, %arg1: i32, %arg2: i32) -> (i32, i32) {
    %c0_i32 = arith.constant 0 : i32
    return %arg0, %arg2 : i32, i32
  }
  func.func @transform_1(%arg0: i32, %arg1: i32, %arg2: i32) -> (i32, i32) {
    %c0_i32 = arith.constant 0 : i32
    return %arg2, %arg1 : i32, i32
  }
  func.func @transform_2(%arg0: i32, %arg1: i32, %arg2: i32) -> (i32, i32) {
    %c0_i32 = arith.constant 0 : i32
    %c0_i32_0 = arith.constant 0 : i32
    return %c0_i32, %arg1 : i32, i32
  }
  func.func @transform_3(%arg0: i32, %arg1: i32, %arg2: i32) -> (i32, i32) {
    %c0_i32 = arith.constant 0 : i32
    return %arg0, %arg1 : i32, i32
  }
}

module attributes {stable_mosaic.version = 11 : i64} {
  func.func @_linear_res_ln_kernel(%arg0: i32, %arg1: i32, %arg2: memref<16x128xbf16, #tpu.memory_space<vmem>>, %arg3: memref<128x32xbf16, #tpu.memory_space<vmem>>, %arg4: memref<1x32xbf16, #tpu.memory_space<vmem>>, %arg5: memref<16x32xbf16, #tpu.memory_space<vmem>>, %arg6: memref<1x32xbf16, #tpu.memory_space<vmem>>, %arg7: memref<1x32xbf16, #tpu.memory_space<vmem>>, %arg8: memref<16x32xbf16, #tpu.memory_space<vmem>>, %arg9: memref<16x32xf32, #tpu.memory_space<vmem>>) attributes {dimension_semantics = [#tpu.dimension_semantics<parallel>, #tpu.dimension_semantics<arbitrary>], iteration_bounds = array<i64: 1, 1>, scalar_prefetch = 0 : i64, scratch_operands = 1 : i64, tpu.core_type = #tpu.core_type<tc>, window_params = [{transform_indices = @transform_0, window_bounds = array<i64: 16, 128>}, {transform_indices = @transform_1, window_bounds = array<i64: 128, 32>}, {pipeline_mode = #tpu.pipeline_mode<synchronous>, transform_indices = @transform_2, window_bounds = array<i64: 1, 32>}, {transform_indices = @transform_3, window_bounds = array<i64: 16, 32>}, {pipeline_mode = #tpu.pipeline_mode<synchronous>, transform_indices = @transform_4, window_bounds = array<i64: 1, 32>}, {pipeline_mode = #tpu.pipeline_mode<synchronous>, transform_indices = @transform_5, window_bounds = array<i64: 1, 32>}, {transform_indices = @transform_6, window_bounds = array<i64: 16, 32>}]} {
    %c0_i32 = arith.constant 0 : i32
    %0 = arith.cmpi eq, %arg1, %c0_i32 : i32
    %1 = arith.extui %0 : i1 to i32
    %c0_i32_0 = arith.constant 0 : i32
    %2 = arith.cmpi ne, %1, %c0_i32_0 : i32
    scf.if %2 {
      %cst_10 = arith.constant 0.000000e+00 : f32
      %12 = vector.broadcast %cst_10 : f32 to vector<16x32xf32>
      %c0_11 = arith.constant 0 : index
      %c0_12 = arith.constant 0 : index
      %13 = vector.load %arg9[%c0_11, %c0_12] : memref<16x32xf32, #tpu.memory_space<vmem>>, vector<16x32xf32>
      tpu.vector_store %arg9[%c0_11, %c0_12], %12 {strides = array<i32>} : memref<16x32xf32, #tpu.memory_space<vmem>>, vector<16x32xf32>,
    } else {
    }
    %c0 = arith.constant 0 : index
    %c0_1 = arith.constant 0 : index
    %3 = vector.load %arg9[%c0, %c0_1] : memref<16x32xf32, #tpu.memory_space<vmem>>, vector<16x32xf32>
    %c0_2 = arith.constant 0 : index
    %c0_3 = arith.constant 0 : index
    %4 = vector.load %arg2[%c0_2, %c0_3] : memref<16x128xbf16, #tpu.memory_space<vmem>>, vector<16x128xbf16>
    %c0_4 = arith.constant 0 : index
    %c0_5 = arith.constant 0 : index
    %5 = vector.load %arg3[%c0_4, %c0_5] : memref<128x32xbf16, #tpu.memory_space<vmem>>, vector<128x32xbf16>
    %cst = arith.constant dense<0.000000e+00> : vector<16x32xf32>
    %6 = tpu.matmul %4, %5, %cst {dimension_numbers = #tpu.dot_dimension_numbers<[1], [0], [0], [1], [0, 0, 1, 1], [], []>} : vector<16x128xbf16>, vector<128x32xbf16>, vector<16x32xf32> -> vector<16x32xf32>
    %7 = arith.addf %3, %6 : vector<16x32xf32>
    %c0_6 = arith.constant 0 : index
    %c0_7 = arith.constant 0 : index
    %8 = vector.load %arg9[%c0_6, %c0_7] : memref<16x32xf32, #tpu.memory_space<vmem>>, vector<16x32xf32>
    tpu.vector_store %arg9[%c0_6, %c0_7], %7 {strides = array<i32>} : memref<16x32xf32, #tpu.memory_space<vmem>>, vector<16x32xf32>,
    %c0_i32_8 = arith.constant 0 : i32
    %9 = arith.cmpi eq, %arg1, %c0_i32_8 : i32
    %10 = arith.extui %9 : i1 to i32
    %c0_i32_9 = arith.constant 0 : i32
    %11 = arith.cmpi ne, %10, %c0_i32_9 : i32
    scf.if %11 {
      %c0_10 = arith.constant 0 : index
      %c0_11 = arith.constant 0 : index
      %12 = vector.load %arg9[%c0_10, %c0_11] : memref<16x32xf32, #tpu.memory_space<vmem>>, vector<16x32xf32>
      %c0_12 = arith.constant 0 : index
      %c0_13 = arith.constant 0 : index
      %13 = vector.load %arg4[%c0_12, %c0_13] : memref<1x32xbf16, #tpu.memory_space<vmem>>, vector<1x32xbf16>
      %14 = arith.extf %13 : vector<1x32xbf16> to vector<1x32xf32>
      %15 = vector.broadcast %14 : vector<1x32xf32> to vector<16x32xf32>
      %16 = arith.addf %12, %15 : vector<16x32xf32>
      %c0_14 = arith.constant 0 : index
      %c0_15 = arith.constant 0 : index
      %17 = vector.load %arg5[%c0_14, %c0_15] : memref<16x32xbf16, #tpu.memory_space<vmem>>, vector<16x32xbf16>
      %18 = arith.extf %17 : vector<16x32xbf16> to vector<16x32xf32>
      %19 = arith.addf %16, %18 : vector<16x32xf32>
      %cst_16 = arith.constant dense<0.000000e+00> : vector<16xf32>
      %20 = vector.multi_reduction <add>, %19, %cst_16 [1] : vector<16x32xf32> to vector<16xf32>
      %21 = vector.shape_cast %20 : vector<16xf32> to vector<16x1xf32>
      %cst_17 = arith.constant 3.200000e+01 : f32
      %22 = vector.broadcast %cst_17 : f32 to vector<16x1xf32>
      %23 = arith.divf %21, %22 : vector<16x1xf32>
      %24 = vector.broadcast %23 : vector<16x1xf32> to vector<16x32xf32>
      %25 = arith.subf %19, %24 : vector<16x32xf32>
      %26 = arith.mulf %25, %25 : vector<16x32xf32>
      %cst_18 = arith.constant dense<0.000000e+00> : vector<16xf32>
      %27 = vector.multi_reduction <add>, %26, %cst_18 [1] : vector<16x32xf32> to vector<16xf32>
      %28 = vector.shape_cast %27 : vector<16xf32> to vector<16x1xf32>
      %cst_19 = arith.constant 3.200000e+01 : f32
      %29 = vector.broadcast %cst_19 : f32 to vector<16x1xf32>
      %30 = arith.divf %28, %29 : vector<16x1xf32>
      %cst_20 = arith.constant 9.99999974E-6 : f32
      %31 = vector.broadcast %cst_20 : f32 to vector<16x1xf32>
      %32 = arith.addf %30, %31 : vector<16x1xf32>
      %33 = math.rsqrt %32 : vector<16x1xf32>
      %34 = vector.broadcast %33 : vector<16x1xf32> to vector<16x32xf32>
      %35 = arith.mulf %25, %34 : vector<16x32xf32>
      %c0_21 = arith.constant 0 : index
      %c0_22 = arith.constant 0 : index
      %36 = vector.load %arg6[%c0_21, %c0_22] : memref<1x32xbf16, #tpu.memory_space<vmem>>, vector<1x32xbf16>
      %37 = arith.extf %36 : vector<1x32xbf16> to vector<1x32xf32>
      %38 = vector.broadcast %37 : vector<1x32xf32> to vector<16x32xf32>
      %39 = arith.mulf %35, %38 : vector<16x32xf32>
      %c0_23 = arith.constant 0 : index
      %c0_24 = arith.constant 0 : index
      %40 = vector.load %arg7[%c0_23, %c0_24] : memref<1x32xbf16, #tpu.memory_space<vmem>>, vector<1x32xbf16>
      %41 = arith.extf %40 : vector<1x32xbf16> to vector<1x32xf32>
      %42 = vector.broadcast %41 : vector<1x32xf32> to vector<16x32xf32>
      %43 = arith.addf %39, %42 : vector<16x32xf32>
      %44 = arith.truncf %43 : vector<16x32xf32> to vector<16x32xbf16>
      %c0_25 = arith.constant 0 : index
      %c0_26 = arith.constant 0 : index
      %45 = vector.load %arg8[%c0_25, %c0_26] : memref<16x32xbf16, #tpu.memory_space<vmem>>, vector<16x32xbf16>
      tpu.vector_store %arg8[%c0_25, %c0_26], %44 {strides = array<i32>} : memref<16x32xbf16, #tpu.memory_space<vmem>>, vector<16x32xbf16>,
    } else {
    }
    return
  }
  func.func @transform_0(%arg0: i32, %arg1: i32) -> (i32, i32) {
    %c0_i32 = arith.constant 0 : i32
    return %arg0, %arg1 : i32, i32
  }
  func.func @transform_1(%arg0: i32, %arg1: i32) -> (i32, i32) {
    %c0_i32 = arith.constant 0 : i32
    %c0_i32_0 = arith.constant 0 : i32
    return %arg1, %c0_i32 : i32, i32
  }
  func.func @transform_2(%arg0: i32, %arg1: i32) -> (i32, i32) {
    %c0_i32 = arith.constant 0 : i32
    %c0_i32_0 = arith.constant 0 : i32
    %c0_i32_1 = arith.constant 0 : i32
    return %c0_i32, %c0_i32_0 : i32, i32
  }
  func.func @transform_3(%arg0: i32, %arg1: i32) -> (i32, i32) {
    %c0_i32 = arith.constant 0 : i32
    %c0_i32_0 = arith.constant 0 : i32
    return %arg0, %c0_i32 : i32, i32
  }
  func.func @transform_4(%arg0: i32, %arg1: i32) -> (i32, i32) {
    %c0_i32 = arith.constant 0 : i32
    %c0_i32_0 = arith.constant 0 : i32
    %c0_i32_1 = arith.constant 0 : i32
    return %c0_i32, %c0_i32_0 : i32, i32
  }
  func.func @transform_5(%arg0: i32, %arg1: i32) -> (i32, i32) {
    %c0_i32 = arith.constant 0 : i32
    %c0_i32_0 = arith.constant 0 : i32
    %c0_i32_1 = arith.constant 0 : i32
    return %c0_i32, %c0_i32_0 : i32, i32
  }
  func.func @transform_6(%arg0: i32, %arg1: i32) -> (i32, i32) {
    %c0_i32 = arith.constant 0 : i32
    %c0_i32_0 = arith.constant 0 : i32
    return %arg0, %c0_i32 : i32, i32
  }
}

</mosaic_0001>

<llo_original>
// kernel: pipeline_bert_forward.14
$region0: #{pipeline_bert_forward.14}
  #allocation0 [shape = 'u32[]', space=smem, size = 0x4, offset = 0x4, fixed_abs, tag = 'smem constant byte address 0x4 - core index']
  #allocation1 [shape = 'u32[144,128]{1,0:T(1,128)}', space=vmem, size = 0x12000, scoped, tag = 'internal scratch']
  #allocation2 [shape = 'f32[16,32]{1,0:T(8,128)}', space=vmem, size = 0x2000, scoped, tag = 'scratch operand']
  %s0 = inlined_call_operand.vmem [shape: bf16[16,32], index: 0, kind: input, shape index: {}]
  %s1 = inlined_call_operand.vmem [shape: bf16[32,32], index: 1, kind: input, shape index: {}]
  %s2 = inlined_call_operand.vmem [shape: bf16[1,32], index: 2, kind: input, shape index: {}]
  %s3 = inlined_call_operand.vmem [shape: bf16[16,32], index: 3, kind: input, shape index: {}]
  %s4 = inlined_call_operand.vmem [shape: bf16[1,32], index: 4, kind: input, shape index: {}]
  %s5 = inlined_call_operand.vmem [shape: bf16[1,32], index: 5, kind: input, shape index: {}]
  %s6 = inlined_call_operand.vmem [shape: bf16[16,32], index: 6, kind: output, shape index: {}]
  %s7 = sld [smem:[#allocation0]]
  $region42: #{pipeline_bert_forward.14} parent=0
    _
  %s9 = ssub.s32 1, %s7
  %s10 = scalar_select 0, %s9, %s7
  // Predicated region
  $region2: #{pipeline_bert_forward.14} parent=0 // pred_check
    _
  $region3: #{pipeline_bert_forward.14} parent=0 // pred_check_branch
    %12 = sbr.rel (0) target = $region5
  $region4: #{pipeline_bert_forward.14} parent=0 // pred_region
    _
  $region5: #{pipeline_bert_forward.14} parent=0 // pred_fallthru
    _
  // Predicated region
  $region6: #{pipeline_bert_forward.14} parent=0 // pred_check
    _
  $region7: #{pipeline_bert_forward.14} parent=0 // pred_check_branch
    %14 = sbr.rel (0) target = $region9
  $region8: #{pipeline_bert_forward.14} parent=0 // pred_region
    _
  $region9: #{pipeline_bert_forward.14} parent=0 // pred_fallthru
    _
  // Predicated region
  $region10: #{pipeline_bert_forward.14} parent=0 // pred_check
    _
  $region11: #{pipeline_bert_forward.14} parent=0 // pred_check_branch
    %16 = sbr.rel (0) target = $region13
  $region12: #{pipeline_bert_forward.14} parent=0 // pred_region
    _
  $region13: #{pipeline_bert_forward.14} parent=0 // pred_fallthru
    _
  // Predicated region
  $region14: #{pipeline_bert_forward.14} parent=0 // pred_check
    _
  $region15: #{pipeline_bert_forward.14} parent=0 // pred_check_branch
    %18 = sbr.rel (0) target = $region17
  $region16: #{pipeline_bert_forward.14} parent=0 // pred_region
    _
  $region17: #{pipeline_bert_forward.14} parent=0 // pred_fallthru
    _
  // Predicated region
  $region18: #{pipeline_bert_forward.14} parent=0 // pred_check
    _
  $region19: #{pipeline_bert_forward.14} parent=0 // pred_check_branch
    %20 = sbr.rel (0) target = $region21
  $region20: #{pipeline_bert_forward.14} parent=0 // pred_region
    _
  $region21: #{pipeline_bert_forward.14} parent=0 // pred_fallthru
    _
  // Predicated region
  $region22: #{pipeline_bert_forward.14} parent=0 // pred_check
    _
  $region23: #{pipeline_bert_forward.14} parent=0 // pred_check_branch
    %22 = sbr.rel (0) target = $region25
  $region24: #{pipeline_bert_forward.14} parent=0 // pred_region
    _
  $region25: #{pipeline_bert_forward.14} parent=0 // pred_fallthru
    _
  %p24 = scmp.eq.s32.totalorder 0, 0
  // Predicated region
  $region26: #{pipeline_bert_forward.14} parent=0 // pred_check
    %p25 = pneg %p24
  $region27: #{pipeline_bert_forward.14} parent=0 // pred_check_branch
    %27 = sbr.rel (%p25) target = $region29
  $region28: #{pipeline_bert_forward.14} parent=0 // pred_region
    %vm28 = vcmask 261120
    %29 = vst.msk [vmem:[#allocation2] sm:$0xff] %vm28, 0.0
    %30 = vst.msk [vmem:[#allocation2 + $0x8] sm:$0xff] %vm28, 0.0
  $region29: #{pipeline_bert_forward.14} parent=0 // pred_fallthru
    _
  %v31 = vld [vmem:[#allocation2] sm:$0xff]
  %v32 = vld [vmem:[#allocation2 + $0x8] sm:$0xff]
  %v33 = vld [vmem:[%s0] sm:$0xf]
  %v34 = vld [vmem:[%s0 + $0x4] sm:$0xf]
  %v35 = vld [vmem:[%s1] sm:$0xf]
  %v36 = vld [vmem:[%s1 + $0x4] sm:$0xf]
  %v37 = vld [vmem:[%s1 + $0x8] sm:$0xf]
  %v38 = vld [vmem:[%s1 + $0xc] sm:$0xf]
  %v41 = vunpack.c.l.b16 %v33
  %v42 = vunpack.c.l.b16 %v34
  %v43 = vpack.c.b16 %v42, %v41
  %v48 = vunpack.c.l.b16 %v35
  %v49 = vunpack.c.l.b16 %v36
  %v50 = vunpack.c.l.b16 %v37
  %v51 = vunpack.c.l.b16 %v38
  %v52 = vpack.c.b16 %v49, %v48
  %v53 = vpack.c.b16 %v51, %v50
  %vm56 = vcmask 261120
  %v58 = vsel %vm56, %v43, 0
  %60 = vmatprep.subr.bf16.mxu0 0
  %61 = vmatpush1.bf16.msra.mxu0 0
  %62 = vmatprep.subr.bf16.mxu0 0
  %63 = vmatpush1.bf16.msra.mxu0 0
  %64 = vmatprep.subr.bf16.mxu0 0
  %65 = vmatpush1.bf16.msra.mxu0 0
  %66 = vmatprep.subr.bf16.mxu0 0
  %67 = vmatpush1.bf16.msra.mxu0 0
  %68 = vmatprep.subr.bf16.mxu0 0
  %69 = vmatpush1.bf16.msra.mxu0 0
  %70 = vmatprep.subr.bf16.mxu0 0
  %71 = vmatpush1.bf16.msra.mxu0 0
  %72 = vmatprep.subr.bf16.mxu0 0
  %73 = vmatpush1.bf16.msra.mxu0 %v53
  %74 = vmatprep.subr.bf16.mxu0 0
  %75 = vmatpush1.bf16.msra.mxu0 %v52
  %76 = vmatprep.subr.bf16.mxu0 0
  %77 = vmatpush2.bf16.msra.mxu0 0
  %78 = vmatprep.subr.bf16.mxu0 0
  %79 = vmatpush2.bf16.msra.mxu0 0
  %80 = vmatprep.subr.bf16.mxu0 0
  %81 = vmatpush2.bf16.msra.mxu0 0
  %82 = vmatprep.subr.bf16.mxu0 0
  %83 = vmatpush2.bf16.msra.mxu0 0
  %84 = vmatprep.subr.bf16.mxu0 0
  %85 = vmatpush2.bf16.msra.mxu0 0
  %86 = vmatprep.subr.bf16.mxu0 0
  %87 = vmatpush2.bf16.msra.mxu0 0
  %88 = vmatprep.subr.bf16.mxu0 0
  %89 = vmatpush2.bf16.msra.mxu0 0
  %90 = vmatprep.subr.bf16.mxu0 0
  %91 = vmatpush2.bf16.msra.mxu0 0
  %92 = vmatprep.mubr.bf16.mxu0 0
  %93 = vmatmul.mubr.bf16.gmra.mxu0 %v58
  %v94 = vpop.f32.mrf.mxu0
  %v95 = vadd.f32 0.0, %v94
  %v96 = vpop.f32.mrf.mxu0
  %v97 = vpop.f32.mrf.mxu0
  %v98 = vadd.f32 0.0, %v97
  %v99 = vpop.f32.mrf.mxu0
  %100 = vdwg.mxu0
  %v101 = vadd.f32 %v31, %v95
  %v102 = vadd.f32 %v32, %v98
  %103 = vst.msk [vmem:[#allocation2] sm:$0xff] %vm56, %v101
  %104 = vst.msk [vmem:[#allocation2 + $0x8] sm:$0xff] %vm56, %v102
  // Predicated region
  $region30: #{pipeline_bert_forward.14} parent=0 // pred_check
    %p105 = pneg %p24
  $region31: #{pipeline_bert_forward.14} parent=0 // pred_check_branch
    %107 = sbr.rel (%p105) target = $region33
  $region32: #{pipeline_bert_forward.14} parent=0 // pred_region
    %v108 = vld [vmem:[#allocation2] sm:$0xff]
    %v109 = vld [vmem:[#allocation2 + $0x8] sm:$0xff]
    %v110 = vld [vmem:[%s2] sm:$0x1]
    %v111 = vunpack.c.l.bf16 %v110
    %v112 = vlaneseq
    %v113 = vshrl.u32 %v112, 7
    %v114 = vsub.s32 0, %v113
    %v115 = vrot.slane %v111, %v114
    %v116 = vadd.f32 %v108, %v115
    %v117 = vadd.f32 %v109, %v115
    %v118 = vld [vmem:[%s3] sm:$0xf]
    %v119 = vld [vmem:[%s3 + $0x4] sm:$0xf]
    %v120 = vunpack.c.l.bf16 %v118
    %v121 = vunpack.c.l.bf16 %v119
    %v122 = vadd.f32 %v116, %v120
    %v123 = vadd.f32 %v117, %v121
    %v124 = vsel %vm56, %v122, 0.0
    %125 = vadd.xlane.f32.xlu0 %v124
    %v126 = vpop.xlane.xlu0 %125
    %v127 = vsel %vm56, %v123, 0.0
    %128 = vadd.xlane.f32.xlu0 %v127
    %v129 = vpop.xlane.xlu0 %128
    %v130 = vrcp.pop 32.0
    %v131 = vmul.f32 %v126, %v130
    %v132 = vmul.f32 %v129, %v130
    %v133 = vsub.f32 %v122, %v131
    %v134 = vsub.f32 %v123, %v132
    %v135 = vmul.f32 %v133, %v133
    %v136 = vmul.f32 %v134, %v134
    %v137 = vsel %vm56, %v135, 0.0
    %138 = vadd.xlane.f32.xlu0 %v137
    %v139 = vpop.xlane.xlu0 %138
    %v140 = vsel %vm56, %v136, 0.0
    %141 = vadd.xlane.f32.xlu0 %v140
    %v142 = vpop.xlane.xlu0 %141
    %v143 = vmul.f32 %v139, %v130
    %v144 = vmul.f32 %v142, %v130
    %v145 = vadd.f32 %v143, 1e-05
    %v146 = vadd.f32 %v144, 1e-05
    %v147 = vrsqrt.pop %v145
    %v148 = vrsqrt.pop %v146
    %v149 = vmul.f32 %v133, %v147
    %v150 = vmul.f32 %v134, %v148
    %v151 = vld [vmem:[%s4] sm:$0x1]
    %v152 = vunpack.c.l.bf16 %v151
    %v153 = vlaneseq
    %v154 = vshrl.u32 %v153, 7
    %v155 = vsub.s32 0, %v154
    %v156 = vrot.slane %v152, %v155
    %v157 = vmul.f32 %v149, %v156
    %v158 = vmul.f32 %v150, %v156
    %v159 = vld [vmem:[%s5] sm:$0x1]
    %v160 = vunpack.c.l.bf16 %v159
    %v161 = vlaneseq
    %v162 = vshrl.u32 %v161, 7
    %v163 = vsub.s32 0, %v162
    %v164 = vrot.slane %v160, %v163
    %v165 = vadd.f32 %v157, %v164
    %v166 = vadd.f32 %v158, %v164
    %v167 = vpack.c.bf16 %v166, %v165
    %v169 = vunpack.c.l.b16 %v167
    %v170 = vunpack.c.h.b16 %v167
    %v171 = vpack.c.b16 %v169, %v169
    %v172 = vpack.c.b16 %v170, %v170
    %vm175 = vcmask 257024
    %176 = vst.msk [vmem:[%s6] sm:$0xf] %vm175, %v171
    %177 = vst.msk [vmem:[%s6 + $0x4] sm:$0xf] %vm175, %v172
  $region33: #{pipeline_bert_forward.14} parent=0 // pred_fallthru
    _
  // Predicated region
  $region34: #{pipeline_bert_forward.14} parent=0 // pred_check
    _
  $region35: #{pipeline_bert_forward.14} parent=0 // pred_check_branch
    %179 = sbr.rel (0) target = $region37
  $region36: #{pipeline_bert_forward.14} parent=0 // pred_region
    _
  $region37: #{pipeline_bert_forward.14} parent=0 // pred_fallthru
    _
  // Predicated region
  $region38: #{pipeline_bert_forward.14} parent=0 // pred_check
    _
  $region39: #{pipeline_bert_forward.14} parent=0 // pred_check_branch
    %181 = sbr.rel (0) target = $region41
  $region40: #{pipeline_bert_forward.14} parent=0 // pred_region
    _
  $region41: #{pipeline_bert_forward.14} parent=0 // pred_fallthru
    _

// kernel: pipeline_bert_forward.11
$region0: #{pipeline_bert_forward.11}
  #allocation0 [shape = 'u32[]', space=smem, size = 0x4, offset = 0x4, fixed_abs, tag = 'smem constant byte address 0x4 - core index']
  #allocation1 [shape = 'u32[144,128]{1,0:T(1,128)}', space=vmem, size = 0x12000, scoped, tag = 'internal scratch']
  %s0 = inlined_call_operand.vmem [shape: bf16[2,8,32], index: 0, kind: input, shape index: {}]
  %s1 = inlined_call_operand.vmem [shape: bf16[8,32], index: 1, kind: input, shape index: {}]
  %s2 = inlined_call_operand.vmem [shape: bf16[1,32], index: 2, kind: input, shape index: {}]
  %s3 = inlined_call_operand.vmem [shape: bf16[1,32], index: 3, kind: input, shape index: {}]
  %s4 = inlined_call_operand.vmem [shape: bf16[2,8,32], index: 4, kind: output, shape index: {}]
  %s5 = sld [smem:[#allocation0]]
  $region49: #{pipeline_bert_forward.11} parent=0
    _
  %s7 = ssub.s32 1, %s5
  %s8 = scalar_select 0, %s7, %s5
  loop: start=0, step=1, limit=4
  $region2: #{pipeline_bert_forward.11} parent=0 // loop_pre_header
    _
  $region3: #{pipeline_bert_forward.11} parent=0 // loop_header
    %s10 = sphi 0, %s14
    %p11 = scmp.ge.s32.totalorder %s10, 4
    %s17 = sphi 0, %s29
    %s18 = sphi 0, %s25
    %s19 = sphi 0, %s17
    %s20 = sphi 0, %s18
    %s21 = sphi 0, %s19
    %s22 = sphi 0, %s20
    %s34 = sphi 0, %s36
    %s37 = sphi 0, %s34
    %s38 = sphi 0, %s37
    %s54 = sphi 0, %s38
    %s60 = sphi 0, %s62
    %s63 = sphi 0, %s60
    %s64 = sphi 0, %s63
    %s80 = sphi 0, %s64
    %s84 = sphi 0, %s84
    %s86 = sphi 0, %s84
    %s87 = sphi 0, %s86
    %s101 = sphi 0, %s87
    %s105 = sphi 0, %s105
    %s107 = sphi 0, %s105
    %s108 = sphi 0, %s107
    %s122 = sphi 0, %s108
    %s130 = sphi 0, %s132
    %s133 = sphi 0, %s130
    %s134 = sphi 0, %s133
    %s150 = sphi 0, %s134
  $region4: #{pipeline_bert_forward.11} parent=0 // loop_header_branch
    %13 = sbr.rel (%p11) target = $region8
  $region5: #{pipeline_bert_forward.11} parent=0 // loop_body
    %s15 = ssub.s32 %s10, 1
    %s16 = ssub.s32 %s10, 2
    %s23 = sadd.s32 1, %s18
    %p24 = scmp.ge.s32.totalorder %s23, 1
    %s25 = scalar_select %p24, 0, %s23
    %s26 = sadd.s32 1, %s17
    %s27 = scalar_select %p24, %s26, %s17
    %p28 = scmp.ge.s32.totalorder %s27, 2
    %s29 = scalar_select %p28, 0, %s27
    %s30 = ssub.s32 %s17, %s29
    %s31 = ssub.s32 %s18, %s25
    %s32 = sor.u32 %s30, %s31
    %p33 = scmp.eq.s32.totalorder %s32, 0
    %s35 = sadd.s32 %s34, 1
    %s36 = scalar_select %p33, %s34, %s35
    %p39 = pneg %p33
    %p40 = scmp.eq.s32.totalorder %s10, 1
    %p41 = por %p39, %p40
    %p42 = scmp.ne.s32.totalorder %s34, %s37
    %p43 = scmp.eq.s32.totalorder %s10, 0
    %p44 = por %p42, %p43
    %p45 = scmp.ne.s32.totalorder %s34, %s37
    %p46 = scmp.eq.s32.totalorder %s15, 1
    %p47 = por %p45, %p46
    %p48 = scmp.ne.s32.totalorder %s37, %s38
    %p49 = scmp.eq.s32.totalorder %s15, 0
    %p50 = por %p48, %p49
    %p51 = scmp.ne.s32.totalorder %s37, %s38
    %p52 = scmp.eq.s32.totalorder %s16, 1
    %p53 = por %p51, %p52
    %p55 = scmp.ne.s32.totalorder %s38, %s54
    %p56 = scmp.eq.s32.totalorder %s16, 0
    %p57 = por %p55, %p56
    %s58 = ssub.s32 %s18, %s25
    %p59 = scmp.eq.s32.totalorder %s58, 0
    %s61 = sadd.s32 %s60, 1
    %s62 = scalar_select %p59, %s60, %s61
    %p65 = pneg %p59
    %p66 = scmp.eq.s32.totalorder %s10, 1
    %p67 = por %p65, %p66
    %p68 = scmp.ne.s32.totalorder %s60, %s63
    %p69 = scmp.eq.s32.totalorder %s10, 0
    %p70 = por %p68, %p69
    %p71 = scmp.ne.s32.totalorder %s60, %s63
    %p72 = scmp.eq.s32.totalorder %s15, 1
    %p73 = por %p71, %p72
    %p74 = scmp.ne.s32.totalorder %s63, %s64
    %p75 = scmp.eq.s32.totalorder %s15, 0
    %p76 = por %p74, %p75
    %p77 = scmp.ne.s32.totalorder %s63, %s64
    %p78 = scmp.eq.s32.totalorder %s16, 1
    %p79 = por %p77, %p78
    %p81 = scmp.ne.s32.totalorder %s64, %s80
    %p82 = scmp.eq.s32.totalorder %s16, 0
    %p83 = por %p81, %p82
    %s85 = sadd.s32 %s84, 1
    %p88 = scmp.eq.s32.totalorder %s10, 1
    %p89 = scmp.ne.s32.totalorder %s84, %s86
    %p90 = scmp.eq.s32.totalorder %s10, 0
    %p91 = por %p89, %p90
    %p92 = scmp.ne.s32.totalorder %s84, %s86
    %p93 = scmp.eq.s32.totalorder %s15, 1
    %p94 = por %p92, %p93
    %p95 = scmp.ne.s32.totalorder %s86, %s87
    %p96 = scmp.eq.s32.totalorder %s15, 0
    %p97 = por %p95, %p96
    %p98 = scmp.ne.s32.totalorder %s86, %s87
    %p99 = scmp.eq.s32.totalorder %s16, 1
    %p100 = por %p98, %p99
    %p102 = scmp.ne.s32.totalorder %s87, %s101
    %p103 = scmp.eq.s32.totalorder %s16, 0
    %p104 = por %p102, %p103
    %s106 = sadd.s32 %s105, 1
    %p109 = scmp.eq.s32.totalorder %s10, 1
    %p110 = scmp.ne.s32.totalorder %s105, %s107
    %p111 = scmp.eq.s32.totalorder %s10, 0
    %p112 = por %p110, %p111
    %p113 = scmp.ne.s32.totalorder %s105, %s107
    %p114 = scmp.eq.s32.totalorder %s15, 1
    %p115 = por %p113, %p114
    %p116 = scmp.ne.s32.totalorder %s107, %s108
    %p117 = scmp.eq.s32.totalorder %s15, 0
    %p118 = por %p116, %p117
    %p119 = scmp.ne.s32.totalorder %s107, %s108
    %p120 = scmp.eq.s32.totalorder %s16, 1
    %p121 = por %p119, %p120
    %p123 = scmp.ne.s32.totalorder %s108, %s122
    %p124 = scmp.eq.s32.totalorder %s16, 0
    %p125 = por %p123, %p124
    %s126 = ssub.s32 %s17, %s29
    %s127 = ssub.s32 %s18, %s25
    %s128 = sor.u32 %s126, %s127
    %p129 = scmp.eq.s32.totalorder %s128, 0
    %s131 = sadd.s32 %s130, 1
    %s132 = scalar_select %p129, %s130, %s131
    %p135 = pneg %p129
    %p136 = scmp.eq.s32.totalorder %s10, 1
    %p137 = por %p135, %p136
    %p138 = scmp.ne.s32.totalorder %s130, %s133
    %p139 = scmp.eq.s32.totalorder %s10, 0
    %p140 = por %p138, %p139
    %p141 = scmp.ne.s32.totalorder %s130, %s133
    %p142 = scmp.eq.s32.totalorder %s15, 1
    %p143 = por %p141, %p142
    %p144 = scmp.ne.s32.totalorder %s133, %s134
    %p145 = scmp.eq.s32.totalorder %s15, 0
    %p146 = por %p144, %p145
    %p147 = scmp.ne.s32.totalorder %s133, %s134
    %p148 = scmp.eq.s32.totalorder %s16, 1
    %p149 = por %p147, %p148
    %p151 = scmp.ne.s32.totalorder %s134, %s150
    %p152 = scmp.eq.s32.totalorder %s16, 0
    %p153 = por %p151, %p152
    %p154 = scmp.le.s32.totalorder 1, %s10
    %p155 = scmp.lt.s32.totalorder %s10, 3
    %p156 = pnand %p154, %p155
    %p157 = pneg %p156
    // Predicated region
    $region9: #{pipeline_bert_forward.11} parent=5 // pred_check
      _
    $region10: #{pipeline_bert_forward.11} parent=5 // pred_check_branch
      %159 = sbr.rel (%p156) target = $region12
    $region11: #{pipeline_bert_forward.11} parent=5 // pred_region
      %s160 = ssub.s32 %s10, 1
      // Predicated region
      $region13: #{pipeline_bert_forward.11} parent=11 // pred_check
        %p161 = pneg %p76
      $region14: #{pipeline_bert_forward.11} parent=11 // pred_check_branch
        %163 = sbr.rel (%p161) target = $region16
      $region15: #{pipeline_bert_forward.11} parent=11 // pred_region
        %p164 = scmp.lt.s32.totalorder %s20, 0
        %s165 = scalar_select %p164, %s20, 0
        %s166 = smul.addr %s165, 4
        %s167 = scalar_lea.vmem %s1, %s166
      $region16: #{pipeline_bert_forward.11} parent=11 // pred_fallthru
        _
      // Predicated region
      $region17: #{pipeline_bert_forward.11} parent=11 // pred_check
        %p168 = pneg %p97
      $region18: #{pipeline_bert_forward.11} parent=11 // pred_check_branch
        %170 = sbr.rel (%p168) target = $region20
      $region19: #{pipeline_bert_forward.11} parent=11 // pred_region
        _
      $region20: #{pipeline_bert_forward.11} parent=11 // pred_fallthru
        _
      // Predicated region
      $region21: #{pipeline_bert_forward.11} parent=11 // pred_check
        %p171 = pneg %p118
      $region22: #{pipeline_bert_forward.11} parent=11 // pred_check_branch
        %173 = sbr.rel (%p171) target = $region24
      $region23: #{pipeline_bert_forward.11} parent=11 // pred_region
        _
      $region24: #{pipeline_bert_forward.11} parent=11 // pred_fallthru
        _
    $region12: #{pipeline_bert_forward.11} parent=5 // pred_fallthru
      _
    %p174 = scmp.lt.s32.totalorder %s10, 2
    // Predicated region
    $region25: #{pipeline_bert_forward.11} parent=5 // pred_check
      %p175 = pneg %p174
    $region26: #{pipeline_bert_forward.11} parent=5 // pred_check_branch
      %177 = sbr.rel (%p175) target = $region28
    $region27: #{pipeline_bert_forward.11} parent=5 // pred_region
      // Predicated region
      $region29: #{pipeline_bert_forward.11} parent=27 // pred_check
        %p178 = pneg %p44
      $region30: #{pipeline_bert_forward.11} parent=27 // pred_check_branch
        %180 = sbr.rel (%p178) target = $region32
      $region31: #{pipeline_bert_forward.11} parent=27 // pred_region
        %p181 = scmp.lt.s32.totalorder %s17, 1
        %s182 = scalar_select %p181, %s17, 1
        %p183 = scmp.lt.s32.totalorder %s18, 0
        %s184 = scalar_select %p183, %s18, 0
        %s185 = sadd.s32 %s184, %s182
        %s186 = smul.addr %s185, 4
        %s187 = scalar_lea.vmem %s0, %s186
      $region32: #{pipeline_bert_forward.11} parent=27 // pred_fallthru
        _
    $region28: #{pipeline_bert_forward.11} parent=5 // pred_fallthru
      _
    %p188 = scmp.le.s32.totalorder 1, %s10
    %p189 = scmp.lt.s32.totalorder %s10, 3
    %p190 = pnand %p188, %p189
    %p191 = pneg %p190
    // Predicated region
    $region33: #{pipeline_bert_forward.11} parent=5 // pred_check
      _
    $region34: #{pipeline_bert_forward.11} parent=5 // pred_check_branch
      %193 = sbr.rel (%p190) target = $region36
    $region35: #{pipeline_bert_forward.11} parent=5 // pred_region
      %s194 = ssub.s32 %s10, 1
      %p195 = scmp.lt.s32.totalorder %s19, 1
      %s196 = scalar_select %p195, %s19, 1
      %p197 = scmp.lt.s32.totalorder %s20, 0
      %s198 = scalar_select %p197, %s20, 0
      %s199 = sadd.s32 %s198, %s196
      %s200 = smul.addr %s199, 4
      %s201 = scalar_lea.vmem %s0, %s200
      %p202 = pneg %p50
      %p203 = pneg %p47
      %p204 = scmp.lt.s32.totalorder %s20, 0
      %s205 = scalar_select %p204, %s20, 0
      %s206 = smul.addr %s205, 4
      %s207 = scalar_lea.vmem %s1, %s206
      %p208 = pneg %p76
      %p209 = pneg %p73
      %p210 = pneg %p97
      %p211 = pneg %p94
      %p212 = pneg %p118
      %p213 = pneg %p115
      %p214 = pneg %p146
      %p215 = pneg %p143
      %p216 = scmp.lt.s32.totalorder %s19, 1
      %s217 = scalar_select %p216, %s19, 1
      %p218 = scmp.lt.s32.totalorder %s20, 0
      %s219 = scalar_select %p218, %s20, 0
      %s220 = sadd.s32 %s219, %s217
      %s221 = smul.addr %s220, 4
      %s222 = scalar_lea.vmem %s4, %s221
      %p223 = scmp.lt.s32.totalorder %s19, 1
      %s224 = scalar_select %p223, %s19, 1
      %p225 = scmp.lt.s32.totalorder %s20, 0
      %s226 = scalar_select %p225, %s20, 0
      %s227 = sadd.s32 %s226, %s224
      %s228 = smul.addr %s227, 4
      %s229 = scalar_lea.vmem %s0, %s228
      %p230 = scmp.lt.s32.totalorder %s20, 0
      %s231 = scalar_select %p230, %s20, 0
      %s232 = smul.addr %s231, 4
      %s233 = scalar_lea.vmem %s1, %s232
      %p234 = scmp.lt.s32.totalorder %s19, 1
      %s235 = scalar_select %p234, %s19, 1
      %p236 = scmp.lt.s32.totalorder %s20, 0
      %s237 = scalar_select %p236, %s20, 0
      %s238 = sadd.s32 %s237, %s235
      %s239 = smul.addr %s238, 4
      %s240 = scalar_lea.vmem %s4, %s239
      %v241 = vld [vmem:[%s229] sm:$0xf]
      %v242 = vunpack.c.l.bf16 %v241
      %v243 = vld [vmem:[%s233] sm:$0xf]
      %v244 = vunpack.c.l.bf16 %v243
      %v245 = vadd.f32 %v242, %v244
      %vm246 = vcmask 261120
      %v247 = vsel %vm246, %v245, 0.0
      %248 = vadd.xlane.f32.xlu0 %v247
      %v249 = vpop.xlane.xlu0 %248
      %v250 = vrcp.pop 32.0
      %v251 = vmul.f32 %v249, %v250
      %v252 = vsub.f32 %v245, %v251
      %v253 = vmul.f32 %v252, %v252
      %v254 = vsel %vm246, %v253, 0.0
      %255 = vadd.xlane.f32.xlu0 %v254
      %v256 = vpop.xlane.xlu0 %255
      %v257 = vmul.f32 %v256, %v250
      %v258 = vadd.f32 %v257, 1e-05
      %v259 = vrsqrt.pop %v258
      %v260 = vmul.f32 %v252, %v259
      %v261 = vld [vmem:[%s2] sm:$0x1]
      %v262 = vunpack.c.l.bf16 %v261
      %v263 = vlaneseq
      %v264 = vshrl.u32 %v263, 7
      %v265 = vsub.s32 0, %v264
      %v266 = vrot.slane %v262, %v265
      %v267 = vmul.f32 %v260, %v266
      %v268 = vld [vmem:[%s3] sm:$0x1]
      %v269 = vunpack.c.l.bf16 %v268
      %v270 = vlaneseq
      %v271 = vshrl.u32 %v270, 7
      %v272 = vsub.s32 0, %v271
      %v273 = vrot.slane %v269, %v272
      %v274 = vadd.f32 %v267, %v273
      %v275 = vpack.c.bf16 %v274, %v274
      %vm276 = vcmask 257024
      %277 = vst.msk [vmem:[%s240] sm:$0xf] %vm276, %v275
      %p278 = scmp.lt.s32.totalorder %s19, 1
      %s279 = scalar_select %p278, %s19, 1
      %p280 = scmp.lt.s32.totalorder %s20, 0
      %s281 = scalar_select %p280, %s20, 0
      %s282 = sadd.s32 %s281, %s279
      %s283 = smul.addr %s282, 4
      %s284 = scalar_lea.vmem %s4, %s283
      // Predicated region
      $region37: #{pipeline_bert_forward.11} parent=35 // pred_check
        %p285 = pneg %p143
      $region38: #{pipeline_bert_forward.11} parent=35 // pred_check_branch
        %287 = sbr.rel (%p285) target = $region40
      $region39: #{pipeline_bert_forward.11} parent=35 // pred_region
        _
      $region40: #{pipeline_bert_forward.11} parent=35 // pred_fallthru
        _
    $region36: #{pipeline_bert_forward.11} parent=5 // pred_fallthru
      _
    %p288 = scmp.le.s32.totalorder 2, %s10
    // Predicated region
    $region41: #{pipeline_bert_forward.11} parent=5 // pred_check
      %p289 = pneg %p288
    $region42: #{pipeline_bert_forward.11} parent=5 // pred_check_branch
      %291 = sbr.rel (%p289) target = $region44
    $region43: #{pipeline_bert_forward.11} parent=5 // pred_region
      %s292 = ssub.s32 %s10, 2
      // Predicated region
      $region45: #{pipeline_bert_forward.11} parent=43 // pred_check
        %p293 = pneg %p149
      $region46: #{pipeline_bert_forward.11} parent=43 // pred_check_branch
        %295 = sbr.rel (%p293) target = $region48
      $region47: #{pipeline_bert_forward.11} parent=43 // pred_region
        %p296 = scmp.lt.s32.totalorder %s21, 1
        %s297 = scalar_select %p296, %s21, 1
        %p298 = scmp.lt.s32.totalorder %s22, 0
        %s299 = scalar_select %p298, %s22, 0
        %s300 = sadd.s32 %s299, %s297
        %s301 = smul.addr %s300, 4
        %s302 = scalar_lea.vmem %s4, %s301
      $region48: #{pipeline_bert_forward.11} parent=43 // pred_fallthru
        _
    $region44: #{pipeline_bert_forward.11} parent=5 // pred_fallthru
      _
  $region6: #{pipeline_bert_forward.11} parent=0 // loop_footer
    %s14 = sadd.s32 1, %s10
  $region7: #{pipeline_bert_forward.11} parent=0 // loop_footer_branch
    %9 = sbr.rel target = $region3
  $region8: #{pipeline_bert_forward.11} parent=0 // loop_exit
    _

// kernel: pipeline_bert_forward.12
$region0: #{pipeline_bert_forward.12}
  #allocation0 [shape = 'u32[]', space=smem, size = 0x4, offset = 0x4, fixed_abs, tag = 'smem constant byte address 0x4 - core index']
  #allocation1 [shape = 'u32[144,128]{1,0:T(1,128)}', space=vmem, size = 0x12000, scoped, tag = 'internal scratch']
  #allocation2 [shape = 'f32[16,96]{1,0:T(8,128)}', space=vmem, size = 0x2000, scoped, tag = 'scratch operand']
  %s0 = inlined_call_operand.vmem [shape: bf16[16,32], index: 0, kind: input, shape index: {}]
  %s1 = inlined_call_operand.vmem [shape: bf16[32,96], index: 1, kind: input, shape index: {}]
  %s2 = inlined_call_operand.vmem [shape: bf16[1,96], index: 2, kind: input, shape index: {}]
  %s3 = inlined_call_operand.vmem [shape: bf16[16,96], index: 3, kind: output, shape index: {}]
  %s4 = sld [smem:[#allocation0]]
  $region30: #{pipeline_bert_forward.12} parent=0
    _
  %s6 = ssub.s32 1, %s4
  %s7 = scalar_select 0, %s6, %s4
  // Predicated region
  $region2: #{pipeline_bert_forward.12} parent=0 // pred_check
    _
  $region3: #{pipeline_bert_forward.12} parent=0 // pred_check_branch
    %9 = sbr.rel (0) target = $region5
  $region4: #{pipeline_bert_forward.12} parent=0 // pred_region
    _
  $region5: #{pipeline_bert_forward.12} parent=0 // pred_fallthru
    _
  // Predicated region
  $region6: #{pipeline_bert_forward.12} parent=0 // pred_check
    _
  $region7: #{pipeline_bert_forward.12} parent=0 // pred_check_branch
    %11 = sbr.rel (0) target = $region9
  $region8: #{pipeline_bert_forward.12} parent=0 // pred_region
    _
  $region9: #{pipeline_bert_forward.12} parent=0 // pred_fallthru
    _
  // Predicated region
  $region10: #{pipeline_bert_forward.12} parent=0 // pred_check
    _
  $region11: #{pipeline_bert_forward.12} parent=0 // pred_check_branch
    %13 = sbr.rel (0) target = $region13
  $region12: #{pipeline_bert_forward.12} parent=0 // pred_region
    _
  $region13: #{pipeline_bert_forward.12} parent=0 // pred_fallthru
    _
  %p15 = scmp.eq.s32.totalorder 0, 0
  // Predicated region
  $region14: #{pipeline_bert_forward.12} parent=0 // pred_check
    %p16 = pneg %p15
  $region15: #{pipeline_bert_forward.12} parent=0 // pred_check_branch
    %18 = sbr.rel (%p16) target = $region17
  $region16: #{pipeline_bert_forward.12} parent=0 // pred_region
    %vm19 = vcmask 785408
    %20 = vst.msk [vmem:[#allocation2] sm:$0xff] %vm19, 0.0
    %21 = vst.msk [vmem:[#allocation2 + $0x8] sm:$0xff] %vm19, 0.0
  $region17: #{pipeline_bert_forward.12} parent=0 // pred_fallthru
    _
  %v22 = vld [vmem:[#allocation2] sm:$0xff]
  %v23 = vld [vmem:[#allocation2 + $0x8] sm:$0xff]
  %v24 = vld [vmem:[%s0] sm:$0xf]
  %v25 = vld [vmem:[%s0 + $0x4] sm:$0xf]
  %v26 = vld [vmem:[%s1] sm:$0xf]
  %v27 = vld [vmem:[%s1 + $0x4] sm:$0xf]
  %v28 = vld [vmem:[%s1 + $0x8] sm:$0xf]
  %v29 = vld [vmem:[%s1 + $0xc] sm:$0xf]
  %v32 = vunpack.c.l.b16 %v24
  %v33 = vunpack.c.l.b16 %v25
  %v34 = vpack.c.b16 %v33, %v32
  %v39 = vunpack.c.l.b16 %v26
  %v40 = vunpack.c.l.b16 %v27
  %v41 = vunpack.c.l.b16 %v28
  %v42 = vunpack.c.l.b16 %v29
  %v43 = vpack.c.b16 %v40, %v39
  %v44 = vpack.c.b16 %v42, %v41
  %vm47 = vcmask 261120
  %v49 = vsel %vm47, %v34, 0
  %51 = vmatprep.subr.bf16.mxu0 0
  %52 = vmatpush1.bf16.msra.mxu0 0
  %53 = vmatprep.subr.bf16.mxu0 0
  %54 = vmatpush1.bf16.msra.mxu0 0
  %55 = vmatprep.subr.bf16.mxu0 0
  %56 = vmatpush1.bf16.msra.mxu0 0
  %57 = vmatprep.subr.bf16.mxu0 0
  %58 = vmatpush1.bf16.msra.mxu0 0
  %59 = vmatprep.subr.bf16.mxu0 0
  %60 = vmatpush1.bf16.msra.mxu0 0
  %61 = vmatprep.subr.bf16.mxu0 0
  %62 = vmatpush1.bf16.msra.mxu0 0
  %63 = vmatprep.subr.bf16.mxu0 0
  %64 = vmatpush1.bf16.msra.mxu0 %v44
  %65 = vmatprep.subr.bf16.mxu0 0
  %66 = vmatpush1.bf16.msra.mxu0 %v43
  %67 = vmatprep.subr.bf16.mxu0 0
  %68 = vmatpush2.bf16.msra.mxu0 0
  %69 = vmatprep.subr.bf16.mxu0 0
  %70 = vmatpush2.bf16.msra.mxu0 0
  %71 = vmatprep.subr.bf16.mxu0 0
  %72 = vmatpush2.bf16.msra.mxu0 0
  %73 = vmatprep.subr.bf16.mxu0 0
  %74 = vmatpush2.bf16.msra.mxu0 0
  %75 = vmatprep.subr.bf16.mxu0 0
  %76 = vmatpush2.bf16.msra.mxu0 0
  %77 = vmatprep.subr.bf16.mxu0 0
  %78 = vmatpush2.bf16.msra.mxu0 0
  %79 = vmatprep.subr.bf16.mxu0 0
  %80 = vmatpush2.bf16.msra.mxu0 0
  %81 = vmatprep.subr.bf16.mxu0 0
  %82 = vmatpush2.bf16.msra.mxu0 0
  %83 = vmatprep.mubr.bf16.mxu0 0
  %84 = vmatmul.mubr.bf16.gmra.mxu0 %v49
  %v85 = vpop.f32.mrf.mxu0
  %v86 = vadd.f32 0.0, %v85
  %v87 = vpop.f32.mrf.mxu0
  %v88 = vpop.f32.mrf.mxu0
  %v89 = vadd.f32 0.0, %v88
  %v90 = vpop.f32.mrf.mxu0
  %91 = vdwg.mxu0
  %v92 = vadd.f32 %v22, %v86
  %v93 = vadd.f32 %v23, %v89
  %vm94 = vcmask 785408
  %95 = vst.msk [vmem:[#allocation2] sm:$0xff] %vm94, %v92
  %96 = vst.msk [vmem:[#allocation2 + $0x8] sm:$0xff] %vm94, %v93
  // Predicated region
  $region18: #{pipeline_bert_forward.12} parent=0 // pred_check
    %p97 = pneg %p15
  $region19: #{pipeline_bert_forward.12} parent=0 // pred_check_branch
    %99 = sbr.rel (%p97) target = $region21
  $region20: #{pipeline_bert_forward.12} parent=0 // pred_region
    %v100 = vld [vmem:[#allocation2] sm:$0xff]
    %v101 = vld [vmem:[#allocation2 + $0x8] sm:$0xff]
    %v102 = vld [vmem:[%s2] sm:$0x1]
    %v103 = vunpack.c.l.bf16 %v102
    %v104 = vlaneseq
    %v105 = vshrl.u32 %v104, 7
    %v106 = vsub.s32 0, %v105
    %v107 = vrot.slane %v103, %v106
    %v108 = vadd.f32 %v100, %v107
    %v109 = vadd.f32 %v101, %v107
    %v110 = vpack.c.bf16 %v109, %v108
    %v112 = vunpack.c.l.b16 %v110
    %v113 = vunpack.c.h.b16 %v110
    %v114 = vpack.c.b16 %v112, %v112
    %v115 = vpack.c.b16 %v113, %v113
    %vm118 = vcmask 781312
    %119 = vst.msk [vmem:[%s3] sm:$0xf] %vm118, %v114
    %120 = vst.msk [vmem:[%s3 + $0x4] sm:$0xf] %vm118, %v115
  $region21: #{pipeline_bert_forward.12} parent=0 // pred_fallthru
    _
  // Predicated region
  $region22: #{pipeline_bert_forward.12} parent=0 // pred_check
    _
  $region23: #{pipeline_bert_forward.12} parent=0 // pred_check_branch
    %122 = sbr.rel (0) target = $region25
  $region24: #{pipeline_bert_forward.12} parent=0 // pred_region
    _
  $region25: #{pipeline_bert_forward.12} parent=0 // pred_fallthru
    _
  // Predicated region
  $region26: #{pipeline_bert_forward.12} parent=0 // pred_check
    _
  $region27: #{pipeline_bert_forward.12} parent=0 // pred_check_branch
    %124 = sbr.rel (0) target = $region29
  $region28: #{pipeline_bert_forward.12} parent=0 // pred_region
    _
  $region29: #{pipeline_bert_forward.12} parent=0 // pred_fallthru
    _

// kernel: pipeline_bert_forward.13
$region0: #{pipeline_bert_forward.13}
  #allocation0 [shape = 'u32[]', space=smem, size = 0x4, offset = 0x4, fixed_abs, tag = 'smem constant byte address 0x4 - core index']
  #allocation1 [shape = 'u32[144,128]{1,0:T(1,128)}', space=vmem, size = 0x12000, scoped, tag = 'internal scratch']
  #allocation2 [shape = 'f32[1,8,4]{2,1,0:T(8,128)}', space=vmem, size = 0x1000, scoped, tag = 'scratch operand']
  #allocation3 [shape = 'f32[1,8,4]{2,1,0:T(8,128)}', space=vmem, size = 0x1000, scoped, tag = 'scratch operand']
  #allocation4 [shape = 'f32[1,8,32]{2,1,0:T(8,128)}', space=vmem, size = 0x1000, scoped, tag = 'scratch operand']
  %s0 = inlined_call_operand.vmem [shape: bf16[2,8,96], index: 0, kind: input, shape index: {}, may-alias: {0,1}]
  %s1 = inlined_call_operand.vmem [shape: bf16[2,8,96], index: 1, kind: input, shape index: {}, may-alias: {0,1}]
  %s2 = inlined_call_operand.vmem [shape: bf16[2,8,32], index: 2, kind: output, shape index: {}]
  %s3 = sld [smem:[#allocation0]]
  $region49: #{pipeline_bert_forward.13} parent=0
    _
  %s5 = ssub.s32 1, %s3
  %s6 = scalar_select 0, %s5, %s3
  loop: start=0, step=1, limit=4
  $region2: #{pipeline_bert_forward.13} parent=0 // loop_pre_header
    _
  $region3: #{pipeline_bert_forward.13} parent=0 // loop_header
    %s8 = sphi 0, %s12
    %p9 = scmp.ge.s32.totalorder %s8, 4
    %s15 = sphi 0, %s27
    %s16 = sphi 0, %s23
    %s17 = sphi 0, %s15
    %s18 = sphi 0, %s16
    %s19 = sphi 0, %s17
    %s20 = sphi 0, %s18
    %s30 = sphi 0, %s32
    %s33 = sphi 0, %s30
    %s34 = sphi 0, %s33
    %s50 = sphi 0, %s34
    %s58 = sphi 0, %s60
    %s61 = sphi 0, %s58
    %s62 = sphi 0, %s61
    %s78 = sphi 0, %s62
    %s84 = sphi 0, %s86
    %s87 = sphi 0, %s84
    %s88 = sphi 0, %s87
    %s104 = sphi 0, %s88
  $region4: #{pipeline_bert_forward.13} parent=0 // loop_header_branch
    %11 = sbr.rel (%p9) target = $region8
  $region5: #{pipeline_bert_forward.13} parent=0 // loop_body
    %s13 = ssub.s32 %s8, 1
    %s14 = ssub.s32 %s8, 2
    %s21 = sadd.s32 1, %s16
    %p22 = scmp.ge.s32.totalorder %s21, 1
    %s23 = scalar_select %p22, 0, %s21
    %s24 = sadd.s32 1, %s15
    %s25 = scalar_select %p22, %s24, %s15
    %p26 = scmp.ge.s32.totalorder %s25, 2
    %s27 = scalar_select %p26, 0, %s25
    %s28 = ssub.s32 %s15, %s27
    %p29 = scmp.eq.s32.totalorder %s28, 0
    %s31 = sadd.s32 %s30, 1
    %s32 = scalar_select %p29, %s30, %s31
    %p35 = pneg %p29
    %p36 = scmp.eq.s32.totalorder %s8, 1
    %p37 = por %p35, %p36
    %p38 = scmp.ne.s32.totalorder %s30, %s33
    %p39 = scmp.eq.s32.totalorder %s8, 0
    %p40 = por %p38, %p39
    %p41 = scmp.ne.s32.totalorder %s30, %s33
    %p42 = scmp.eq.s32.totalorder %s13, 1
    %p43 = por %p41, %p42
    %p44 = scmp.ne.s32.totalorder %s33, %s34
    %p45 = scmp.eq.s32.totalorder %s13, 0
    %p46 = por %p44, %p45
    %p47 = scmp.ne.s32.totalorder %s33, %s34
    %p48 = scmp.eq.s32.totalorder %s14, 1
    %p49 = por %p47, %p48
    %p51 = scmp.ne.s32.totalorder %s34, %s50
    %p52 = scmp.eq.s32.totalorder %s14, 0
    %p53 = por %p51, %p52
    %s54 = ssub.s32 %s15, %s27
    %s55 = ssub.s32 %s16, %s23
    %s56 = sor.u32 %s54, %s55
    %p57 = scmp.eq.s32.totalorder %s56, 0
    %s59 = sadd.s32 %s58, 1
    %s60 = scalar_select %p57, %s58, %s59
    %p63 = pneg %p57
    %p64 = scmp.eq.s32.totalorder %s8, 1
    %p65 = por %p63, %p64
    %p66 = scmp.ne.s32.totalorder %s58, %s61
    %p67 = scmp.eq.s32.totalorder %s8, 0
    %p68 = por %p66, %p67
    %p69 = scmp.ne.s32.totalorder %s58, %s61
    %p70 = scmp.eq.s32.totalorder %s13, 1
    %p71 = por %p69, %p70
    %p72 = scmp.ne.s32.totalorder %s61, %s62
    %p73 = scmp.eq.s32.totalorder %s13, 0
    %p74 = por %p72, %p73
    %p75 = scmp.ne.s32.totalorder %s61, %s62
    %p76 = scmp.eq.s32.totalorder %s14, 1
    %p77 = por %p75, %p76
    %p79 = scmp.ne.s32.totalorder %s62, %s78
    %p80 = scmp.eq.s32.totalorder %s14, 0
    %p81 = por %p79, %p80
    %s82 = ssub.s32 %s15, %s27
    %p83 = scmp.eq.s32.totalorder %s82, 0
    %s85 = sadd.s32 %s84, 1
    %s86 = scalar_select %p83, %s84, %s85
    %p89 = pneg %p83
    %p90 = scmp.eq.s32.totalorder %s8, 1
    %p91 = por %p89, %p90
    %p92 = scmp.ne.s32.totalorder %s84, %s87
    %p93 = scmp.eq.s32.totalorder %s8, 0
    %p94 = por %p92, %p93
    %p95 = scmp.ne.s32.totalorder %s84, %s87
    %p96 = scmp.eq.s32.totalorder %s13, 1
    %p97 = por %p95, %p96
    %p98 = scmp.ne.s32.totalorder %s87, %s88
    %p99 = scmp.eq.s32.totalorder %s13, 0
    %p100 = por %p98, %p99
    %p101 = scmp.ne.s32.totalorder %s87, %s88
    %p102 = scmp.eq.s32.totalorder %s14, 1
    %p103 = por %p101, %p102
    %p105 = scmp.ne.s32.totalorder %s88, %s104
    %p106 = scmp.eq.s32.totalorder %s14, 0
    %p107 = por %p105, %p106
    %p108 = scmp.le.s32.totalorder 1, %s8
    %p109 = scmp.lt.s32.totalorder %s8, 3
    %p110 = pnand %p108, %p109
    %p111 = pneg %p110
    // Predicated region
    $region9: #{pipeline_bert_forward.13} parent=5 // pred_check
      _
    $region10: #{pipeline_bert_forward.13} parent=5 // pred_check_branch
      %113 = sbr.rel (%p110) target = $region12
    $region11: #{pipeline_bert_forward.13} parent=5 // pred_region
      %s114 = ssub.s32 %s8, 1
    $region12: #{pipeline_bert_forward.13} parent=5 // pred_fallthru
      _
    %p115 = scmp.lt.s32.totalorder %s8, 2
    // Predicated region
    $region13: #{pipeline_bert_forward.13} parent=5 // pred_check
      %p116 = pneg %p115
    $region14: #{pipeline_bert_forward.13} parent=5 // pred_check_branch
      %118 = sbr.rel (%p116) target = $region16
    $region15: #{pipeline_bert_forward.13} parent=5 // pred_region
      // Predicated region
      $region17: #{pipeline_bert_forward.13} parent=15 // pred_check
        %p119 = pneg %p40
      $region18: #{pipeline_bert_forward.13} parent=15 // pred_check_branch
        %121 = sbr.rel (%p119) target = $region20
      $region19: #{pipeline_bert_forward.13} parent=15 // pred_region
        %p122 = scmp.lt.s32.totalorder %s15, 1
        %s123 = scalar_select %p122, %s15, 1
        %s124 = smul.addr %s123, 4
        %s125 = scalar_lea.vmem %s0, %s124
      $region20: #{pipeline_bert_forward.13} parent=15 // pred_fallthru
        _
      // Predicated region
      $region21: #{pipeline_bert_forward.13} parent=15 // pred_check
        %p126 = pneg %p68
      $region22: #{pipeline_bert_forward.13} parent=15 // pred_check_branch
        %128 = sbr.rel (%p126) target = $region24
      $region23: #{pipeline_bert_forward.13} parent=15 // pred_region
        %p129 = scmp.lt.s32.totalorder %s15, 1
        %s130 = scalar_select %p129, %s15, 1
        %p131 = scmp.lt.s32.totalorder %s16, 0
        %s132 = scalar_select %p131, %s16, 0
        %s133 = sadd.s32 %s132, %s130
        %s134 = smul.addr %s133, 4
        %s135 = scalar_lea.vmem %s1, %s134
      $region24: #{pipeline_bert_forward.13} parent=15 // pred_fallthru
        _
    $region16: #{pipeline_bert_forward.13} parent=5 // pred_fallthru
      _
    %p136 = scmp.le.s32.totalorder 1, %s8
    %p137 = scmp.lt.s32.totalorder %s8, 3
    %p138 = pnand %p136, %p137
    %p139 = pneg %p138
    // Predicated region
    $region25: #{pipeline_bert_forward.13} parent=5 // pred_check
      _
    $region26: #{pipeline_bert_forward.13} parent=5 // pred_check_branch
      %141 = sbr.rel (%p138) target = $region28
    $region27: #{pipeline_bert_forward.13} parent=5 // pred_region
      %s142 = ssub.s32 %s8, 1
      %p143 = scmp.lt.s32.totalorder %s17, 1
      %s144 = scalar_select %p143, %s17, 1
      %s145 = smul.addr %s144, 4
      %s146 = scalar_lea.vmem %s0, %s145
      %p147 = pneg %p46
      %p148 = pneg %p43
      %p149 = scmp.lt.s32.totalorder %s17, 1
      %s150 = scalar_select %p149, %s17, 1
      %p151 = scmp.lt.s32.totalorder %s18, 0
      %s152 = scalar_select %p151, %s18, 0
      %s153 = sadd.s32 %s152, %s150
      %s154 = smul.addr %s153, 4
      %s155 = scalar_lea.vmem %s1, %s154
      %p156 = pneg %p74
      %p157 = pneg %p71
      %p158 = pneg %p100
      %p159 = pneg %p97
      %p160 = scmp.lt.s32.totalorder %s17, 1
      %s161 = scalar_select %p160, %s17, 1
      %s162 = smul.addr %s161, 4
      %s163 = scalar_lea.vmem %s2, %s162
      %p164 = scmp.lt.s32.totalorder %s17, 1
      %s165 = scalar_select %p164, %s17, 1
      %s166 = smul.addr %s165, 4
      %s167 = scalar_lea.vmem %s0, %s166
      %p168 = scmp.lt.s32.totalorder %s17, 1
      %s169 = scalar_select %p168, %s17, 1
      %p170 = scmp.lt.s32.totalorder %s18, 0
      %s171 = scalar_select %p170, %s18, 0
      %s172 = sadd.s32 %s171, %s169
      %s173 = smul.addr %s172, 4
      %s174 = scalar_lea.vmem %s1, %s173
      %p175 = scmp.lt.s32.totalorder %s17, 1
      %s176 = scalar_select %p175, %s17, 1
      %s177 = smul.addr %s176, 4
      %s178 = scalar_lea.vmem %s2, %s177
      %p181 = scmp.eq.s32.totalorder %s18, 0
      // Predicated region
      $region29: #{pipeline_bert_forward.13} parent=27 // pred_check
        %p182 = pneg %p181
      $region30: #{pipeline_bert_forward.13} parent=27 // pred_check_branch
        %184 = sbr.rel (%p182) target = $region32
      $region31: #{pipeline_bert_forward.13} parent=27 // pred_region
        %vm185 = vcmask 31744
        %186 = vst.msk [vmem:[#allocation2] sm:$0xff] %vm185, -inf
        %187 = vst.msk [vmem:[#allocation3] sm:$0xff] %vm185, 0.0
        %vm188 = vcmask 261120
        %189 = vst.msk [vmem:[#allocation4] sm:$0xff] %vm188, 0.0
      $region32: #{pipeline_bert_forward.13} parent=27 // pred_fallthru
        _
      %v190 = vld [vmem:[%s167] sm:$0xf]
      %v191 = vld [vmem:[%s174] sm:$0xf]
      %v192 = vmul.bf16 %v190, 1052065461
      %v194 = vunpack.c.l.b16 %v191
      %v195 = vpack.c.b16 %v194, %v194
      %196 = vrot.lane.b32.xlu0 %v195, 96
      %v197 = vpop.permute.xlu0 %196
      %vm198 = vcmask 64512
      %v200 = vsel %vm198, %v192, 0
      %v203 = vsel %vm198, %v197, 0
      %205 = vmatprep.subr.bf16.mxu0 0
      %206 = vmatpush1.bf16.xpose.msra.mxu0 0
      %207 = vmatprep.subr.bf16.mxu0 0
      %208 = vmatpush1.bf16.xpose.msra.mxu0 0
      %209 = vmatprep.subr.bf16.mxu0 0
      %210 = vmatpush1.bf16.xpose.msra.mxu0 0
      %211 = vmatprep.subr.bf16.mxu0 0
      %212 = vmatpush1.bf16.xpose.msra.mxu0 0
      %213 = vmatprep.subr.bf16.mxu0 0
      %214 = vmatpush1.bf16.xpose.msra.mxu0 0
      %215 = vmatprep.subr.bf16.mxu0 0
      %216 = vmatpush1.bf16.xpose.msra.mxu0 0
      %217 = vmatprep.subr.bf16.mxu0 0
      %218 = vmatpush1.bf16.xpose.msra.mxu0 0
      %219 = vmatprep.subr.bf16.mxu0 0
      %220 = vmatpush1.bf16.xpose.msra.mxu0 %v203
      %221 = vmatprep.subr.bf16.mxu0 0
      %222 = vmatpush2.bf16.xpose.msra.mxu0 0
      %223 = vmatprep.subr.bf16.mxu0 0
      %224 = vmatpush2.bf16.xpose.msra.mxu0 0
      %225 = vmatprep.subr.bf16.mxu0 0
      %226 = vmatpush2.bf16.xpose.msra.mxu0 0
      %227 = vmatprep.subr.bf16.mxu0 0
      %228 = vmatpush2.bf16.xpose.msra.mxu0 0
      %229 = vmatprep.subr.bf16.mxu0 0
      %230 = vmatpush2.bf16.xpose.msra.mxu0 0
      %231 = vmatprep.subr.bf16.mxu0 0
      %232 = vmatpush2.bf16.xpose.msra.mxu0 0
      %233 = vmatprep.subr.bf16.mxu0 0
      %234 = vmatpush2.bf16.xpose.msra.mxu0 0
      %235 = vmatprep.subr.bf16.mxu0 0
      %236 = vmatpush2.bf16.xpose.msra.mxu0 0
      %237 = vmatprep.mubr.bf16.mxu0 0
      %238 = vmatmul.mubr.bf16.gmra.mxu0 %v200
      %v239 = vpop.f32.mrf.mxu0
      %v240 = vadd.f32 0.0, %v239
      %v241 = vpop.f32.mrf.mxu0
      %v242 = vpop.f32.mrf.mxu0
      %v243 = vpop.f32.mrf.mxu0
      %244 = vdwg.mxu0
      %v245 = vld [vmem:[#allocation2] sm:$0xff]
      %v246 = vsel %vm198, %v240, -inf
      %247 = vmax.xlane.f32.xlu0 %v246
      %v248 = vpop.xlane.xlu0 %247
      %v249 = vmax.f32 %v245, %v248
      %v250 = vsub.f32 %v245, %v249
      %v251 = vmul.f32 %v250, 1.442695
      %v252 = vpow.pop %v251
      %254 = vset.pattern.permute.xlu0 0
      %255 = vperm.xlu0 %254, %v249
      %v256 = vpop.permute.xlu0 %255
      %v258 = vsub.f32 %v240, %v256
      %v259 = vmul.f32 %v258, 1.442695
      %v260 = vpow.pop %v259
      %v261 = vld [vmem:[#allocation3] sm:$0xff]
      %v262 = vmul.f32 %v252, %v261
      %v263 = vsel %vm198, %v260, 0.0
      %264 = vadd.xlane.f32.xlu0 %v263
      %v265 = vpop.xlane.xlu0 %264
      %v266 = vadd.f32 %v262, %v265
      %vm267 = vcmask 7168
      %268 = vst.msk [vmem:[#allocation3] sm:$0xff] %vm267, %v266
      %v269 = vpack.c.bf16 %v260, %v260
      %270 = vrot.lane.b32.xlu0 %v195, 64
      %v271 = vpop.permute.xlu0 %270
      %v273 = vsel %vm198, %v269, 0
      %vm275 = vcmask 1043456
      %v277 = vsel %vm275, %v271, 0
      %279 = vmatprep.subr.bf16.mxu0 0
      %280 = vmatpush1.bf16.msra.mxu0 0
      %281 = vmatprep.subr.bf16.mxu0 0
      %282 = vmatpush1.bf16.msra.mxu0 0
      %283 = vmatprep.subr.bf16.mxu0 0
      %284 = vmatpush1.bf16.msra.mxu0 0
      %285 = vmatprep.subr.bf16.mxu0 0
      %286 = vmatpush1.bf16.msra.mxu0 0
      %287 = vmatprep.subr.bf16.mxu0 0
      %288 = vmatpush1.bf16.msra.mxu0 0
      %289 = vmatprep.subr.bf16.mxu0 0
      %290 = vmatpush1.bf16.msra.mxu0 0
      %291 = vmatprep.subr.bf16.mxu0 0
      %292 = vmatpush1.bf16.msra.mxu0 0
      %293 = vmatprep.subr.bf16.mxu0 0
      %294 = vmatpush1.bf16.msra.mxu0 %v277
      %295 = vmatprep.subr.bf16.mxu0 0
      %296 = vmatpush2.bf16.msra.mxu0 0
      %297 = vmatprep.subr.bf16.mxu0 0
      %298 = vmatpush2.bf16.msra.mxu0 0
      %299 = vmatprep.subr.bf16.mxu0 0
      %300 = vmatpush2.bf16.msra.mxu0 0
      %301 = vmatprep.subr.bf16.mxu0 0
      %302 = vmatpush2.bf16.msra.mxu0 0
      %303 = vmatprep.subr.bf16.mxu0 0
      %304 = vmatpush2.bf16.msra.mxu0 0
      %305 = vmatprep.subr.bf16.mxu0 0
      %306 = vmatpush2.bf16.msra.mxu0 0
      %307 = vmatprep.subr.bf16.mxu0 0
      %308 = vmatpush2.bf16.msra.mxu0 0
      %309 = vmatprep.subr.bf16.mxu0 0
      %310 = vmatpush2.bf16.msra.mxu0 0
      %311 = vmatprep.mubr.bf16.mxu0 0
      %312 = vmatmul.mubr.bf16.gmra.mxu0 %v273
      %v313 = vpop.f32.mrf.mxu0
      %v314 = vadd.f32 0.0, %v313
      %v315 = vpop.f32.mrf.mxu0
      %v316 = vpop.f32.mrf.mxu0
      %v317 = vpop.f32.mrf.mxu0
      %318 = vdwg.mxu0
      %v319 = vld [vmem:[#allocation4] sm:$0xff]
      %321 = vset.pattern.permute.xlu0 0
      %322 = vperm.xlu0 %321, %v252
      %v323 = vpop.permute.xlu0 %322
      %v325 = vmul.f32 %v323, %v319
      %v326 = vadd.f32 %v325, %v314
      %327 = vst.msk [vmem:[#allocation4] sm:$0xff] %vm198, %v326
      %328 = vst.msk [vmem:[#allocation2] sm:$0xff] %vm267, %v249
      %v330 = vunpack.c.l.b16 %v192
      %v331 = vpack.c.b16 %v330, %v330
      %332 = vrot.lane.b32.xlu0 %v331, 120
      %v333 = vpop.permute.xlu0 %332
      %334 = vrot.lane.b32.xlu0 %v195, 88
      %v335 = vpop.permute.xlu0 %334
      %v337 = vsel %vm198, %v333, 0
      %v340 = vsel %vm198, %v335, 0
      %342 = vmatprep.subr.bf16.mxu0 0
      %343 = vmatpush1.bf16.xpose.msra.mxu0 0
      %344 = vmatprep.subr.bf16.mxu0 0
      %345 = vmatpush1.bf16.xpose.msra.mxu0 0
      %346 = vmatprep.subr.bf16.mxu0 0
      %347 = vmatpush1.bf16.xpose.msra.mxu0 0
      %348 = vmatprep.subr.bf16.mxu0 0
      %349 = vmatpush1.bf16.xpose.msra.mxu0 0
      %350 = vmatprep.subr.bf16.mxu0 0
      %351 = vmatpush1.bf16.xpose.msra.mxu0 0
      %352 = vmatprep.subr.bf16.mxu0 0
      %353 = vmatpush1.bf16.xpose.msra.mxu0 0
      %354 = vmatprep.subr.bf16.mxu0 0
      %355 = vmatpush1.bf16.xpose.msra.mxu0 0
      %356 = vmatprep.subr.bf16.mxu0 0
      %357 = vmatpush1.bf16.xpose.msra.mxu0 %v340
      %358 = vmatprep.subr.bf16.mxu0 0
      %359 = vmatpush2.bf16.xpose.msra.mxu0 0
      %360 = vmatprep.subr.bf16.mxu0 0
      %361 = vmatpush2.bf16.xpose.msra.mxu0 0
      %362 = vmatprep.subr.bf16.mxu0 0
      %363 = vmatpush2.bf16.xpose.msra.mxu0 0
      %364 = vmatprep.subr.bf16.mxu0 0
      %365 = vmatpush2.bf16.xpose.msra.mxu0 0
      %366 = vmatprep.subr.bf16.mxu0 0
      %367 = vmatpush2.bf16.xpose.msra.mxu0 0
      %368 = vmatprep.subr.bf16.mxu0 0
      %369 = vmatpush2.bf16.xpose.msra.mxu0 0
      %370 = vmatprep.subr.bf16.mxu0 0
      %371 = vmatpush2.bf16.xpose.msra.mxu0 0
      %372 = vmatprep.subr.bf16.mxu0 0
      %373 = vmatpush2.bf16.xpose.msra.mxu0 0
      %374 = vmatprep.mubr.bf16.mxu0 0
      %375 = vmatmul.mubr.bf16.gmra.mxu0 %v337
      %v376 = vpop.f32.mrf.mxu0
      %v377 = vadd.f32 0.0, %v376
      %v378 = vpop.f32.mrf.mxu0
      %v379 = vpop.f32.mrf.mxu0
      %v380 = vpop.f32.mrf.mxu0
      %381 = vdwg.mxu0
      %v382 = vld [vmem:[#allocation2] sm:$0xff]
      %v383 = vsel %vm198, %v377, -inf
      %384 = vmax.xlane.f32.xlu0 %v383
      %v385 = vpop.xlane.xlu0 %384
      %v386 = vmax.f32 %v382, %v385
      %v387 = vsub.f32 %v382, %v386
      %v388 = vmul.f32 %v387, 1.442695
      %v389 = vpow.pop %v388
      %391 = vset.pattern.permute.xlu0 1
      %392 = vperm.xlu0 %391, %v386
      %v393 = vpop.permute.xlu0 %392
      %v395 = vsub.f32 %v377, %v393
      %v396 = vmul.f32 %v395, 1.442695
      %v397 = vpow.pop %v396
      %v398 = vld [vmem:[#allocation3] sm:$0xff]
      %v399 = vmul.f32 %v389, %v398
      %v400 = vsel %vm198, %v397, 0.0
      %401 = vadd.xlane.f32.xlu0 %v400
      %v402 = vpop.xlane.xlu0 %401
      %v403 = vadd.f32 %v399, %v402
      %vm404 = vcmask 15368
      %405 = vst.msk [vmem:[#allocation3] sm:$0xff] %vm404, %v403
      %v406 = vpack.c.bf16 %v397, %v397
      %407 = vrot.lane.b32.xlu0 %v195, 56
      %v408 = vpop.permute.xlu0 %407
      %v410 = vsel %vm198, %v406, 0
      %v413 = vsel %vm275, %v408, 0
      %415 = vmatprep.subr.bf16.mxu0 0
      %416 = vmatpush1.bf16.msra.mxu0 0
      %417 = vmatprep.subr.bf16.mxu0 0
      %418 = vmatpush1.bf16.msra.mxu0 0
      %419 = vmatprep.subr.bf16.mxu0 0
      %420 = vmatpush1.bf16.msra.mxu0 0
      %421 = vmatprep.subr.bf16.mxu0 0
      %422 = vmatpush1.bf16.msra.mxu0 0
      %423 = vmatprep.subr.bf16.mxu0 0
      %424 = vmatpush1.bf16.msra.mxu0 0
      %425 = vmatprep.subr.bf16.mxu0 0
      %426 = vmatpush1.bf16.msra.mxu0 0
      %427 = vmatprep.subr.bf16.mxu0 0
      %428 = vmatpush1.bf16.msra.mxu0 0
      %429 = vmatprep.subr.bf16.mxu0 0
      %430 = vmatpush1.bf16.msra.mxu0 %v413
      %431 = vmatprep.subr.bf16.mxu0 0
      %432 = vmatpush2.bf16.msra.mxu0 0
      %433 = vmatprep.subr.bf16.mxu0 0
      %434 = vmatpush2.bf16.msra.mxu0 0
      %435 = vmatprep.subr.bf16.mxu0 0
      %436 = vmatpush2.bf16.msra.mxu0 0
      %437 = vmatprep.subr.bf16.mxu0 0
      %438 = vmatpush2.bf16.msra.mxu0 0
      %439 = vmatprep.subr.bf16.mxu0 0
      %440 = vmatpush2.bf16.msra.mxu0 0
      %441 = vmatprep.subr.bf16.mxu0 0
      %442 = vmatpush2.bf16.msra.mxu0 0
      %443 = vmatprep.subr.bf16.mxu0 0
      %444 = vmatpush2.bf16.msra.mxu0 0
      %445 = vmatprep.subr.bf16.mxu0 0
      %446 = vmatpush2.bf16.msra.mxu0 0
      %447 = vmatprep.mubr.bf16.mxu0 0
      %448 = vmatmul.mubr.bf16.gmra.mxu0 %v410
      %v449 = vpop.f32.mrf.mxu0
      %v450 = vadd.f32 0.0, %v449
      %v451 = vpop.f32.mrf.mxu0
      %v452 = vpop.f32.mrf.mxu0
      %v453 = vpop.f32.mrf.mxu0
      %454 = vdwg.mxu0
      %v455 = vld [vmem:[#allocation4] sm:$0xff]
      %457 = vset.pattern.permute.xlu0 1
      %458 = vperm.xlu0 %457, %v389
      %v459 = vpop.permute.xlu0 %458
      %v461 = vmul.f32 %v459, %v455
      %463 = vrot.lane.b32.xlu0 %v450, 8
      %v464 = vpop.permute.xlu0 %463
      %v466 = vadd.f32 %v461, %v464
      %vm467 = vcmask 130112
      %468 = vst.msk [vmem:[#allocation4] sm:$0xff] %vm467, %v466
      %469 = vst.msk [vmem:[#allocation2] sm:$0xff] %vm404, %v386
      %470 = vrot.lane.b32.xlu0 %v331, 112
      %v471 = vpop.permute.xlu0 %470
      %472 = vrot.lane.b32.xlu0 %v195, 80
      %v473 = vpop.permute.xlu0 %472
      %v475 = vsel %vm198, %v471, 0
      %v478 = vsel %vm198, %v473, 0
      %480 = vmatprep.subr.bf16.mxu0 0
      %481 = vmatpush1.bf16.xpose.msra.mxu0 0
      %482 = vmatprep.subr.bf16.mxu0 0
      %483 = vmatpush1.bf16.xpose.msra.mxu0 0
      %484 = vmatprep.subr.bf16.mxu0 0
      %485 = vmatpush1.bf16.xpose.msra.mxu0 0
      %486 = vmatprep.subr.bf16.mxu0 0
      %487 = vmatpush1.bf16.xpose.msra.mxu0 0
      %488 = vmatprep.subr.bf16.mxu0 0
      %489 = vmatpush1.bf16.xpose.msra.mxu0 0
      %490 = vmatprep.subr.bf16.mxu0 0
      %491 = vmatpush1.bf16.xpose.msra.mxu0 0
      %492 = vmatprep.subr.bf16.mxu0 0
      %493 = vmatpush1.bf16.xpose.msra.mxu0 0
      %494 = vmatprep.subr.bf16.mxu0 0
      %495 = vmatpush1.bf16.xpose.msra.mxu0 %v478
      %496 = vmatprep.subr.bf16.mxu0 0
      %497 = vmatpush2.bf16.xpose.msra.mxu0 0
      %498 = vmatprep.subr.bf16.mxu0 0
      %499 = vmatpush2.bf16.xpose.msra.mxu0 0
      %500 = vmatprep.subr.bf16.mxu0 0
      %501 = vmatpush2.bf16.xpose.msra.mxu0 0
      %502 = vmatprep.subr.bf16.mxu0 0
      %503 = vmatpush2.bf16.xpose.msra.mxu0 0
      %504 = vmatprep.subr.bf16.mxu0 0
      %505 = vmatpush2.bf16.xpose.msra.mxu0 0
      %506 = vmatprep.subr.bf16.mxu0 0
      %507 = vmatpush2.bf16.xpose.msra.mxu0 0
      %508 = vmatprep.subr.bf16.mxu0 0
      %509 = vmatpush2.bf16.xpose.msra.mxu0 0
      %510 = vmatprep.subr.bf16.mxu0 0
      %511 = vmatpush2.bf16.xpose.msra.mxu0 0
      %512 = vmatprep.mubr.bf16.mxu0 0
      %513 = vmatmul.mubr.bf16.gmra.mxu0 %v475
      %v514 = vpop.f32.mrf.mxu0
      %v515 = vadd.f32 0.0, %v514
      %v516 = vpop.f32.mrf.mxu0
      %v517 = vpop.f32.mrf.mxu0
      %v518 = vpop.f32.mrf.mxu0
      %519 = vdwg.mxu0
      %v520 = vld [vmem:[#allocation2] sm:$0xff]
      %v521 = vsel %vm198, %v515, -inf
      %522 = vmax.xlane.f32.xlu0 %v521
      %v523 = vpop.xlane.xlu0 %522
      %v524 = vmax.f32 %v520, %v523
      %v525 = vsub.f32 %v520, %v524
      %v526 = vmul.f32 %v525, 1.442695
      %v527 = vpow.pop %v526
      %529 = vset.pattern.permute.xlu0 2
      %530 = vperm.xlu0 %529, %v524
      %v531 = vpop.permute.xlu0 %530
      %v533 = vsub.f32 %v515, %v531
      %v534 = vmul.f32 %v533, 1.442695
      %v535 = vpow.pop %v534
      %v536 = vld [vmem:[#allocation3] sm:$0xff]
      %v537 = vmul.f32 %v527, %v536
      %v538 = vsel %vm198, %v535, 0.0
      %539 = vadd.xlane.f32.xlu0 %v538
      %v540 = vpop.xlane.xlu0 %539
      %v541 = vadd.f32 %v537, %v540
      %vm542 = vcmask 23568
      %543 = vst.msk [vmem:[#allocation3] sm:$0xff] %vm542, %v541
      %v544 = vpack.c.bf16 %v535, %v535
      %545 = vrot.lane.b32.xlu0 %v195, 48
      %v546 = vpop.permute.xlu0 %545
      %v548 = vsel %vm198, %v544, 0
      %v551 = vsel %vm275, %v546, 0
      %553 = vmatprep.subr.bf16.mxu0 0
      %554 = vmatpush1.bf16.msra.mxu0 0
      %555 = vmatprep.subr.bf16.mxu0 0
      %556 = vmatpush1.bf16.msra.mxu0 0
      %557 = vmatprep.subr.bf16.mxu0 0
      %558 = vmatpush1.bf16.msra.mxu0 0
      %559 = vmatprep.subr.bf16.mxu0 0
      %560 = vmatpush1.bf16.msra.mxu0 0
      %561 = vmatprep.subr.bf16.mxu0 0
      %562 = vmatpush1.bf16.msra.mxu0 0
      %563 = vmatprep.subr.bf16.mxu0 0
      %564 = vmatpush1.bf16.msra.mxu0 0
      %565 = vmatprep.subr.bf16.mxu0 0
      %566 = vmatpush1.bf16.msra.mxu0 0
      %567 = vmatprep.subr.bf16.mxu0 0
      %568 = vmatpush1.bf16.msra.mxu0 %v551
      %569 = vmatprep.subr.bf16.mxu0 0
      %570 = vmatpush2.bf16.msra.mxu0 0
      %571 = vmatprep.subr.bf16.mxu0 0
      %572 = vmatpush2.bf16.msra.mxu0 0
      %573 = vmatprep.subr.bf16.mxu0 0
      %574 = vmatpush2.bf16.msra.mxu0 0
      %575 = vmatprep.subr.bf16.mxu0 0
      %576 = vmatpush2.bf16.msra.mxu0 0
      %577 = vmatprep.subr.bf16.mxu0 0
      %578 = vmatpush2.bf16.msra.mxu0 0
      %579 = vmatprep.subr.bf16.mxu0 0
      %580 = vmatpush2.bf16.msra.mxu0 0
      %581 = vmatprep.subr.bf16.mxu0 0
      %582 = vmatpush2.bf16.msra.mxu0 0
      %583 = vmatprep.subr.bf16.mxu0 0
      %584 = vmatpush2.bf16.msra.mxu0 0
      %585 = vmatprep.mubr.bf16.mxu0 0
      %586 = vmatmul.mubr.bf16.gmra.mxu0 %v548
      %v587 = vpop.f32.mrf.mxu0
      %v588 = vadd.f32 0.0, %v587
      %v589 = vpop.f32.mrf.mxu0
      %v590 = vpop.f32.mrf.mxu0
      %v591 = vpop.f32.mrf.mxu0
      %592 = vdwg.mxu0
      %v593 = vld [vmem:[#allocation4] sm:$0xff]
      %595 = vset.pattern.permute.xlu0 2
      %596 = vperm.xlu0 %595, %v527
      %v597 = vpop.permute.xlu0 %596
      %v599 = vmul.f32 %v597, %v593
      %601 = vrot.lane.b32.xlu0 %v588, 16
      %v602 = vpop.permute.xlu0 %601
      %v604 = vadd.f32 %v599, %v602
      %vm605 = vcmask 195712
      %606 = vst.msk [vmem:[#allocation4] sm:$0xff] %vm605, %v604
      %607 = vst.msk [vmem:[#allocation2] sm:$0xff] %vm542, %v524
      %608 = vrot.lane.b32.xlu0 %v331, 104
      %v609 = vpop.permute.xlu0 %608
      %610 = vrot.lane.b32.xlu0 %v195, 72
      %v611 = vpop.permute.xlu0 %610
      %v613 = vsel %vm198, %v609, 0
      %v616 = vsel %vm198, %v611, 0
      %618 = vmatprep.subr.bf16.mxu0 0
      %619 = vmatpush1.bf16.xpose.msra.mxu0 0
      %620 = vmatprep.subr.bf16.mxu0 0
      %621 = vmatpush1.bf16.xpose.msra.mxu0 0
      %622 = vmatprep.subr.bf16.mxu0 0
      %623 = vmatpush1.bf16.xpose.msra.mxu0 0
      %624 = vmatprep.subr.bf16.mxu0 0
      %625 = vmatpush1.bf16.xpose.msra.mxu0 0
      %626 = vmatprep.subr.bf16.mxu0 0
      %627 = vmatpush1.bf16.xpose.msra.mxu0 0
      %628 = vmatprep.subr.bf16.mxu0 0
      %629 = vmatpush1.bf16.xpose.msra.mxu0 0
      %630 = vmatprep.subr.bf16.mxu0 0
      %631 = vmatpush1.bf16.xpose.msra.mxu0 0
      %632 = vmatprep.subr.bf16.mxu0 0
      %633 = vmatpush1.bf16.xpose.msra.mxu0 %v616
      %634 = vmatprep.subr.bf16.mxu0 0
      %635 = vmatpush2.bf16.xpose.msra.mxu0 0
      %636 = vmatprep.subr.bf16.mxu0 0
      %637 = vmatpush2.bf16.xpose.msra.mxu0 0
      %638 = vmatprep.subr.bf16.mxu0 0
      %639 = vmatpush2.bf16.xpose.msra.mxu0 0
      %640 = vmatprep.subr.bf16.mxu0 0
      %641 = vmatpush2.bf16.xpose.msra.mxu0 0
      %642 = vmatprep.subr.bf16.mxu0 0
      %643 = vmatpush2.bf16.xpose.msra.mxu0 0
      %644 = vmatprep.subr.bf16.mxu0 0
      %645 = vmatpush2.bf16.xpose.msra.mxu0 0
      %646 = vmatprep.subr.bf16.mxu0 0
      %647 = vmatpush2.bf16.xpose.msra.mxu0 0
      %648 = vmatprep.subr.bf16.mxu0 0
      %649 = vmatpush2.bf16.xpose.msra.mxu0 0
      %650 = vmatprep.mubr.bf16.mxu0 0
      %651 = vmatmul.mubr.bf16.gmra.mxu0 %v613
      %v652 = vpop.f32.mrf.mxu0
      %v653 = vadd.f32 0.0, %v652
      %v654 = vpop.f32.mrf.mxu0
      %v655 = vpop.f32.mrf.mxu0
      %v656 = vpop.f32.mrf.mxu0
      %657 = vdwg.mxu0
      %v658 = vld [vmem:[#allocation2] sm:$0xff]
      %v659 = vsel %vm198, %v653, -inf
      %660 = vmax.xlane.f32.xlu0 %v659
      %v661 = vpop.xlane.xlu0 %660
      %v662 = vmax.f32 %v658, %v661
      %v663 = vsub.f32 %v658, %v662
      %v664 = vmul.f32 %v663, 1.442695
      %v665 = vpow.pop %v664
      %667 = vset.pattern.permute.xlu0 3
      %668 = vperm.xlu0 %667, %v662
      %v669 = vpop.permute.xlu0 %668
      %v671 = vsub.f32 %v653, %v669
      %v672 = vmul.f32 %v671, 1.442695
      %v673 = vpow.pop %v672
      %v674 = vld [vmem:[#allocation3] sm:$0xff]
      %v675 = vmul.f32 %v665, %v674
      %v676 = vsel %vm198, %v673, 0.0
      %677 = vadd.xlane.f32.xlu0 %v676
      %v678 = vpop.xlane.xlu0 %677
      %v679 = vadd.f32 %v675, %v678
      %vm680 = vcmask 31768
      %681 = vst.msk [vmem:[#allocation3] sm:$0xff] %vm680, %v679
      %v682 = vpack.c.bf16 %v673, %v673
      %683 = vrot.lane.b32.xlu0 %v195, 40
      %v684 = vpop.permute.xlu0 %683
      %v686 = vsel %vm198, %v682, 0
      %v689 = vsel %vm275, %v684, 0
      %691 = vmatprep.subr.bf16.mxu0 0
      %692 = vmatpush1.bf16.msra.mxu0 0
      %693 = vmatprep.subr.bf16.mxu0 0
      %694 = vmatpush1.bf16.msra.mxu0 0
      %695 = vmatprep.subr.bf16.mxu0 0
      %696 = vmatpush1.bf16.msra.mxu0 0
      %697 = vmatprep.subr.bf16.mxu0 0
      %698 = vmatpush1.bf16.msra.mxu0 0
      %699 = vmatprep.subr.bf16.mxu0 0
      %700 = vmatpush1.bf16.msra.mxu0 0
      %701 = vmatprep.subr.bf16.mxu0 0
      %702 = vmatpush1.bf16.msra.mxu0 0
      %703 = vmatprep.subr.bf16.mxu0 0
      %704 = vmatpush1.bf16.msra.mxu0 0
      %705 = vmatprep.subr.bf16.mxu0 0
      %706 = vmatpush1.bf16.msra.mxu0 %v689
      %707 = vmatprep.subr.bf16.mxu0 0
      %708 = vmatpush2.bf16.msra.mxu0 0
      %709 = vmatprep.subr.bf16.mxu0 0
      %710 = vmatpush2.bf16.msra.mxu0 0
      %711 = vmatprep.subr.bf16.mxu0 0
      %712 = vmatpush2.bf16.msra.mxu0 0
      %713 = vmatprep.subr.bf16.mxu0 0
      %714 = vmatpush2.bf16.msra.mxu0 0
      %715 = vmatprep.subr.bf16.mxu0 0
      %716 = vmatpush2.bf16.msra.mxu0 0
      %717 = vmatprep.subr.bf16.mxu0 0
      %718 = vmatpush2.bf16.msra.mxu0 0
      %719 = vmatprep.subr.bf16.mxu0 0
      %720 = vmatpush2.bf16.msra.mxu0 0
      %721 = vmatprep.subr.bf16.mxu0 0
      %722 = vmatpush2.bf16.msra.mxu0 0
      %723 = vmatprep.mubr.bf16.mxu0 0
      %724 = vmatmul.mubr.bf16.gmra.mxu0 %v686
      %v725 = vpop.f32.mrf.mxu0
      %v726 = vadd.f32 0.0, %v725
      %v727 = vpop.f32.mrf.mxu0
      %v728 = vpop.f32.mrf.mxu0
      %v729 = vpop.f32.mrf.mxu0
      %730 = vdwg.mxu0
      %v731 = vld [vmem:[#allocation4] sm:$0xff]
      %733 = vset.pattern.permute.xlu0 3
      %734 = vperm.xlu0 %733, %v665
      %v735 = vpop.permute.xlu0 %734
      %v737 = vmul.f32 %v735, %v731
      %739 = vrot.lane.b32.xlu0 %v726, 24
      %v740 = vpop.permute.xlu0 %739
      %v742 = vadd.f32 %v737, %v740
      %vm743 = vcmask 261312
      %744 = vst.msk [vmem:[#allocation4] sm:$0xff] %vm743, %v742
      %745 = vst.msk [vmem:[#allocation2] sm:$0xff] %vm680, %v662
      // Predicated region
      $region33: #{pipeline_bert_forward.13} parent=27 // pred_check
        %p746 = pneg %p181
      $region34: #{pipeline_bert_forward.13} parent=27 // pred_check_branch
        %748 = sbr.rel (%p746) target = $region36
      $region35: #{pipeline_bert_forward.13} parent=27 // pred_region
        %v749 = vld [vmem:[#allocation3] sm:$0xff]
        %v750 = vrcp.pop %v749
        %v751 = vld [vmem:[#allocation4] sm:$0xff]
        %753 = vset.pattern.permute.xlu0 0
        %754 = vperm.xlu0 %753, %v750
        %v755 = vpop.permute.xlu0 %754
        %v757 = vmul.f32 %v751, %v755
        %v758 = vpack.c.bf16 %v757, %v757
        %vm759 = vcmask 60416
        %760 = vst.msk [vmem:[%s178] sm:$0xf] %vm759, %v758
        %v761 = vld [vmem:[#allocation3] sm:$0xff]
        %v762 = vrcp.pop %v761
        %v763 = vld [vmem:[#allocation4] sm:$0xff]
        %765 = vset.pattern.permute.xlu0 1
        %766 = vperm.xlu0 %765, %v762
        %v767 = vpop.permute.xlu0 %766
        %v769 = vmul.f32 %v763, %v767
        %v770 = vpack.c.bf16 %v769, %v769
        %vm771 = vcmask 126016
        %772 = vst.msk [vmem:[%s178] sm:$0xf] %vm771, %v770
        %v773 = vld [vmem:[#allocation3] sm:$0xff]
        %v774 = vrcp.pop %v773
        %v775 = vld [vmem:[#allocation4] sm:$0xff]
        %777 = vset.pattern.permute.xlu0 2
        %778 = vperm.xlu0 %777, %v774
        %v779 = vpop.permute.xlu0 %778
        %v781 = vmul.f32 %v775, %v779
        %v782 = vpack.c.bf16 %v781, %v781
        %vm783 = vcmask 191616
        %784 = vst.msk [vmem:[%s178] sm:$0xf] %vm783, %v782
        %v785 = vld [vmem:[#allocation3] sm:$0xff]
        %v786 = vrcp.pop %v785
        %v787 = vld [vmem:[#allocation4] sm:$0xff]
        %789 = vset.pattern.permute.xlu0 3
        %790 = vperm.xlu0 %789, %v786
        %v791 = vpop.permute.xlu0 %790
        %v793 = vmul.f32 %v787, %v791
        %v794 = vpack.c.bf16 %v793, %v793
        %vm795 = vcmask 257216
        %796 = vst.msk [vmem:[%s178] sm:$0xf] %vm795, %v794
      $region36: #{pipeline_bert_forward.13} parent=27 // pred_fallthru
        _
      %p797 = scmp.lt.s32.totalorder %s17, 1
      %s798 = scalar_select %p797, %s17, 1
      %s799 = smul.addr %s798, 4
      %s800 = scalar_lea.vmem %s2, %s799
      // Predicated region
      $region37: #{pipeline_bert_forward.13} parent=27 // pred_check
        %p801 = pneg %p97
      $region38: #{pipeline_bert_forward.13} parent=27 // pred_check_branch
        %803 = sbr.rel (%p801) target = $region40
      $region39: #{pipeline_bert_forward.13} parent=27 // pred_region
        _
      $region40: #{pipeline_bert_forward.13} parent=27 // pred_fallthru
        _
    $region28: #{pipeline_bert_forward.13} parent=5 // pred_fallthru
      _
    %p804 = scmp.le.s32.totalorder 2, %s8
    // Predicated region
    $region41: #{pipeline_bert_forward.13} parent=5 // pred_check
      %p805 = pneg %p804
    $region42: #{pipeline_bert_forward.13} parent=5 // pred_check_branch
      %807 = sbr.rel (%p805) target = $region44
    $region43: #{pipeline_bert_forward.13} parent=5 // pred_region
      %s808 = ssub.s32 %s8, 2
      // Predicated region
      $region45: #{pipeline_bert_forward.13} parent=43 // pred_check
        %p809 = pneg %p103
      $region46: #{pipeline_bert_forward.13} parent=43 // pred_check_branch
        %811 = sbr.rel (%p809) target = $region48
      $region47: #{pipeline_bert_forward.13} parent=43 // pred_region
        %p812 = scmp.lt.s32.totalorder %s19, 1
        %s813 = scalar_select %p812, %s19, 1
        %s814 = smul.addr %s813, 4
        %s815 = scalar_lea.vmem %s2, %s814
      $region48: #{pipeline_bert_forward.13} parent=43 // pred_fallthru
        _
    $region44: #{pipeline_bert_forward.13} parent=5 // pred_fallthru
      _
  $region6: #{pipeline_bert_forward.13} parent=0 // loop_footer
    %s12 = sadd.s32 1, %s8
  $region7: #{pipeline_bert_forward.13} parent=0 // loop_footer_branch
    %7 = sbr.rel target = $region3
  $region8: #{pipeline_bert_forward.13} parent=0 // loop_exit
    _

// kernel: pipeline_bert_forward.15
$region0: #{pipeline_bert_forward.15}
  #allocation0 [shape = 'u32[]', space=smem, size = 0x4, offset = 0x4, fixed_abs, tag = 'smem constant byte address 0x4 - core index']
  #allocation1 [shape = 'u32[144,128]{1,0:T(1,128)}', space=vmem, size = 0x12000, scoped, tag = 'internal scratch']
  #allocation2 [shape = 'f32[16,128]{1,0:T(8,128)}', space=vmem, size = 0x2000, scoped, tag = 'scratch operand']
  %s0 = inlined_call_operand.vmem [shape: bf16[16,32], index: 0, kind: input, shape index: {}]
  %s1 = inlined_call_operand.vmem [shape: bf16[32,128], index: 1, kind: input, shape index: {}]
  %s2 = inlined_call_operand.vmem [shape: bf16[1,128], index: 2, kind: input, shape index: {}]
  %s3 = inlined_call_operand.vmem [shape: bf16[16,128], index: 3, kind: output, shape index: {}]
  %s4 = sld [smem:[#allocation0]]
  $region30: #{pipeline_bert_forward.15} parent=0
    _
  %s6 = ssub.s32 1, %s4
  %s7 = scalar_select 0, %s6, %s4
  // Predicated region
  $region2: #{pipeline_bert_forward.15} parent=0 // pred_check
    _
  $region3: #{pipeline_bert_forward.15} parent=0 // pred_check_branch
    %9 = sbr.rel (0) target = $region5
  $region4: #{pipeline_bert_forward.15} parent=0 // pred_region
    _
  $region5: #{pipeline_bert_forward.15} parent=0 // pred_fallthru
    _
  // Predicated region
  $region6: #{pipeline_bert_forward.15} parent=0 // pred_check
    _
  $region7: #{pipeline_bert_forward.15} parent=0 // pred_check_branch
    %11 = sbr.rel (0) target = $region9
  $region8: #{pipeline_bert_forward.15} parent=0 // pred_region
    _
  $region9: #{pipeline_bert_forward.15} parent=0 // pred_fallthru
    _
  // Predicated region
  $region10: #{pipeline_bert_forward.15} parent=0 // pred_check
    _
  $region11: #{pipeline_bert_forward.15} parent=0 // pred_check_branch
    %13 = sbr.rel (0) target = $region13
  $region12: #{pipeline_bert_forward.15} parent=0 // pred_region
    _
  $region13: #{pipeline_bert_forward.15} parent=0 // pred_fallthru
    _
  %p15 = scmp.eq.s32.totalorder 0, 0
  // Predicated region
  $region14: #{pipeline_bert_forward.15} parent=0 // pred_check
    %p16 = pneg %p15
  $region15: #{pipeline_bert_forward.15} parent=0 // pred_check_branch
    %18 = sbr.rel (%p16) target = $region17
  $region16: #{pipeline_bert_forward.15} parent=0 // pred_region
    %19 = vst [vmem:[#allocation2] sm:$0xff] 0.0
    %20 = vst [vmem:[#allocation2 + $0x8] sm:$0xff] 0.0
  $region17: #{pipeline_bert_forward.15} parent=0 // pred_fallthru
    _
  %v21 = vld [vmem:[#allocation2] sm:$0xff]
  %v22 = vld [vmem:[#allocation2 + $0x8] sm:$0xff]
  %v23 = vld [vmem:[%s0] sm:$0xf]
  %v24 = vld [vmem:[%s0 + $0x4] sm:$0xf]
  %v25 = vld [vmem:[%s1] sm:$0xf]
  %v26 = vld [vmem:[%s1 + $0x4] sm:$0xf]
  %v27 = vld [vmem:[%s1 + $0x8] sm:$0xf]
  %v28 = vld [vmem:[%s1 + $0xc] sm:$0xf]
  %v31 = vunpack.c.l.b16 %v23
  %v32 = vunpack.c.l.b16 %v24
  %v33 = vpack.c.b16 %v32, %v31
  %v38 = vunpack.c.l.b16 %v25
  %v39 = vunpack.c.l.b16 %v26
  %v40 = vunpack.c.l.b16 %v27
  %v41 = vunpack.c.l.b16 %v28
  %v42 = vpack.c.b16 %v39, %v38
  %v43 = vpack.c.b16 %v41, %v40
  %vm46 = vcmask 261120
  %v48 = vsel %vm46, %v33, 0
  %50 = vmatprep.subr.bf16.mxu0 0
  %51 = vmatpush1.bf16.msra.mxu0 0
  %52 = vmatprep.subr.bf16.mxu0 0
  %53 = vmatpush1.bf16.msra.mxu0 0
  %54 = vmatprep.subr.bf16.mxu0 0
  %55 = vmatpush1.bf16.msra.mxu0 0
  %56 = vmatprep.subr.bf16.mxu0 0
  %57 = vmatpush1.bf16.msra.mxu0 0
  %58 = vmatprep.subr.bf16.mxu0 0
  %59 = vmatpush1.bf16.msra.mxu0 0
  %60 = vmatprep.subr.bf16.mxu0 0
  %61 = vmatpush1.bf16.msra.mxu0 0
  %62 = vmatprep.subr.bf16.mxu0 0
  %63 = vmatpush1.bf16.msra.mxu0 %v43
  %64 = vmatprep.subr.bf16.mxu0 0
  %65 = vmatpush1.bf16.msra.mxu0 %v42
  %66 = vmatprep.subr.bf16.mxu0 0
  %67 = vmatpush2.bf16.msra.mxu0 0
  %68 = vmatprep.subr.bf16.mxu0 0
  %69 = vmatpush2.bf16.msra.mxu0 0
  %70 = vmatprep.subr.bf16.mxu0 0
  %71 = vmatpush2.bf16.msra.mxu0 0
  %72 = vmatprep.subr.bf16.mxu0 0
  %73 = vmatpush2.bf16.msra.mxu0 0
  %74 = vmatprep.subr.bf16.mxu0 0
  %75 = vmatpush2.bf16.msra.mxu0 0
  %76 = vmatprep.subr.bf16.mxu0 0
  %77 = vmatpush2.bf16.msra.mxu0 0
  %78 = vmatprep.subr.bf16.mxu0 0
  %79 = vmatpush2.bf16.msra.mxu0 0
  %80 = vmatprep.subr.bf16.mxu0 0
  %81 = vmatpush2.bf16.msra.mxu0 0
  %82 = vmatprep.mubr.bf16.mxu0 0
  %83 = vmatmul.mubr.bf16.gmra.mxu0 %v48
  %v84 = vpop.f32.mrf.mxu0
  %v85 = vadd.f32 0.0, %v84
  %v86 = vpop.f32.mrf.mxu0
  %v87 = vpop.f32.mrf.mxu0
  %v88 = vadd.f32 0.0, %v87
  %v89 = vpop.f32.mrf.mxu0
  %90 = vdwg.mxu0
  %v91 = vadd.f32 %v21, %v85
  %v92 = vadd.f32 %v22, %v88
  %93 = vst [vmem:[#allocation2] sm:$0xff] %v91
  %94 = vst [vmem:[#allocation2 + $0x8] sm:$0xff] %v92
  // Predicated region
  $region18: #{pipeline_bert_forward.15} parent=0 // pred_check
    %p95 = pneg %p15
  $region19: #{pipeline_bert_forward.15} parent=0 // pred_check_branch
    %97 = sbr.rel (%p95) target = $region21
  $region20: #{pipeline_bert_forward.15} parent=0 // pred_region
    %v98 = vld [vmem:[#allocation2] sm:$0xff]
    %v99 = vld [vmem:[#allocation2 + $0x8] sm:$0xff]
    %v100 = vld [vmem:[%s2] sm:$0x1]
    %v101 = vunpack.c.l.bf16 %v100
    %v102 = vlaneseq
    %v103 = vshrl.u32 %v102, 7
    %v104 = vsub.s32 0, %v103
    %v105 = vrot.slane %v101, %v104
    %v106 = vadd.f32 %v98, %v105
    %v107 = vadd.f32 %v99, %v105
    %v108 = vmul.f32 %v106, 0.5
    %v109 = vmul.f32 %v107, 0.5
    %v110 = vmul.f32 %v106, 0.7978846
    %v111 = vmul.f32 %v107, 0.7978846
    %v112 = vmul.f32 %v106, 0.044715
    %v113 = vmul.f32 %v107, 0.044715
    %v114 = vmul.f32 %v112, %v106
    %v115 = vmul.f32 %v113, %v107
    %v116 = vadd.f32 %v114, 1.0
    %v117 = vadd.f32 %v115, 1.0
    %v118 = vmul.f32 %v110, %v116
    %v119 = vmul.f32 %v111, %v117
    %v120 = vtanh.pop %v118
    %v121 = vtanh.pop %v119
    %v122 = vadd.f32 %v120, 1.0
    %v123 = vadd.f32 %v121, 1.0
    %v124 = vmul.f32 %v108, %v122
    %v125 = vmul.f32 %v109, %v123
    %v126 = vpack.c.bf16 %v125, %v124
    %v128 = vunpack.c.l.b16 %v126
    %v129 = vunpack.c.h.b16 %v126
    %v130 = vpack.c.b16 %v128, %v128
    %v131 = vpack.c.b16 %v129, %v129
    %134 = vst [vmem:[%s3] sm:$0xf] %v130
    %135 = vst [vmem:[%s3 + $0x4] sm:$0xf] %v131
  $region21: #{pipeline_bert_forward.15} parent=0 // pred_fallthru
    _
  // Predicated region
  $region22: #{pipeline_bert_forward.15} parent=0 // pred_check
    _
  $region23: #{pipeline_bert_forward.15} parent=0 // pred_check_branch
    %137 = sbr.rel (0) target = $region25
  $region24: #{pipeline_bert_forward.15} parent=0 // pred_region
    _
  $region25: #{pipeline_bert_forward.15} parent=0 // pred_fallthru
    _
  // Predicated region
  $region26: #{pipeline_bert_forward.15} parent=0 // pred_check
    _
  $region27: #{pipeline_bert_forward.15} parent=0 // pred_check_branch
    %139 = sbr.rel (0) target = $region29
  $region28: #{pipeline_bert_forward.15} parent=0 // pred_region
    _
  $region29: #{pipeline_bert_forward.15} parent=0 // pred_fallthru
    _

// kernel: pipeline_bert_forward.16
$region0: #{pipeline_bert_forward.16}
  #allocation0 [shape = 'u32[]', space=smem, size = 0x4, offset = 0x4, fixed_abs, tag = 'smem constant byte address 0x4 - core index']
  #allocation1 [shape = 'u32[144,128]{1,0:T(1,128)}', space=vmem, size = 0x12000, scoped, tag = 'internal scratch']
  #allocation2 [shape = 'f32[16,32]{1,0:T(8,128)}', space=vmem, size = 0x2000, scoped, tag = 'scratch operand']
  %s0 = inlined_call_operand.vmem [shape: bf16[16,128], index: 0, kind: input, shape index: {}]
  %s1 = inlined_call_operand.vmem [shape: bf16[128,32], index: 1, kind: input, shape index: {}]
  %s2 = inlined_call_operand.vmem [shape: bf16[1,32], index: 2, kind: input, shape index: {}]
  %s3 = inlined_call_operand.vmem [shape: bf16[16,32], index: 3, kind: input, shape index: {}]
  %s4 = inlined_call_operand.vmem [shape: bf16[1,32], index: 4, kind: input, shape index: {}]
  %s5 = inlined_call_operand.vmem [shape: bf16[1,32], index: 5, kind: input, shape index: {}]
  %s6 = inlined_call_operand.vmem [shape: bf16[16,32], index: 6, kind: output, shape index: {}]
  %s7 = sld [smem:[#allocation0]]
  $region42: #{pipeline_bert_forward.16} parent=0
    _
  %s9 = ssub.s32 1, %s7
  %s10 = scalar_select 0, %s9, %s7
  // Predicated region
  $region2: #{pipeline_bert_forward.16} parent=0 // pred_check
    _
  $region3: #{pipeline_bert_forward.16} parent=0 // pred_check_branch
    %12 = sbr.rel (0) target = $region5
  $region4: #{pipeline_bert_forward.16} parent=0 // pred_region
    _
  $region5: #{pipeline_bert_forward.16} parent=0 // pred_fallthru
    _
  // Predicated region
  $region6: #{pipeline_bert_forward.16} parent=0 // pred_check
    _
  $region7: #{pipeline_bert_forward.16} parent=0 // pred_check_branch
    %14 = sbr.rel (0) target = $region9
  $region8: #{pipeline_bert_forward.16} parent=0 // pred_region
    _
  $region9: #{pipeline_bert_forward.16} parent=0 // pred_fallthru
    _
  // Predicated region
  $region10: #{pipeline_bert_forward.16} parent=0 // pred_check
    _
  $region11: #{pipeline_bert_forward.16} parent=0 // pred_check_branch
    %16 = sbr.rel (0) target = $region13
  $region12: #{pipeline_bert_forward.16} parent=0 // pred_region
    _
  $region13: #{pipeline_bert_forward.16} parent=0 // pred_fallthru
    _
  // Predicated region
  $region14: #{pipeline_bert_forward.16} parent=0 // pred_check
    _
  $region15: #{pipeline_bert_forward.16} parent=0 // pred_check_branch
    %18 = sbr.rel (0) target = $region17
  $region16: #{pipeline_bert_forward.16} parent=0 // pred_region
    _
  $region17: #{pipeline_bert_forward.16} parent=0 // pred_fallthru
    _
  // Predicated region
  $region18: #{pipeline_bert_forward.16} parent=0 // pred_check
    _
  $region19: #{pipeline_bert_forward.16} parent=0 // pred_check_branch
    %20 = sbr.rel (0) target = $region21
  $region20: #{pipeline_bert_forward.16} parent=0 // pred_region
    _
  $region21: #{pipeline_bert_forward.16} parent=0 // pred_fallthru
    _
  // Predicated region
  $region22: #{pipeline_bert_forward.16} parent=0 // pred_check
    _
  $region23: #{pipeline_bert_forward.16} parent=0 // pred_check_branch
    %22 = sbr.rel (0) target = $region25
  $region24: #{pipeline_bert_forward.16} parent=0 // pred_region
    _
  $region25: #{pipeline_bert_forward.16} parent=0 // pred_fallthru
    _
  %p24 = scmp.eq.s32.totalorder 0, 0
  // Predicated region
  $region26: #{pipeline_bert_forward.16} parent=0 // pred_check
    %p25 = pneg %p24
  $region27: #{pipeline_bert_forward.16} parent=0 // pred_check_branch
    %27 = sbr.rel (%p25) target = $region29
  $region28: #{pipeline_bert_forward.16} parent=0 // pred_region
    %vm28 = vcmask 261120
    %29 = vst.msk [vmem:[#allocation2] sm:$0xff] %vm28, 0.0
    %30 = vst.msk [vmem:[#allocation2 + $0x8] sm:$0xff] %vm28, 0.0
  $region29: #{pipeline_bert_forward.16} parent=0 // pred_fallthru
    _
  %v31 = vld [vmem:[#allocation2] sm:$0xff]
  %v32 = vld [vmem:[#allocation2 + $0x8] sm:$0xff]
  %v33 = vld [vmem:[%s0] sm:$0xf]
  %v34 = vld [vmem:[%s0 + $0x4] sm:$0xf]
  %v35 = vld [vmem:[%s1] sm:$0xf]
  %v36 = vld [vmem:[%s1 + $0x4] sm:$0xf]
  %v37 = vld [vmem:[%s1 + $0x8] sm:$0xf]
  %v38 = vld [vmem:[%s1 + $0xc] sm:$0xf]
  %v39 = vld [vmem:[%s1 + $0x10] sm:$0xf]
  %v40 = vld [vmem:[%s1 + $0x14] sm:$0xf]
  %v41 = vld [vmem:[%s1 + $0x18] sm:$0xf]
  %v42 = vld [vmem:[%s1 + $0x1c] sm:$0xf]
  %v43 = vld [vmem:[%s1 + $0x20] sm:$0xf]
  %v44 = vld [vmem:[%s1 + $0x24] sm:$0xf]
  %v45 = vld [vmem:[%s1 + $0x28] sm:$0xf]
  %v46 = vld [vmem:[%s1 + $0x2c] sm:$0xf]
  %v47 = vld [vmem:[%s1 + $0x30] sm:$0xf]
  %v48 = vld [vmem:[%s1 + $0x34] sm:$0xf]
  %v49 = vld [vmem:[%s1 + $0x38] sm:$0xf]
  %v50 = vld [vmem:[%s1 + $0x3c] sm:$0xf]
  %v53 = vunpack.c.l.b16 %v33
  %v54 = vunpack.c.l.b16 %v34
  %v55 = vpack.c.b16 %v54, %v53
  %v73 = vunpack.c.l.b16 %v35
  %v74 = vunpack.c.l.b16 %v36
  %v75 = vunpack.c.l.b16 %v37
  %v76 = vunpack.c.l.b16 %v38
  %v77 = vunpack.c.l.b16 %v39
  %v78 = vunpack.c.l.b16 %v40
  %v79 = vunpack.c.l.b16 %v41
  %v80 = vunpack.c.l.b16 %v42
  %v81 = vunpack.c.l.b16 %v43
  %v82 = vunpack.c.l.b16 %v44
  %v83 = vunpack.c.l.b16 %v45
  %v84 = vunpack.c.l.b16 %v46
  %v85 = vunpack.c.l.b16 %v47
  %v86 = vunpack.c.l.b16 %v48
  %v87 = vunpack.c.l.b16 %v49
  %v88 = vunpack.c.l.b16 %v50
  %v89 = vpack.c.b16 %v74, %v73
  %v90 = vpack.c.b16 %v76, %v75
  %v91 = vpack.c.b16 %v78, %v77
  %v92 = vpack.c.b16 %v80, %v79
  %v93 = vpack.c.b16 %v82, %v81
  %v94 = vpack.c.b16 %v84, %v83
  %v95 = vpack.c.b16 %v86, %v85
  %v96 = vpack.c.b16 %v88, %v87
  %105 = vmatprep.subr.bf16.mxu0 0
  %106 = vmatpush1.bf16.msra.mxu0 %v96
  %107 = vmatprep.subr.bf16.mxu0 0
  %108 = vmatpush1.bf16.msra.mxu0 %v95
  %109 = vmatprep.subr.bf16.mxu0 0
  %110 = vmatpush1.bf16.msra.mxu0 %v94
  %111 = vmatprep.subr.bf16.mxu0 0
  %112 = vmatpush1.bf16.msra.mxu0 %v93
  %113 = vmatprep.subr.bf16.mxu0 0
  %114 = vmatpush1.bf16.msra.mxu0 %v92
  %115 = vmatprep.subr.bf16.mxu0 0
  %116 = vmatpush1.bf16.msra.mxu0 %v91
  %117 = vmatprep.subr.bf16.mxu0 0
  %118 = vmatpush1.bf16.msra.mxu0 %v90
  %119 = vmatprep.subr.bf16.mxu0 0
  %120 = vmatpush1.bf16.msra.mxu0 %v89
  %121 = vmatprep.subr.bf16.mxu0 0
  %122 = vmatpush2.bf16.msra.mxu0 0
  %123 = vmatprep.subr.bf16.mxu0 0
  %124 = vmatpush2.bf16.msra.mxu0 0
  %125 = vmatprep.subr.bf16.mxu0 0
  %126 = vmatpush2.bf16.msra.mxu0 0
  %127 = vmatprep.subr.bf16.mxu0 0
  %128 = vmatpush2.bf16.msra.mxu0 0
  %129 = vmatprep.subr.bf16.mxu0 0
  %130 = vmatpush2.bf16.msra.mxu0 0
  %131 = vmatprep.subr.bf16.mxu0 0
  %132 = vmatpush2.bf16.msra.mxu0 0
  %133 = vmatprep.subr.bf16.mxu0 0
  %134 = vmatpush2.bf16.msra.mxu0 0
  %135 = vmatprep.subr.bf16.mxu0 0
  %136 = vmatpush2.bf16.msra.mxu0 0
  %137 = vmatprep.mubr.bf16.mxu0 0
  %138 = vmatmul.mubr.bf16.gmra.mxu0 %v55
  %v139 = vpop.f32.mrf.mxu0
  %v140 = vadd.f32 0.0, %v139
  %v141 = vpop.f32.mrf.mxu0
  %v142 = vpop.f32.mrf.mxu0
  %v143 = vadd.f32 0.0, %v142
  %v144 = vpop.f32.mrf.mxu0
  %145 = vdwg.mxu0
  %v146 = vadd.f32 %v31, %v140
  %v147 = vadd.f32 %v32, %v143
  %vm148 = vcmask 261120
  %149 = vst.msk [vmem:[#allocation2] sm:$0xff] %vm148, %v146
  %150 = vst.msk [vmem:[#allocation2 + $0x8] sm:$0xff] %vm148, %v147
  // Predicated region
  $region30: #{pipeline_bert_forward.16} parent=0 // pred_check
    %p151 = pneg %p24
  $region31: #{pipeline_bert_forward.16} parent=0 // pred_check_branch
    %153 = sbr.rel (%p151) target = $region33
  $region32: #{pipeline_bert_forward.16} parent=0 // pred_region
    %v154 = vld [vmem:[#allocation2] sm:$0xff]
    %v155 = vld [vmem:[#allocation2 + $0x8] sm:$0xff]
    %v156 = vld [vmem:[%s2] sm:$0x1]
    %v157 = vunpack.c.l.bf16 %v156
    %v158 = vlaneseq
    %v159 = vshrl.u32 %v158, 7
    %v160 = vsub.s32 0, %v159
    %v161 = vrot.slane %v157, %v160
    %v162 = vadd.f32 %v154, %v161
    %v163 = vadd.f32 %v155, %v161
    %v164 = vld [vmem:[%s3] sm:$0xf]
    %v165 = vld [vmem:[%s3 + $0x4] sm:$0xf]
    %v166 = vunpack.c.l.bf16 %v164
    %v167 = vunpack.c.l.bf16 %v165
    %v168 = vadd.f32 %v162, %v166
    %v169 = vadd.f32 %v163, %v167
    %v170 = vsel %vm148, %v168, 0.0
    %171 = vadd.xlane.f32.xlu0 %v170
    %v172 = vpop.xlane.xlu0 %171
    %v173 = vsel %vm148, %v169, 0.0
    %174 = vadd.xlane.f32.xlu0 %v173
    %v175 = vpop.xlane.xlu0 %174
    %v176 = vrcp.pop 32.0
    %v177 = vmul.f32 %v172, %v176
    %v178 = vmul.f32 %v175, %v176
    %v179 = vsub.f32 %v168, %v177
    %v180 = vsub.f32 %v169, %v178
    %v181 = vmul.f32 %v179, %v179
    %v182 = vmul.f32 %v180, %v180
    %v183 = vsel %vm148, %v181, 0.0
    %184 = vadd.xlane.f32.xlu0 %v183
    %v185 = vpop.xlane.xlu0 %184
    %v186 = vsel %vm148, %v182, 0.0
    %187 = vadd.xlane.f32.xlu0 %v186
    %v188 = vpop.xlane.xlu0 %187
    %v189 = vmul.f32 %v185, %v176
    %v190 = vmul.f32 %v188, %v176
    %v191 = vadd.f32 %v189, 1e-05
    %v192 = vadd.f32 %v190, 1e-05
    %v193 = vrsqrt.pop %v191
    %v194 = vrsqrt.pop %v192
    %v195 = vmul.f32 %v179, %v193
    %v196 = vmul.f32 %v180, %v194
    %v197 = vld [vmem:[%s4] sm:$0x1]
    %v198 = vunpack.c.l.bf16 %v197
    %v199 = vlaneseq
    %v200 = vshrl.u32 %v199, 7
    %v201 = vsub.s32 0, %v200
    %v202 = vrot.slane %v198, %v201
    %v203 = vmul.f32 %v195, %v202
    %v204 = vmul.f32 %v196, %v202
    %v205 = vld [vmem:[%s5] sm:$0x1]
    %v206 = vunpack.c.l.bf16 %v205
    %v207 = vlaneseq
    %v208 = vshrl.u32 %v207, 7
    %v209 = vsub.s32 0, %v208
    %v210 = vrot.slane %v206, %v209
    %v211 = vadd.f32 %v203, %v210
    %v212 = vadd.f32 %v204, %v210
    %v213 = vpack.c.bf16 %v212, %v211
    %v215 = vunpack.c.l.b16 %v213
    %v216 = vunpack.c.h.b16 %v213
    %v217 = vpack.c.b16 %v215, %v215
    %v218 = vpack.c.b16 %v216, %v216
    %vm221 = vcmask 257024
    %222 = vst.msk [vmem:[%s6] sm:$0xf] %vm221, %v217
    %223 = vst.msk [vmem:[%s6 + $0x4] sm:$0xf] %vm221, %v218
  $region33: #{pipeline_bert_forward.16} parent=0 // pred_fallthru
    _
  // Predicated region
  $region34: #{pipeline_bert_forward.16} parent=0 // pred_check
    _
  $region35: #{pipeline_bert_forward.16} parent=0 // pred_check_branch
    %225 = sbr.rel (0) target = $region37
  $region36: #{pipeline_bert_forward.16} parent=0 // pred_region
    _
  $region37: #{pipeline_bert_forward.16} parent=0 // pred_fallthru
    _
  // Predicated region
  $region38: #{pipeline_bert_forward.16} parent=0 // pred_check
    _
  $region39: #{pipeline_bert_forward.16} parent=0 // pred_check_branch
    %227 = sbr.rel (0) target = $region41
  $region40: #{pipeline_bert_forward.16} parent=0 // pred_region
    _
  $region41: #{pipeline_bert_forward.16} parent=0 // pred_fallthru
    _

</llo_original>
